<compile_context>
chip_gen: v7x
topology: tpu7x:2x2x1
jax: 0.10.0
libtpu: 0.0.40
codegen_flags: <defaults>
</compile_context>

<pallas_src>
import functools
import math

import jax
import jax.numpy as jnp
from jax import lax
from jax.experimental import pallas as pl
from jax.experimental.pallas import tpu as pltpu

# ---------------- model config (bert-base widths, shrunk depth/vocab) ----------------
HIDDEN = 768
NUM_HEADS = 12
HEAD_DIM = HIDDEN // NUM_HEADS           # 64
INTERMEDIATE = 3072
NUM_LAYERS = 2          # bert-base has 12; reduced for the synthetic example
VOCAB = 1000
MAX_POS = 64
TYPE_VOCAB = 2
LN_EPS = 1e-12
CLS_H = 50
CLS_OUT = 2
CLS_PAD = 128           # pad classifier dims to a full 128-lane vreg
ATTN_SCALE = 1.0 / math.sqrt(HEAD_DIM)
VMEM_LIMIT_BYTES = 16 * 1024 * 1024      # real per-kernel footprint is <= ~9 MiB


def _pick_tile(dim, candidates):
    for c in candidates:
        if dim % c == 0:
            return c
    return dim


def _row_tile(m):
    # tm=8 gives >=2 parallel M blocks at M=16 so both v7x TensorCores are engaged.
    return 8 if m % 8 == 0 else m


def _gelu(x):
    # TODO(synk): HF BERT uses exact erf-GELU; tanh approximation used for safe TPU lowering.
    return 0.5 * x * (1.0 + jnp.tanh(0.7978845608028654 * (x + 0.044715 * x * x * x)))


def _apply_act(x, activation):
    if activation == "relu":
        return jnp.maximum(x, 0.0)
    if activation == "gelu":
        return _gelu(x)
    return x


def _layernorm_f32(y, g, b, eps):
    mean = jnp.mean(y, axis=-1, keepdims=True)
    cen = y - mean
    var = jnp.mean(cen * cen, axis=-1, keepdims=True)
    inv = lax.rsqrt(var + eps)
    return cen * inv * g + b


# --------------------- direct linear (single-K-block, no accumulator) -----------------
def _linear_kernel(x_ref, w_ref, b_ref, o_ref, *, activation):
    acc = jnp.dot(x_ref[...], w_ref[...], preferred_element_type=jnp.float32) + b_ref[...]
    o_ref[...] = _apply_act(acc, activation).astype(o_ref.dtype)


def pallas_linear(x, w, b, activation="none", out_dtype=jnp.bfloat16):
    """y = act(x @ w + b). x: [M,K] bf16, w: [K,N] bf16, b: [N] f32. K fits one block."""
    M, K = x.shape
    _, N = w.shape
    assert K <= 1024, "pallas_linear expects K in a single block"
    tm = _row_tile(M)
    # full-N weight block unless its bf16 double-buffer would exceed ~12 MiB
    tn = N if K * N * 2 <= 6 * 1024 * 1024 else _pick_tile(
        N, (1536, 1024, 768, 512, 384, 256, 128))
    grid = (M // tm, N // tn)
    return pl.pallas_call(
        functools.partial(_linear_kernel, activation=activation),
        out_shape=jax.ShapeDtypeStruct((M, N), out_dtype),
        grid=grid,
        in_specs=[
            pl.BlockSpec((tm, K), lambda i, j: (i, 0)),
            pl.BlockSpec((K, tn), lambda i, j: (0, j)),
            pl.BlockSpec((1, tn), lambda i, j: (0, j)),
        ],
        out_specs=pl.BlockSpec((tm, tn), lambda i, j: (i, j)),
        compiler_params=pltpu.CompilerParams(
            dimension_semantics=("parallel", "parallel"),
            vmem_limit_bytes=VMEM_LIMIT_BYTES,
        ),
    )(x, w, b.reshape(1, N))


# -------------- linear with fused residual-add + LayerNorm epilogue -------------------
def _linear_res_ln_direct_kernel(x_ref, w_ref, b_ref, res_ref, g_ref, beta_ref, o_ref, *, eps):
    y = (jnp.dot(x_ref[...], w_ref[...], preferred_element_type=jnp.float32)
         + b_ref[...] + res_ref[...].astype(jnp.float32))
    o_ref[...] = _layernorm_f32(y, g_ref[...], beta_ref[...], eps).astype(o_ref.dtype)


def _linear_res_ln_acc_kernel(x_ref, w_ref, b_ref, res_ref, g_ref, beta_ref, o_ref,
                              acc_ref, *, eps):
    @pl.when(pl.program_id(1) == 0)
    def _():
        acc_ref[...] = jnp.zeros_like(acc_ref)

    acc_ref[...] += jnp.dot(x_ref[...], w_ref[...], preferred_element_type=jnp.float32)

    @pl.when(pl.program_id(1) == pl.num_programs(1) - 1)
    def _():
        y = acc_ref[...] + b_ref[...] + res_ref[...].astype(jnp.float32)
        o_ref[...] = _layernorm_f32(y, g_ref[...], beta_ref[...], eps).astype(o_ref.dtype)


def pallas_linear_residual_ln(x, w, b, residual, gamma, beta,
                              eps=LN_EPS, out_dtype=jnp.bfloat16):
    """y = LayerNorm(residual + x @ w + b). N kept un-tiled (full row) so LN can fuse."""
    M, K = x.shape
    _, N = w.shape
    tm = _row_tile(M)
    args = (x, w, b.reshape(1, N), residual, gamma.reshape(1, N), beta.reshape(1, N))
    if K <= 1024:
        # single K block -> skip the f32 accumulator round-trip entirely
        return pl.pallas_call(
            functools.partial(_linear_res_ln_direct_kernel, eps=eps),
            out_shape=jax.ShapeDtypeStruct((M, N), out_dtype),
            grid=(M // tm,),
            in_specs=[
                pl.BlockSpec((tm, K), lambda i: (i, 0)),
                pl.BlockSpec((K, N), lambda i: (0, 0)),
                pl.BlockSpec((1, N), lambda i: (0, 0)),
                pl.BlockSpec((tm, N), lambda i: (i, 0)),
                pl.BlockSpec((1, N), lambda i: (0, 0)),
                pl.BlockSpec((1, N), lambda i: (0, 0)),
            ],
            out_specs=pl.BlockSpec((tm, N), lambda i: (i, 0)),
            compiler_params=pltpu.CompilerParams(
                dimension_semantics=("parallel",),
                vmem_limit_bytes=VMEM_LIMIT_BYTES,
            ),
        )(*args)
    # FFN down-proj (K=3072): K-tiled accumulation, >=2 "arbitrary" K steps (good on v5e)
    tk = _pick_tile(K, (768, 512, 384, 256, 128))
    return pl.pallas_call(
        functools.partial(_linear_res_ln_acc_kernel, eps=eps),
        out_shape=jax.ShapeDtypeStruct((M, N), out_dtype),
        grid=(M // tm, K // tk),
        in_specs=[
            pl.BlockSpec((tm, tk), lambda i, k: (i, k)),
            pl.BlockSpec((tk, N), lambda i, k: (k, 0)),
            pl.BlockSpec((1, N), lambda i, k: (0, 0)),
            pl.BlockSpec((tm, N), lambda i, k: (i, 0)),
            pl.BlockSpec((1, N), lambda i, k: (0, 0)),
            pl.BlockSpec((1, N), lambda i, k: (0, 0)),
        ],
        out_specs=pl.BlockSpec((tm, N), lambda i, k: (i, 0)),
        scratch_shapes=[pltpu.VMEM((tm, N), jnp.float32)],
        compiler_params=pltpu.CompilerParams(
            dimension_semantics=("parallel", "arbitrary"),
            vmem_limit_bytes=VMEM_LIMIT_BYTES,
        ),
    )(*args)


# ------------- fused embedding-LayerNorm + QKV projection (first layer only) ----------
def _ln_qkv_kernel(x_ref, g_ref, beta_ref, w_ref, b_ref, qkv_ref, hnorm_ref, *, eps):
    x = x_ref[...].astype(jnp.float32)
    xn = _layernorm_f32(x, g_ref[...], beta_ref[...], eps)
    xn_bf = xn.astype(hnorm_ref.dtype)
    hnorm_ref[...] = xn_bf                          # post-LN hidden, used as residual
    qkv_ref[...] = (jnp.dot(xn_bf, w_ref[...], preferred_element_type=jnp.float32)
                    + b_ref[...]).astype(qkv_ref.dtype)


def pallas_ln_qkv(emb, gamma, beta, w_qkv, b_qkv, eps=LN_EPS, out_dtype=jnp.bfloat16):
    """Returns (qkv, h) = (LN(emb) @ w_qkv + b_qkv, LN(emb)); fuses the embedding LayerNorm
    into the first layer's QKV projection, saving one pallas_call + activation round-trip."""
    M, D = emb.shape
    _, N3 = w_qkv.shape
    tm = _row_tile(M)
    return pl.pallas_call(
        functools.partial(_ln_qkv_kernel, eps=eps),
        out_shape=(jax.ShapeDtypeStruct((M, N3), out_dtype),
                   jax.ShapeDtypeStruct((M, D), out_dtype)),
        grid=(M // tm,),
        in_specs=[
            pl.BlockSpec((tm, D), lambda i: (i, 0)),
            pl.BlockSpec((1, D), lambda i: (0, 0)),
            pl.BlockSpec((1, D), lambda i: (0, 0)),
            pl.BlockSpec((D, N3), lambda i: (0, 0)),
            pl.BlockSpec((1, N3), lambda i: (0, 0)),
        ],
        out_specs=(pl.BlockSpec((tm, N3), lambda i: (i, 0)),
                   pl.BlockSpec((tm, D), lambda i: (i, 0))),
        compiler_params=pltpu.CompilerParams(
            dimension_semantics=("parallel",),
            vmem_limit_bytes=VMEM_LIMIT_BYTES,
        ),
    )(emb, gamma.reshape(1, D), beta.reshape(1, D), w_qkv, b_qkv.reshape(1, N3))


# ----------------------------- self-attention (grid over batch only) -------------------
def _attn_kernel(qkv_ref, m_ref, o_ref, *, seq, hidden, num_heads, head_dim):
    x = qkv_ref[...].reshape(seq, 3 * hidden)       # bf16, [Q | K | V] for one sequence
    mask = m_ref[...].reshape(1, seq)               # f32 additive mask over key positions
    outs = []
    for h in range(num_heads):                      # unrolled; per-head tiles are tiny
        lo = h * head_dim
        qh = x[:, lo:lo + head_dim]
        kh = x[:, hidden + lo:hidden + lo + head_dim]
        vh = x[:, 2 * hidden + lo:2 * hidden + lo + head_dim]
        # contract last dims directly (no kh.T transpose); 1/sqrt(dh) is folded into w_qkv
        s = lax.dot_general(qh, kh, (((1,), (1,)), ((), ())),
                            preferred_element_type=jnp.float32) + mask
        s = s - jnp.max(s, axis=-1, keepdims=True)
        p = jnp.exp(s)
        p = p * pl.reciprocal(jnp.sum(p, axis=-1, keepdims=True), approx=True)
        outs.append(jnp.dot(p.astype(x.dtype), vh, preferred_element_type=jnp.float32))
    out = jnp.concatenate(outs, axis=-1)            # (seq, hidden): lane-dense store
    o_ref[...] = out.reshape(1, seq, hidden).astype(o_ref.dtype)


def pallas_attention(qkv, add_mask):
    """qkv: [B, S, 3*HIDDEN] bf16 laid out [Q | K | V]; add_mask: [B, 1, S] f32 additive."""
    B, S, _ = qkv.shape
    # TODO(synk): for long sequences switch to a flash-style tq/tk-tiled online-softmax
    # kernel; at S=8 one (S, 3*HIDDEN) block per batch (~36 KiB bf16) is optimal.
    return pl.pallas_call(
        functools.partial(_attn_kernel, seq=S, hidden=HIDDEN,
                          num_heads=NUM_HEADS, head_dim=HEAD_DIM),
        out_shape=jax.ShapeDtypeStruct((B, S, HIDDEN), jnp.bfloat16),
        grid=(B,),
        in_specs=[
            pl.BlockSpec((1, S, 3 * HIDDEN), lambda b: (b, 0, 0)),
            pl.BlockSpec((1, 1, S), lambda b: (b, 0, 0)),
        ],
        out_specs=pl.BlockSpec((1, S, HIDDEN), lambda b: (b, 0, 0)),
        compiler_params=pltpu.CompilerParams(
            dimension_semantics=("parallel",),
            vmem_limit_bytes=VMEM_LIMIT_BYTES,
        ),
    )(qkv, add_mask)


# ----------------------------- fused classifier head ----------------------------------
def _classifier_kernel(x_ref, w1_ref, b1_ref, w2_ref, b2_ref, o_ref):
    h = jnp.dot(x_ref[...], w1_ref[...], preferred_element_type=jnp.float32) + b1_ref[...]
    h = jnp.maximum(h, 0.0)
    out = jnp.dot(h.astype(w2_ref.dtype), w2_ref[...],
                  preferred_element_type=jnp.float32) + b2_ref[...]
    o_ref[...] = out


def pallas_classifier(cls, w1_pad, b1_pad, w2_pad, b2_pad):
    """Fused Linear(768,50)->ReLU->Linear(50,2), dims padded to 128 lanes; slice outside."""
    B, D = cls.shape
    return pl.pallas_call(
        _classifier_kernel,
        out_shape=jax.ShapeDtypeStruct((B, CLS_PAD), jnp.float32),
        grid=(1,),
        in_specs=[
            pl.BlockSpec((B, D), lambda i: (0, 0)),
            pl.BlockSpec((D, CLS_PAD), lambda i: (0, 0)),
            pl.BlockSpec((1, CLS_PAD), lambda i: (0, 0)),
            pl.BlockSpec((CLS_PAD, CLS_PAD), lambda i: (0, 0)),
            pl.BlockSpec((1, CLS_PAD), lambda i: (0, 0)),
        ],
        out_specs=pl.BlockSpec((B, CLS_PAD), lambda i: (0, 0)),
        compiler_params=pltpu.CompilerParams(dimension_semantics=("arbitrary",)),
    )(cls, w1_pad, b1_pad, w2_pad, b2_pad)


# ----------------------------- parameter init ---------------------------------------
def _dense_init(key, shape, scale=0.02):
    return scale * jax.random.normal(key, shape, dtype=jnp.float32)


def init_params(key):
    keys = jax.random.split(key, 5 + NUM_LAYERS * 4)
    ki = iter(keys)
    word = _dense_init(next(ki), (VOCAB, HIDDEN))
    posv = _dense_init(next(ki), (MAX_POS, HIDDEN))
    typv = _dense_init(next(ki), (TYPE_VOCAB, HIDDEN))
    w1 = _dense_init(next(ki), (HIDDEN, CLS_H))
    w2 = _dense_init(next(ki), (CLS_H, CLS_OUT))
    p = {
        "word_emb": word,
        "pos_emb": posv,
        "type_emb": typv,
        "emb_ln_g": jnp.ones((HIDDEN,), jnp.float32),
        "emb_ln_b": jnp.zeros((HIDDEN,), jnp.float32),
        "layers": [],
        # classifier head: Linear(768, 50) -> ReLU -> Linear(50, 2), padded to 128 lanes
        "cls_w1_pad": jnp.pad(w1, ((0, 0), (0, CLS_PAD - CLS_H))).astype(jnp.bfloat16),
        "cls_b1_pad": jnp.zeros((1, CLS_PAD), jnp.float32),
        "cls_w2_pad": jnp.pad(w2, ((0, CLS_PAD - CLS_H), (0, CLS_PAD - CLS_OUT))).astype(jnp.bfloat16),
        "cls_b2_pad": jnp.zeros((1, CLS_PAD), jnp.float32),
    }
    for _ in range(NUM_LAYERS):
        w_qkv = _dense_init(next(ki), (HIDDEN, 3 * HIDDEN))
        # fold the 1/sqrt(head_dim) attention scale into the Q projection (free at init;
        # removes a per-head VPU multiply of the score tile inside the attention kernel)
        w_qkv = jnp.concatenate([w_qkv[:, :HIDDEN] * ATTN_SCALE, w_qkv[:, HIDDEN:]], axis=1)
        # TODO(synk): store encoder weights as fp8 (v7x) / int8 (v5e, v6e) with per-channel
        # scales in the bias epilogue to halve the dominant weight-HBM stream (needs accuracy
        # validation); kept bf16 here.
        layer = {
            "w_qkv": w_qkv.astype(jnp.bfloat16),          # fused Q|K|V: one [768, 2304] matmul
            "b_qkv": jnp.zeros((3 * HIDDEN,), jnp.float32),
            "wo": _dense_init(next(ki), (HIDDEN, HIDDEN)).astype(jnp.bfloat16),
            "bo": jnp.zeros((HIDDEN,), jnp.float32),
            "attn_ln_g": jnp.ones((HIDDEN,), jnp.float32),
            "attn_ln_b": jnp.zeros((HIDDEN,), jnp.float32),
            "w1": _dense_init(next(ki), (HIDDEN, INTERMEDIATE)).astype(jnp.bfloat16),
            "b1": jnp.zeros((INTERMEDIATE,), jnp.float32),
            "w2": _dense_init(next(ki), (INTERMEDIATE, HIDDEN)).astype(jnp.bfloat16),
            "b2": jnp.zeros((HIDDEN,), jnp.float32),
            "out_ln_g": jnp.ones((HIDDEN,), jnp.float32),
            "out_ln_b": jnp.zeros((HIDDEN,), jnp.float32),
        }
        p["layers"].append(layer)
    return p


# ----------------------------- forward pass ------------------------------------------
def bert_classifier_forward(params, input_ids, attention_mask):
    B, S = input_ids.shape

    # --- embeddings (gather + adds are XLA glue; the embedding LayerNorm is fused into
    #     the first layer's QKV projection kernel) ---
    tok = jnp.take(params["word_emb"], input_ids, axis=0)                      # [B, S, D]
    pos = params["pos_emb"][:S][None, :, :]                                    # [1, S, D]
    typ = params["type_emb"][0][None, None, :]                                 # token_type_ids = 0
    emb = (tok + pos + typ).reshape(B * S, HIDDEN)                             # f32 [B*S, D]

    # additive attention mask: 0 for real tokens, -10000 for padding
    add_mask = ((1.0 - attention_mask.astype(jnp.float32)) * -10000.0).reshape(B, 1, S)

    h = None
    for li, layer in enumerate(params["layers"]):
        # --- multi-head self attention (fused QKV projection, no wrapper transposes) ---
        if li == 0:
            # fused: LayerNorm(emb) -> QKV; also emits post-LN hidden used as the residual
            qkv, h = pallas_ln_qkv(emb, params["emb_ln_g"], params["emb_ln_b"],
                                   layer["w_qkv"], layer["b_qkv"])
        else:
            qkv = pallas_linear(h, layer["w_qkv"], layer["b_qkv"])             # bf16 [B*S, 3D]
        ctx = pallas_attention(qkv.reshape(B, S, 3 * HIDDEN), add_mask)        # bf16 [B, S, D]
        ctx = ctx.reshape(B * S, HIDDEN)
        # output projection + residual + LayerNorm fused in one kernel (no accumulator, K=768)
        h = pallas_linear_residual_ln(ctx, layer["wo"], layer["bo"], h,
                                      layer["attn_ln_g"], layer["attn_ln_b"])

        # --- feed-forward: GELU up-proj, then down-proj + residual + LayerNorm fused ---
        ff = pallas_linear(h, layer["w1"], layer["b1"], activation="gelu")     # bf16 [B*S, 4D]
        h = pallas_linear_residual_ln(ff, layer["w2"], layer["b2"], h,
                                      layer["out_ln_g"], layer["out_ln_b"])

    # --- [CLS] token + fused classifier head ---
    cls = h.reshape(B, S, HIDDEN)[:, 0, :]                                     # outputs[0][:, 0, :]
    logits_pad = pallas_classifier(cls, params["cls_w1_pad"], params["cls_b1_pad"],
                                   params["cls_w2_pad"], params["cls_b2_pad"])
    return logits_pad[:, :CLS_OUT]                                             # [B, 2] f32


# ----------------------------------- main --------------------------------------------
if __name__ == "__main__":
    B, S = 2, 8
    key = jax.random.PRNGKey(0)
    k_ids, k_params = jax.random.split(key)
    input_ids = jax.random.randint(k_ids, (B, S), 0, VOCAB, dtype=jnp.int32)
    attention_mask = jnp.ones((B, S), dtype=jnp.int32)

    params = init_params(k_params)
    logits = bert_classifier_forward(params, input_ids, attention_mask)
    logits = jax.block_until_ready(logits)

    assert logits.shape == (B, CLS_OUT), logits.shape
    assert jnp.all(jnp.isfinite(logits))
    print("KERNEL_OK")
</pallas_src>

<mosaic_0001>
module attributes {stable_mosaic.version = 11 : i64} {
  func.func @_ln_qkv_kernel(%arg0: i32, %arg1: memref<8x768xf32, #tpu.memory_space<vmem>>, %arg2: memref<1x768xf32, #tpu.memory_space<vmem>>, %arg3: memref<1x768xf32, #tpu.memory_space<vmem>>, %arg4: memref<768x2304xbf16, #tpu.memory_space<vmem>>, %arg5: memref<1x2304xf32, #tpu.memory_space<vmem>>, %arg6: memref<8x2304xbf16, #tpu.memory_space<vmem>>, %arg7: memref<8x768xbf16, #tpu.memory_space<vmem>>) attributes {dimension_semantics = [#tpu.dimension_semantics<parallel>], iteration_bounds = array<i64: 2>, scalar_prefetch = 0 : i64, scratch_operands = 0 : i64, tpu.core_type = #tpu.core_type<tc>, window_params = [{transform_indices = @transform_0, window_bounds = array<i64: 8, 768>}, {pipeline_mode = #tpu.pipeline_mode<synchronous>, transform_indices = @transform_1, window_bounds = array<i64: 1, 768>}, {pipeline_mode = #tpu.pipeline_mode<synchronous>, transform_indices = @transform_2, window_bounds = array<i64: 1, 768>}, {pipeline_mode = #tpu.pipeline_mode<synchronous>, transform_indices = @transform_3, window_bounds = array<i64: 768, 2304>}, {pipeline_mode = #tpu.pipeline_mode<synchronous>, transform_indices = @transform_4, window_bounds = array<i64: 1, 2304>}, {transform_indices = @transform_5, window_bounds = array<i64: 8, 2304>}, {transform_indices = @transform_6, window_bounds = array<i64: 8, 768>}]} {
    %c0 = arith.constant 0 : index
    %c0_0 = arith.constant 0 : index
    %0 = vector.load %arg1[%c0, %c0_0] : memref<8x768xf32, #tpu.memory_space<vmem>>, vector<8x768xf32>
    %c0_1 = arith.constant 0 : index
    %c0_2 = arith.constant 0 : index
    %1 = vector.load %arg2[%c0_1, %c0_2] : memref<1x768xf32, #tpu.memory_space<vmem>>, vector<1x768xf32>
    %c0_3 = arith.constant 0 : index
    %c0_4 = arith.constant 0 : index
    %2 = vector.load %arg3[%c0_3, %c0_4] : memref<1x768xf32, #tpu.memory_space<vmem>>, vector<1x768xf32>
    %cst = arith.constant dense<0.000000e+00> : vector<8xf32>
    %3 = vector.multi_reduction <add>, %0, %cst [1] : vector<8x768xf32> to vector<8xf32>
    %4 = vector.shape_cast %3 : vector<8xf32> to vector<8x1xf32>
    %cst_5 = arith.constant 7.680000e+02 : f32
    %5 = vector.broadcast %cst_5 : f32 to vector<8x1xf32>
    %6 = arith.divf %4, %5 : vector<8x1xf32>
    %7 = vector.broadcast %6 : vector<8x1xf32> to vector<8x768xf32>
    %8 = arith.subf %0, %7 : vector<8x768xf32>
    %9 = arith.mulf %8, %8 : vector<8x768xf32>
    %cst_6 = arith.constant dense<0.000000e+00> : vector<8xf32>
    %10 = vector.multi_reduction <add>, %9, %cst_6 [1] : vector<8x768xf32> to vector<8xf32>
    %11 = vector.shape_cast %10 : vector<8xf32> to vector<8x1xf32>
    %cst_7 = arith.constant 7.680000e+02 : f32
    %12 = vector.broadcast %cst_7 : f32 to vector<8x1xf32>
    %13 = arith.divf %11, %12 : vector<8x1xf32>
    %cst_8 = arith.constant 9.99999996E-13 : f32
    %14 = vector.broadcast %cst_8 : f32 to vector<8x1xf32>
    %15 = arith.addf %13, %14 : vector<8x1xf32>
    %16 = math.rsqrt %15 : vector<8x1xf32>
    %17 = vector.broadcast %16 : vector<8x1xf32> to vector<8x768xf32>
    %18 = arith.mulf %8, %17 : vector<8x768xf32>
    %19 = vector.broadcast %1 : vector<1x768xf32> to vector<8x768xf32>
    %20 = arith.mulf %18, %19 : vector<8x768xf32>
    %21 = vector.broadcast %2 : vector<1x768xf32> to vector<8x768xf32>
    %22 = arith.addf %20, %21 : vector<8x768xf32>
    %23 = arith.truncf %22 : vector<8x768xf32> to vector<8x768xbf16>
    %c0_9 = arith.constant 0 : index
    %c0_10 = arith.constant 0 : index
    %24 = vector.load %arg7[%c0_9, %c0_10] : memref<8x768xbf16, #tpu.memory_space<vmem>>, vector<8x768xbf16>
    tpu.vector_store %arg7[%c0_9, %c0_10], %23 {strides = array<i32>} : memref<8x768xbf16, #tpu.memory_space<vmem>>, vector<8x768xbf16>,
    %c0_11 = arith.constant 0 : index
    %c0_12 = arith.constant 0 : index
    %25 = vector.load %arg4[%c0_11, %c0_12] : memref<768x2304xbf16, #tpu.memory_space<vmem>>, vector<768x2304xbf16>
    %cst_13 = arith.constant dense<0.000000e+00> : vector<8x2304xf32>
    %26 = tpu.matmul %23, %25, %cst_13 {dimension_numbers = #tpu.dot_dimension_numbers<[1], [0], [0], [1], [0, 0, 1, 1], [], []>} : vector<8x768xbf16>, vector<768x2304xbf16>, vector<8x2304xf32> -> vector<8x2304xf32>
    %c0_14 = arith.constant 0 : index
    %c0_15 = arith.constant 0 : index
    %27 = vector.load %arg5[%c0_14, %c0_15] : memref<1x2304xf32, #tpu.memory_space<vmem>>, vector<1x2304xf32>
    %28 = vector.broadcast %27 : vector<1x2304xf32> to vector<8x2304xf32>
    %29 = arith.addf %26, %28 : vector<8x2304xf32>
    %30 = arith.truncf %29 : vector<8x2304xf32> to vector<8x2304xbf16>
    %c0_16 = arith.constant 0 : index
    %c0_17 = arith.constant 0 : index
    %31 = vector.load %arg6[%c0_16, %c0_17] : memref<8x2304xbf16, #tpu.memory_space<vmem>>, vector<8x2304xbf16>
    tpu.vector_store %arg6[%c0_16, %c0_17], %30 {strides = array<i32>} : memref<8x2304xbf16, #tpu.memory_space<vmem>>, vector<8x2304xbf16>,
    return
  }
  func.func @transform_0(%arg0: i32) -> (i32, i32) {
    %c0_i32 = arith.constant 0 : i32
    %c0_i32_0 = arith.constant 0 : i32
    return %arg0, %c0_i32 : i32, i32
  }
  func.func @transform_1(%arg0: i32) -> (i32, i32) {
    %c0_i32 = arith.constant 0 : i32
    %c0_i32_0 = arith.constant 0 : i32
    %c0_i32_1 = arith.constant 0 : i32
    return %c0_i32, %c0_i32_0 : i32, i32
  }
  func.func @transform_2(%arg0: i32) -> (i32, i32) {
    %c0_i32 = arith.constant 0 : i32
    %c0_i32_0 = arith.constant 0 : i32
    %c0_i32_1 = arith.constant 0 : i32
    return %c0_i32, %c0_i32_0 : i32, i32
  }
  func.func @transform_3(%arg0: i32) -> (i32, i32) {
    %c0_i32 = arith.constant 0 : i32
    %c0_i32_0 = arith.constant 0 : i32
    %c0_i32_1 = arith.constant 0 : i32
    return %c0_i32, %c0_i32_0 : i32, i32
  }
  func.func @transform_4(%arg0: i32) -> (i32, i32) {
    %c0_i32 = arith.constant 0 : i32
    %c0_i32_0 = arith.constant 0 : i32
    %c0_i32_1 = arith.constant 0 : i32
    return %c0_i32, %c0_i32_0 : i32, i32
  }
  func.func @transform_5(%arg0: i32) -> (i32, i32) {
    %c0_i32 = arith.constant 0 : i32
    %c0_i32_0 = arith.constant 0 : i32
    return %arg0, %c0_i32 : i32, i32
  }
  func.func @transform_6(%arg0: i32) -> (i32, i32) {
    %c0_i32 = arith.constant 0 : i32
    %c0_i32_0 = arith.constant 0 : i32
    return %arg0, %c0_i32 : i32, i32
  }
}

</mosaic_0001>

<llo_original>
// kernel: tpu_custom_call.1
$region0: #{tpu_custom_call.1}
  #allocation0 [shape = 'u32[]', space=smem, size = 0x4, offset = 0x4, fixed_abs, tag = 'smem constant byte address 0x4 - core index']
  #allocation1 [shape = 'u32[144,128]{1,0:T(1,128)}', space=vmem, size = 0x12000, scoped, tag = 'internal scratch']
  %s0 = inlined_call_operand.hbm [shape: f32[16,768], index: 0, kind: input, shape index: {}]
  %s1 = inlined_call_operand.hbm [shape: f32[1,768], index: 1, kind: input, shape index: {}]
  %s2 = inlined_call_operand.hbm [shape: f32[1,768], index: 2, kind: input, shape index: {}]
  %s3 = inlined_call_operand.hbm [shape: bf16[768,2304], index: 3, kind: input, shape index: {}]
  %s4 = inlined_call_operand.hbm [shape: f32[1,2304], index: 4, kind: input, shape index: {}]
  %s5 = inlined_call_operand.hbm [shape: bf16[16,2304], index: 5, kind: output, shape index: {0}]
  %s6 = inlined_call_operand.hbm [shape: bf16[16,768], index: 6, kind: output, shape index: {1}]
  %7 = xla_tuple %s5, %s6
  %s8 = sld [smem:[#allocation0]]
  $region81: #{tpu_custom_call.1} parent=0
    _
  %s10 = ssub.s32 1, %s8
  %s11 = scalar_select 0, %s10, %s8
  $region1: #{tpu_custom_call.1} parent=0
    #allocation2 [shape = 'u8[49152]{0}', space=vmem, size = 0xc000, scoped, tag = 'input window, operand 0']
    #allocation3 [shape = 's32[2]{0}', space=sflag, size = 0x8, scoped, tag = 'scoped memory for tpu_custom_call.1']
    #allocation4 [shape = 's32[2]{0}', space=sflag, size = 0x8, scoped, tag = 'scoped memory for tpu_custom_call.1']
    #allocation5 [shape = 'u8[3072]{0}', space=vmem, size = 0xc00, scoped, tag = 'input window, operand 1, single buffered']
    #allocation6 [shape = 's32[1]{0}', space=sflag, size = 0x4, scoped, tag = 'scoped memory for tpu_custom_call.1']
    #allocation7 [shape = 'u8[3072]{0}', space=vmem, size = 0xc00, scoped, tag = 'input window, operand 2, single buffered']
    #allocation8 [shape = 'u8[3538944]{0}', space=vmem, size = 0x360000, scoped, tag = 'input window, operand 3, single buffered']
    #allocation9 [shape = 's32[1]{0}', space=sflag, size = 0x4, scoped, tag = 'scoped memory for tpu_custom_call.1']
    #allocation10 [shape = 'u8[9216]{0}', space=vmem, size = 0x2400, scoped, tag = 'input window, operand 4, single buffered']
    #allocation11 [shape = 'u8[73728]{0}', space=vmem, size = 0x12000, scoped, tag = 'output window, operand 0']
    #allocation12 [shape = 'u8[24576]{0}', space=vmem, size = 0x6000, scoped, tag = 'output window, operand 1']
    #allocation13 [shape = 's32[2]{0}', space=sflag, size = 0x8, scoped, tag = 'scoped memory for tpu_custom_call.1']
    %12 = vsyncpa [#allocation3], 0
    %s13 = scalar_lea.sflag [#allocation3], 1
    %14 = vsyncpa %s13, 0
    %15 = vsyncpa [#allocation6], 0
    %16 = vsyncpa [#allocation9], 0
    %17 = vsyncpa [#allocation4], 0
    %s18 = scalar_lea.sflag [#allocation4], 1
    %19 = vsyncpa %s18, 0
    %20 = vsyncpa [#allocation13], 0
    %s21 = scalar_lea.sflag [#allocation13], 1
    %22 = vsyncpa %s21, 0
    loop: start=0, step=1, limit=4
    $region2: #{tpu_custom_call.1} parent=1 // loop_pre_header
      _
    $region3: #{tpu_custom_call.1} parent=1 // loop_header
      %s24 = sphi 0, %s28
      %p25 = scmp.ge.s32.totalorder %s24, 4
      %s34 = sphi 0, %s36
      %s37 = sphi 0, %s34
      %s38 = sphi 0, %s37
      %s54 = sphi 0, %s38
      %s58 = sphi 0, %s58
      %s60 = sphi 0, %s58
      %s61 = sphi 0, %s60
      %s75 = sphi 0, %s61
      %s79 = sphi 0, %s79
      %s81 = sphi 0, %s79
      %s82 = sphi 0, %s81
      %s96 = sphi 0, %s82
      %s100 = sphi 0, %s100
      %s102 = sphi 0, %s100
      %s103 = sphi 0, %s102
      %s117 = sphi 0, %s103
      %s121 = sphi 0, %s121
      %s123 = sphi 0, %s121
      %s124 = sphi 0, %s123
      %s138 = sphi 0, %s124
      %s144 = sphi 0, %s146
      %s147 = sphi 0, %s144
      %s148 = sphi 0, %s147
      %s164 = sphi 0, %s148
      %s170 = sphi 0, %s172
      %s173 = sphi 0, %s170
      %s174 = sphi 0, %s173
      %s190 = sphi 0, %s174
    $region4: #{tpu_custom_call.1} parent=1 // loop_header_branch
      %27 = sbr.rel (%p25) target = $region8
    $region5: #{tpu_custom_call.1} parent=1 // loop_body
      %s29 = ssub.s32 %s24, 1
      %s30 = ssub.s32 %s24, 2
      %s31 = sadd.s32 %s24, 1
      %s32 = ssub.s32 %s24, %s31
      %p33 = scmp.eq.s32.totalorder %s32, 0
      %s35 = sadd.s32 %s34, 1
      %s36 = scalar_select %p33, %s34, %s35
      %p39 = pneg %p33
      %p40 = scmp.eq.s32.totalorder %s24, 1
      %p41 = por %p39, %p40
      %p42 = scmp.ne.s32.totalorder %s34, %s37
      %p43 = scmp.eq.s32.totalorder %s24, 0
      %p44 = por %p42, %p43
      %p45 = scmp.ne.s32.totalorder %s34, %s37
      %p46 = scmp.eq.s32.totalorder %s29, 1
      %p47 = por %p45, %p46
      %p48 = scmp.ne.s32.totalorder %s37, %s38
      %p49 = scmp.eq.s32.totalorder %s29, 0
      %p50 = por %p48, %p49
      %p51 = scmp.ne.s32.totalorder %s37, %s38
      %p52 = scmp.eq.s32.totalorder %s30, 1
      %p53 = por %p51, %p52
      %p55 = scmp.ne.s32.totalorder %s38, %s54
      %p56 = scmp.eq.s32.totalorder %s30, 0
      %p57 = por %p55, %p56
      %s59 = sadd.s32 %s58, 1
      %p62 = scmp.eq.s32.totalorder %s24, 1
      %p63 = scmp.ne.s32.totalorder %s58, %s60
      %p64 = scmp.eq.s32.totalorder %s24, 0
      %p65 = por %p63, %p64
      %p66 = scmp.ne.s32.totalorder %s58, %s60
      %p67 = scmp.eq.s32.totalorder %s29, 1
      %p68 = por %p66, %p67
      %p69 = scmp.ne.s32.totalorder %s60, %s61
      %p70 = scmp.eq.s32.totalorder %s29, 0
      %p71 = por %p69, %p70
      %p72 = scmp.ne.s32.totalorder %s60, %s61
      %p73 = scmp.eq.s32.totalorder %s30, 1
      %p74 = por %p72, %p73
      %p76 = scmp.ne.s32.totalorder %s61, %s75
      %p77 = scmp.eq.s32.totalorder %s30, 0
      %p78 = por %p76, %p77
      %s80 = sadd.s32 %s79, 1
      %p83 = scmp.eq.s32.totalorder %s24, 1
      %p84 = scmp.ne.s32.totalorder %s79, %s81
      %p85 = scmp.eq.s32.totalorder %s24, 0
      %p86 = por %p84, %p85
      %p87 = scmp.ne.s32.totalorder %s79, %s81
      %p88 = scmp.eq.s32.totalorder %s29, 1
      %p89 = por %p87, %p88
      %p90 = scmp.ne.s32.totalorder %s81, %s82
      %p91 = scmp.eq.s32.totalorder %s29, 0
      %p92 = por %p90, %p91
      %p93 = scmp.ne.s32.totalorder %s81, %s82
      %p94 = scmp.eq.s32.totalorder %s30, 1
      %p95 = por %p93, %p94
      %p97 = scmp.ne.s32.totalorder %s82, %s96
      %p98 = scmp.eq.s32.totalorder %s30, 0
      %p99 = por %p97, %p98
      %s101 = sadd.s32 %s100, 1
      %p104 = scmp.eq.s32.totalorder %s24, 1
      %p105 = scmp.ne.s32.totalorder %s100, %s102
      %p106 = scmp.eq.s32.totalorder %s24, 0
      %p107 = por %p105, %p106
      %p108 = scmp.ne.s32.totalorder %s100, %s102
      %p109 = scmp.eq.s32.totalorder %s29, 1
      %p110 = por %p108, %p109
      %p111 = scmp.ne.s32.totalorder %s102, %s103
      %p112 = scmp.eq.s32.totalorder %s29, 0
      %p113 = por %p111, %p112
      %p114 = scmp.ne.s32.totalorder %s102, %s103
      %p115 = scmp.eq.s32.totalorder %s30, 1
      %p116 = por %p114, %p115
      %p118 = scmp.ne.s32.totalorder %s103, %s117
      %p119 = scmp.eq.s32.totalorder %s30, 0
      %p120 = por %p118, %p119
      %s122 = sadd.s32 %s121, 1
      %p125 = scmp.eq.s32.totalorder %s24, 1
      %p126 = scmp.ne.s32.totalorder %s121, %s123
      %p127 = scmp.eq.s32.totalorder %s24, 0
      %p128 = por %p126, %p127
      %p129 = scmp.ne.s32.totalorder %s121, %s123
      %p130 = scmp.eq.s32.totalorder %s29, 1
      %p131 = por %p129, %p130
      %p132 = scmp.ne.s32.totalorder %s123, %s124
      %p133 = scmp.eq.s32.totalorder %s29, 0
      %p134 = por %p132, %p133
      %p135 = scmp.ne.s32.totalorder %s123, %s124
      %p136 = scmp.eq.s32.totalorder %s30, 1
      %p137 = por %p135, %p136
      %p139 = scmp.ne.s32.totalorder %s124, %s138
      %p140 = scmp.eq.s32.totalorder %s30, 0
      %p141 = por %p139, %p140
      %s142 = ssub.s32 %s24, %s31
      %p143 = scmp.eq.s32.totalorder %s142, 0
      %s145 = sadd.s32 %s144, 1
      %s146 = scalar_select %p143, %s144, %s145
      %p149 = pneg %p143
      %p150 = scmp.eq.s32.totalorder %s24, 1
      %p151 = por %p149, %p150
      %p152 = scmp.ne.s32.totalorder %s144, %s147
      %p153 = scmp.eq.s32.totalorder %s24, 0
      %p154 = por %p152, %p153
      %p155 = scmp.ne.s32.totalorder %s144, %s147
      %p156 = scmp.eq.s32.totalorder %s29, 1
      %p157 = por %p155, %p156
      %p158 = scmp.ne.s32.totalorder %s147, %s148
      %p159 = scmp.eq.s32.totalorder %s29, 0
      %p160 = por %p158, %p159
      %p161 = scmp.ne.s32.totalorder %s147, %s148
      %p162 = scmp.eq.s32.totalorder %s30, 1
      %p163 = por %p161, %p162
      %p165 = scmp.ne.s32.totalorder %s148, %s164
      %p166 = scmp.eq.s32.totalorder %s30, 0
      %p167 = por %p165, %p166
      %s168 = ssub.s32 %s24, %s31
      %p169 = scmp.eq.s32.totalorder %s168, 0
      %s171 = sadd.s32 %s170, 1
      %s172 = scalar_select %p169, %s170, %s171
      %p175 = pneg %p169
      %p176 = scmp.eq.s32.totalorder %s24, 1
      %p177 = por %p175, %p176
      %p178 = scmp.ne.s32.totalorder %s170, %s173
      %p179 = scmp.eq.s32.totalorder %s24, 0
      %p180 = por %p178, %p179
      %p181 = scmp.ne.s32.totalorder %s170, %s173
      %p182 = scmp.eq.s32.totalorder %s29, 1
      %p183 = por %p181, %p182
      %p184 = scmp.ne.s32.totalorder %s173, %s174
      %p185 = scmp.eq.s32.totalorder %s29, 0
      %p186 = por %p184, %p185
      %p187 = scmp.ne.s32.totalorder %s173, %s174
      %p188 = scmp.eq.s32.totalorder %s30, 1
      %p189 = por %p187, %p188
      %p191 = scmp.ne.s32.totalorder %s174, %s190
      %p192 = scmp.eq.s32.totalorder %s30, 0
      %p193 = por %p191, %p192
      %p194 = scmp.le.s32.totalorder 1, %s24
      %p195 = scmp.lt.s32.totalorder %s24, 3
      %p196 = pnand %p194, %p195
      %p197 = pneg %p196
      // Predicated region
      $region9: #{tpu_custom_call.1} parent=5 // pred_check
        _
      $region10: #{tpu_custom_call.1} parent=5 // pred_check_branch
        %199 = sbr.rel (%p196) target = $region12
      $region11: #{tpu_custom_call.1} parent=5 // pred_region
        %s200 = ssub.s32 %s24, 1
        // Predicated region
        $region13: #{tpu_custom_call.1} parent=11 // pred_check
          %p201 = pneg %p71
        $region14: #{tpu_custom_call.1} parent=11 // pred_check_branch
          %203 = sbr.rel (%p201) target = $region16
        $region15: #{tpu_custom_call.1} parent=11 // pred_region
          %s205 = ssub.s32 96, 96
          %206 = vsyncadd [#allocation6], %s205
          %s208 = sshll.u32 [#allocation5], 4
          %s209 = int_to_ptr.vmem [resolvable:$true] %s208
          %211 = dma.hbm_to_vmem [thread:$0]  %s1, 96, %s209, [#allocation6]
        $region16: #{tpu_custom_call.1} parent=11 // pred_fallthru
          _
        // Predicated region
        $region17: #{tpu_custom_call.1} parent=11 // pred_check
          %p212 = pneg %p92
        $region18: #{tpu_custom_call.1} parent=11 // pred_check_branch
          %214 = sbr.rel (%p212) target = $region20
        $region19: #{tpu_custom_call.1} parent=11 // pred_region
          %s216 = ssub.s32 96, 96
          %217 = vsyncadd [#allocation6], %s216
          %s219 = sshll.u32 [#allocation7], 4
          %s220 = int_to_ptr.vmem [resolvable:$true] %s219
          %222 = dma.hbm_to_vmem [thread:$0]  %s2, 96, %s220, [#allocation6]
        $region20: #{tpu_custom_call.1} parent=11 // pred_fallthru
          _
        // Predicated region
        $region21: #{tpu_custom_call.1} parent=11 // pred_check
          %p223 = pneg %p113
        $region22: #{tpu_custom_call.1} parent=11 // pred_check_branch
          %225 = sbr.rel (%p223) target = $region24
        $region23: #{tpu_custom_call.1} parent=11 // pred_region
          %s227 = ssub.s32 110592, 110592
          %228 = vsyncadd [#allocation9], %s227
          %s229 = sshll.u32 [#allocation8], 4
          %s230 = int_to_ptr.vmem [resolvable:$true] %s229
          %235 = dma.hbm_to_vmem [thread:$0]  %s3, 110592, %s230, [#allocation9], 1152, 1152, 72
        $region24: #{tpu_custom_call.1} parent=11 // pred_fallthru
          _
        // Predicated region
        $region25: #{tpu_custom_call.1} parent=11 // pred_check
          %p236 = pneg %p134
        $region26: #{tpu_custom_call.1} parent=11 // pred_check_branch
          %238 = sbr.rel (%p236) target = $region28
        $region27: #{tpu_custom_call.1} parent=11 // pred_region
          %s240 = ssub.s32 288, 288
          %241 = vsyncadd [#allocation9], %s240
          %s243 = sshll.u32 [#allocation10], 4
          %s244 = int_to_ptr.vmem [resolvable:$true] %s243
          %246 = dma.hbm_to_vmem [thread:$0]  %s4, 288, %s244, [#allocation9]
        $region28: #{tpu_custom_call.1} parent=11 // pred_fallthru
          _
      $region12: #{tpu_custom_call.1} parent=5 // pred_fallthru
        _
      %p247 = scmp.lt.s32.totalorder %s24, 2
      // Predicated region
      $region29: #{tpu_custom_call.1} parent=5 // pred_check
        %p248 = pneg %p247
      $region30: #{tpu_custom_call.1} parent=5 // pred_check_branch
        %250 = sbr.rel (%p248) target = $region32
      $region31: #{tpu_custom_call.1} parent=5 // pred_region
        // Predicated region
        $region33: #{tpu_custom_call.1} parent=31 // pred_check
          %p251 = pneg %p44
        $region34: #{tpu_custom_call.1} parent=31 // pred_check_branch
          %253 = sbr.rel (%p251) target = $region36
        $region35: #{tpu_custom_call.1} parent=31 // pred_region
          %s254 = sand.u32 %s34, 1
          %s255 = scalar_lea.sflag [#allocation3], %s254
          %s256 = sand.u32 %s34, 1
          %s257 = smul.addr %s256, 48
          %s258 = scalar_lea.vmem [#allocation2], %s257
          %s260 = ssub.s32 768, 768
          %261 = vsyncadd %s255, %s260
          %s262 = smul.addr %s24, 6
          %s263 = smul.addr %s262, 128
          %s264 = scalar_lea.hbm %s0, %s263
          %s266 = sshll.u32 %s258, 4
          %s267 = int_to_ptr.vmem [resolvable:$true] %s266
          %269 = dma.hbm_to_vmem [thread:$0]  %s264, 768, %s267, %s255
        $region36: #{tpu_custom_call.1} parent=31 // pred_fallthru
          _
      $region32: #{tpu_custom_call.1} parent=5 // pred_fallthru
        _
      %p270 = scmp.le.s32.totalorder 1, %s24
      %p271 = scmp.lt.s32.totalorder %s24, 3
      %p272 = pnand %p270, %p271
      %p273 = pneg %p272
      // Predicated region
      $region37: #{tpu_custom_call.1} parent=5 // pred_check
        _
      $region38: #{tpu_custom_call.1} parent=5 // pred_check_branch
        %275 = sbr.rel (%p272) target = $region40
      $region39: #{tpu_custom_call.1} parent=5 // pred_region
        %s276 = ssub.s32 %s24, 1
        %s277 = sand.u32 %s37, 1
        %s278 = scalar_lea.sflag [#allocation3], %s277
        %s279 = sand.u32 %s37, 1
        %s280 = smul.addr %s279, 48
        %s281 = scalar_lea.vmem [#allocation2], %s280
        // Predicated region
        $region41: #{tpu_custom_call.1} parent=39 // pred_check
          %p282 = pneg %p50
        $region42: #{tpu_custom_call.1} parent=39 // pred_check_branch
          %284 = sbr.rel (%p282) target = $region44
        $region43: #{tpu_custom_call.1} parent=39 // pred_region
          %285 = dma.done %s278, 768
        $region44: #{tpu_custom_call.1} parent=39 // pred_fallthru
          _
        // Predicated region
        $region45: #{tpu_custom_call.1} parent=39 // pred_check
          %p286 = pneg %p71
        $region46: #{tpu_custom_call.1} parent=39 // pred_check_branch
          %288 = sbr.rel (%p286) target = $region48
        $region47: #{tpu_custom_call.1} parent=39 // pred_region
          %289 = dma.done [#allocation6], 96
        $region48: #{tpu_custom_call.1} parent=39 // pred_fallthru
          _
        // Predicated region
        $region49: #{tpu_custom_call.1} parent=39 // pred_check
          %p290 = pneg %p92
        $region50: #{tpu_custom_call.1} parent=39 // pred_check_branch
          %292 = sbr.rel (%p290) target = $region52
        $region51: #{tpu_custom_call.1} parent=39 // pred_region
          %293 = dma.done [#allocation6], 96
        $region52: #{tpu_custom_call.1} parent=39 // pred_fallthru
          _
        // Predicated region
        $region53: #{tpu_custom_call.1} parent=39 // pred_check
          %p294 = pneg %p113
        $region54: #{tpu_custom_call.1} parent=39 // pred_check_branch
          %296 = sbr.rel (%p294) target = $region56
        $region55: #{tpu_custom_call.1} parent=39 // pred_region
          %297 = dma.done [#allocation9], 110592
        $region56: #{tpu_custom_call.1} parent=39 // pred_fallthru
          _
        // Predicated region
        $region57: #{tpu_custom_call.1} parent=39 // pred_check
          %p298 = pneg %p134
        $region58: #{tpu_custom_call.1} parent=39 // pred_check_branch
          %300 = sbr.rel (%p298) target = $region60
        $region59: #{tpu_custom_call.1} parent=39 // pred_region
          %301 = dma.done [#allocation9], 288
        $region60: #{tpu_custom_call.1} parent=39 // pred_fallthru
          _
        %s302 = sand.u32 %s37, 1
        %s303 = scalar_lea.sflag [#allocation3], %s302
        %s304 = sand.u32 %s37, 1
        %s305 = smul.addr %s304, 48
        %s306 = scalar_lea.vmem [#allocation2], %s305
        %p307 = pneg %p50
        %p308 = pneg %p47
        %p309 = pneg %p71
        %p310 = pneg %p68
        %p311 = pneg %p92
        %p312 = pneg %p89
        %p313 = pneg %p113
        %p314 = pneg %p110
        %p315 = pneg %p134
        %p316 = pneg %p131
        %p317 = pneg %p160
        %p318 = pneg %p157
        %s319 = sand.u32 %s147, 1
        %s320 = scalar_lea.sflag [#allocation4], %s319
        %s321 = sand.u32 %s147, 1
        %s322 = smul.addr %s321, 72
        %s323 = scalar_lea.vmem [#allocation11], %s322
        %p324 = pneg %p186
        %p325 = pneg %p183
        %s326 = sand.u32 %s173, 1
        %s327 = scalar_lea.sflag [#allocation13], %s326
        %s328 = sand.u32 %s173, 1
        %s329 = smul.addr %s328, 24
        %s330 = scalar_lea.vmem [#allocation12], %s329
        %v331 = vld [vmem:[%s281] sm:$0xff]
        %v332 = vld [vmem:[%s281 + $0x8] sm:$0xff]
        %v333 = vld [vmem:[%s281 + $0x10] sm:$0xff]
        %v334 = vld [vmem:[%s281 + $0x18] sm:$0xff]
        %v335 = vld [vmem:[%s281 + $0x20] sm:$0xff]
        %v336 = vld [vmem:[%s281 + $0x28] sm:$0xff]
        %v337 = vld [vmem:[#allocation5] sm:$0x3f]
        %v338 = vld [vmem:[#allocation7] sm:$0x3f]
        %v339 = vadd.f32 %v331, %v332
        %v340 = vadd.f32 %v339, %v333
        %v341 = vadd.f32 %v340, %v334
        %v342 = vadd.f32 %v341, %v335
        %v343 = vadd.f32 %v342, %v336
        %344 = vadd.xlane.f32.xlu0 %v343
        %v345 = vpop.xlane.xlu0 %344
        %v346 = vrcp.pop 768.0
        %v347 = vmul.f32 %v345, %v346
        %v348 = vsub.f32 %v331, %v347
        %v349 = vsub.f32 %v332, %v347
        %v350 = vsub.f32 %v333, %v347
        %v351 = vsub.f32 %v334, %v347
        %v352 = vsub.f32 %v335, %v347
        %v353 = vsub.f32 %v336, %v347
        %v354 = vmul.f32 %v348, %v348
        %v355 = vmul.f32 %v349, %v349
        %v356 = vmul.f32 %v350, %v350
        %v357 = vmul.f32 %v351, %v351
        %v358 = vmul.f32 %v352, %v352
        %v359 = vmul.f32 %v353, %v353
        %v360 = vadd.f32 %v354, %v355
        %v361 = vadd.f32 %v360, %v356
        %v362 = vadd.f32 %v361, %v357
        %v363 = vadd.f32 %v362, %v358
        %v364 = vadd.f32 %v363, %v359
        %365 = vadd.xlane.f32.xlu0 %v364
        %v366 = vpop.xlane.xlu0 %365
        %v367 = vmul.f32 %v366, %v346
        %v368 = vadd.f32 %v367, 1e-12
        %v369 = vrsqrt.pop %v368
        %v370 = vmul.f32 %v348, %v369
        %v371 = vmul.f32 %v349, %v369
        %v372 = vmul.f32 %v350, %v369
        %v373 = vmul.f32 %v351, %v369
        %v374 = vmul.f32 %v352, %v369
        %v375 = vmul.f32 %v353, %v369
        %v377 = vlaneseq
        %v378 = vshrl.u32 %v377, 7
        %v379 = vsub.s32 0, %v378
        %v380 = vrot.slane %v337, %v379
        %v381 = vlaneseq
        %v382 = vshrl.u32 %v381, 7
        %v383 = vsub.s32 1, %v382
        %v384 = vrot.slane %v337, %v383
        %v385 = vlaneseq
        %v386 = vshrl.u32 %v385, 7
        %v387 = vsub.s32 2, %v386
        %v388 = vrot.slane %v337, %v387
        %v389 = vlaneseq
        %v390 = vshrl.u32 %v389, 7
        %v391 = vsub.s32 3, %v390
        %v392 = vrot.slane %v337, %v391
        %v393 = vlaneseq
        %v394 = vshrl.u32 %v393, 7
        %v395 = vsub.s32 4, %v394
        %v396 = vrot.slane %v337, %v395
        %v397 = vlaneseq
        %v398 = vshrl.u32 %v397, 7
        %v399 = vsub.s32 5, %v398
        %v400 = vrot.slane %v337, %v399
        %v407 = vmul.f32 %v370, %v380
        %v408 = vmul.f32 %v371, %v384
        %v409 = vmul.f32 %v372, %v388
        %v410 = vmul.f32 %v373, %v392
        %v411 = vmul.f32 %v374, %v396
        %v412 = vmul.f32 %v375, %v400
        %v414 = vlaneseq
        %v415 = vshrl.u32 %v414, 7
        %v416 = vsub.s32 0, %v415
        %v417 = vrot.slane %v338, %v416
        %v418 = vlaneseq
        %v419 = vshrl.u32 %v418, 7
        %v420 = vsub.s32 1, %v419
        %v421 = vrot.slane %v338, %v420
        %v422 = vlaneseq
        %v423 = vshrl.u32 %v422, 7
        %v424 = vsub.s32 2, %v423
        %v425 = vrot.slane %v338, %v424
        %v426 = vlaneseq
        %v427 = vshrl.u32 %v426, 7
        %v428 = vsub.s32 3, %v427
        %v429 = vrot.slane %v338, %v428
        %v430 = vlaneseq
        %v431 = vshrl.u32 %v430, 7
        %v432 = vsub.s32 4, %v431
        %v433 = vrot.slane %v338, %v432
        %v434 = vlaneseq
        %v435 = vshrl.u32 %v434, 7
        %v436 = vsub.s32 5, %v435
        %v437 = vrot.slane %v338, %v436
        %v444 = vadd.f32 %v407, %v417
        %v445 = vadd.f32 %v408, %v421
        %v446 = vadd.f32 %v409, %v425
        %v447 = vadd.f32 %v410, %v429
        %v448 = vadd.f32 %v411, %v433
        %v449 = vadd.f32 %v412, %v437
        %v450 = vpack.c.bf16 %v444, %v444
        %v451 = vpack.c.bf16 %v445, %v445
        %v452 = vpack.c.bf16 %v446, %v446
        %v453 = vpack.c.bf16 %v447, %v447
        %v454 = vpack.c.bf16 %v448, %v448
        %v455 = vpack.c.bf16 %v449, %v449
        %v462 = vunpack.c.l.b16 %v450
        %v463 = vunpack.c.l.b16 %v451
        %v464 = vunpack.c.l.b16 %v452
        %v465 = vunpack.c.l.b16 %v453
        %v466 = vunpack.c.l.b16 %v454
        %v467 = vunpack.c.l.b16 %v455
        %v468 = vpack.c.b16 %v463, %v462
        %v469 = vpack.c.b16 %v465, %v464
        %v470 = vpack.c.b16 %v467, %v466
        %474 = vst [vmem:[%s330] sm:$0xff] %v468
        %475 = vst [vmem:[%s330 + $0x8] sm:$0xff] %v469
        %476 = vst [vmem:[%s330 + $0x10] sm:$0xff] %v470
        %v477 = vld [vmem:[#allocation8] sm:$0xff]
        %v478 = vld [vmem:[#allocation8 + $0x8] sm:$0xff]
        %v479 = vld [vmem:[#allocation8 + $0x10] sm:$0xff]
        %v480 = vld [vmem:[#allocation8 + $0x18] sm:$0xff]
        %v481 = vld [vmem:[#allocation8 + $0x20] sm:$0xff]
        %v482 = vld [vmem:[#allocation8 + $0x28] sm:$0xff]
        %v483 = vld [vmem:[#allocation8 + $0x30] sm:$0xff]
        %v484 = vld [vmem:[#allocation8 + $0x38] sm:$0xff]
        %v485 = vld [vmem:[#allocation8 + $0x40] sm:$0xff]
        %v486 = vld [vmem:[#allocation8 + $0x48] sm:$0xff]
        %v487 = vld [vmem:[#allocation8 + $0x50] sm:$0xff]
        %v488 = vld [vmem:[#allocation8 + $0x58] sm:$0xff]
        %v489 = vld [vmem:[#allocation8 + $0x60] sm:$0xff]
        %v490 = vld [vmem:[#allocation8 + $0x68] sm:$0xff]
        %v491 = vld [vmem:[#allocation8 + $0x70] sm:$0xff]
        %v492 = vld [vmem:[#allocation8 + $0x78] sm:$0xff]
        %v493 = vld [vmem:[#allocation8 + $0x80] sm:$0xff]
        %v494 = vld [vmem:[#allocation8 + $0x88] sm:$0xff]
        %v495 = vld [vmem:[#allocation8 + $0x90] sm:$0xff]
        %v496 = vld [vmem:[#allocation8 + $0x98] sm:$0xff]
        %v497 = vld [vmem:[#allocation8 + $0xa0] sm:$0xff]
        %v498 = vld [vmem:[#allocation8 + $0xa8] sm:$0xff]
        %v499 = vld [vmem:[#allocation8 + $0xb0] sm:$0xff]
        %v500 = vld [vmem:[#allocation8 + $0xb8] sm:$0xff]
        %v501 = vld [vmem:[#allocation8 + $0xc0] sm:$0xff]
        %v502 = vld [vmem:[#allocation8 + $0xc8] sm:$0xff]
        %v503 = vld [vmem:[#allocation8 + $0xd0] sm:$0xff]
        %v504 = vld [vmem:[#allocation8 + $0xd8] sm:$0xff]
        %v505 = vld [vmem:[#allocation8 + $0xe0] sm:$0xff]
        %v506 = vld [vmem:[#allocation8 + $0xe8] sm:$0xff]
        %v507 = vld [vmem:[#allocation8 + $0xf0] sm:$0xff]
        %v508 = vld [vmem:[#allocation8 + $0xf8] sm:$0xff]
        %v509 = vld [vmem:[#allocation8 + $0x100] sm:$0xff]
        %v510 = vld [vmem:[#allocation8 + $0x108] sm:$0xff]
        %v511 = vld [vmem:[#allocation8 + $0x110] sm:$0xff]
        %v512 = vld [vmem:[#allocation8 + $0x118] sm:$0xff]
        %v513 = vld [vmem:[#allocation8 + $0x120] sm:$0xff]
        %v514 = vld [vmem:[#allocation8 + $0x128] sm:$0xff]
        %v515 = vld [vmem:[#allocation8 + $0x130] sm:$0xff]
        %v516 = vld [vmem:[#allocation8 + $0x138] sm:$0xff]
        %v517 = vld [vmem:[#allocation8 + $0x140] sm:$0xff]
        %v518 = vld [vmem:[#allocation8 + $0x148] sm:$0xff]
        %v519 = vld [vmem:[#allocation8 + $0x150] sm:$0xff]
        %v520 = vld [vmem:[#allocation8 + $0x158] sm:$0xff]
        %v521 = vld [vmem:[#allocation8 + $0x160] sm:$0xff]
        %v522 = vld [vmem:[#allocation8 + $0x168] sm:$0xff]
        %v523 = vld [vmem:[#allocation8 + $0x170] sm:$0xff]
        %v524 = vld [vmem:[#allocation8 + $0x178] sm:$0xff]
        %v525 = vld [vmem:[#allocation8 + $0x180] sm:$0xff]
        %v526 = vld [vmem:[#allocation8 + $0x188] sm:$0xff]
        %v527 = vld [vmem:[#allocation8 + $0x190] sm:$0xff]
        %v528 = vld [vmem:[#allocation8 + $0x198] sm:$0xff]
        %v529 = vld [vmem:[#allocation8 + $0x1a0] sm:$0xff]
        %v530 = vld [vmem:[#allocation8 + $0x1a8] sm:$0xff]
        %v531 = vld [vmem:[#allocation8 + $0x1b0] sm:$0xff]
        %v532 = vld [vmem:[#allocation8 + $0x1b8] sm:$0xff]
        %v533 = vld [vmem:[#allocation8 + $0x1c0] sm:$0xff]
        %v534 = vld [vmem:[#allocation8 + $0x1c8] sm:$0xff]
        %v535 = vld [vmem:[#allocation8 + $0x1d0] sm:$0xff]
        %v536 = vld [vmem:[#allocation8 + $0x1d8] sm:$0xff]
        %v537 = vld [vmem:[#allocation8 + $0x1e0] sm:$0xff]
        %v538 = vld [vmem:[#allocation8 + $0x1e8] sm:$0xff]
        %v539 = vld [vmem:[#allocation8 + $0x1f0] sm:$0xff]
        %v540 = vld [vmem:[#allocation8 + $0x1f8] sm:$0xff]
        %v541 = vld [vmem:[#allocation8 + $0x200] sm:$0xff]
        %v542 = vld [vmem:[#allocation8 + $0x208] sm:$0xff]
        %v543 = vld [vmem:[#allocation8 + $0x210] sm:$0xff]
        %v544 = vld [vmem:[#allocation8 + $0x218] sm:$0xff]
        %v545 = vld [vmem:[#allocation8 + $0x220] sm:$0xff]
        %v546 = vld [vmem:[#allocation8 + $0x228] sm:$0xff]
        %v547 = vld [vmem:[#allocation8 + $0x230] sm:$0xff]
        %v548 = vld [vmem:[#allocation8 + $0x238] sm:$0xff]
        %v549 = vld [vmem:[#allocation8 + $0x240] sm:$0xff]
        %v550 = vld [vmem:[#allocation8 + $0x248] sm:$0xff]
        %v551 = vld [vmem:[#allocation8 + $0x250] sm:$0xff]
        %v552 = vld [vmem:[#allocation8 + $0x258] sm:$0xff]
        %v553 = vld [vmem:[#allocation8 + $0x260] sm:$0xff]
        %v554 = vld [vmem:[#allocation8 + $0x268] sm:$0xff]
        %v555 = vld [vmem:[#allocation8 + $0x270] sm:$0xff]
        %v556 = vld [vmem:[#allocation8 + $0x278] sm:$0xff]
        %v557 = vld [vmem:[#allocation8 + $0x280] sm:$0xff]
        %v558 = vld [vmem:[#allocation8 + $0x288] sm:$0xff]
        %v559 = vld [vmem:[#allocation8 + $0x290] sm:$0xff]
        %v560 = vld [vmem:[#allocation8 + $0x298] sm:$0xff]
        %v561 = vld [vmem:[#allocation8 + $0x2a0] sm:$0xff]
        %v562 = vld [vmem:[#allocation8 + $0x2a8] sm:$0xff]
        %v563 = vld [vmem:[#allocation8 + $0x2b0] sm:$0xff]
        %v564 = vld [vmem:[#allocation8 + $0x2b8] sm:$0xff]
        %v565 = vld [vmem:[#allocation8 + $0x2c0] sm:$0xff]
        %v566 = vld [vmem:[#allocation8 + $0x2c8] sm:$0xff]
        %v567 = vld [vmem:[#allocation8 + $0x2d0] sm:$0xff]
        %v568 = vld [vmem:[#allocation8 + $0x2d8] sm:$0xff]
        %v569 = vld [vmem:[#allocation8 + $0x2e0] sm:$0xff]
        %v570 = vld [vmem:[#allocation8 + $0x2e8] sm:$0xff]
        %v571 = vld [vmem:[#allocation8 + $0x2f0] sm:$0xff]
        %v572 = vld [vmem:[#allocation8 + $0x2f8] sm:$0xff]
        %v573 = vld [vmem:[#allocation8 + $0x300] sm:$0xff]
        %v574 = vld [vmem:[#allocation8 + $0x308] sm:$0xff]
        %v575 = vld [vmem:[#allocation8 + $0x310] sm:$0xff]
        %v576 = vld [vmem:[#allocation8 + $0x318] sm:$0xff]
        %v577 = vld [vmem:[#allocation8 + $0x320] sm:$0xff]
        %v578 = vld [vmem:[#allocation8 + $0x328] sm:$0xff]
        %v579 = vld [vmem:[#allocation8 + $0x330] sm:$0xff]
        %v580 = vld [vmem:[#allocation8 + $0x338] sm:$0xff]
        %v581 = vld [vmem:[#allocation8 + $0x340] sm:$0xff]
        %v582 = vld [vmem:[#allocation8 + $0x348] sm:$0xff]
        %v583 = vld [vmem:[#allocation8 + $0x350] sm:$0xff]
        %v584 = vld [vmem:[#allocation8 + $0x358] sm:$0xff]
        %v585 = vld [vmem:[#allocation8 + $0x360] sm:$0xff]
        %v586 = vld [vmem:[#allocation8 + $0x368] sm:$0xff]
        %v587 = vld [vmem:[#allocation8 + $0x370] sm:$0xff]
        %v588 = vld [vmem:[#allocation8 + $0x378] sm:$0xff]
        %v589 = vld [vmem:[#allocation8 + $0x380] sm:$0xff]
        %v590 = vld [vmem:[#allocation8 + $0x388] sm:$0xff]
        %v591 = vld [vmem:[#allocation8 + $0x390] sm:$0xff]
        %v592 = vld [vmem:[#allocation8 + $0x398] sm:$0xff]
        %v593 = vld [vmem:[#allocation8 + $0x3a0] sm:$0xff]
        %v594 = vld [vmem:[#allocation8 + $0x3a8] sm:$0xff]
        %v595 = vld [vmem:[#allocation8 + $0x3b0] sm:$0xff]
        %v596 = vld [vmem:[#allocation8 + $0x3b8] sm:$0xff]
        %v597 = vld [vmem:[#allocation8 + $0x3c0] sm:$0xff]
        %v598 = vld [vmem:[#allocation8 + $0x3c8] sm:$0xff]
        %v599 = vld [vmem:[#allocation8 + $0x3d0] sm:$0xff]
        %v600 = vld [vmem:[#allocation8 + $0x3d8] sm:$0xff]
        %v601 = vld [vmem:[#allocation8 + $0x3e0] sm:$0xff]
        %v602 = vld [vmem:[#allocation8 + $0x3e8] sm:$0xff]
        %v603 = vld [vmem:[#allocation8 + $0x3f0] sm:$0xff]
        %v604 = vld [vmem:[#allocation8 + $0x3f8] sm:$0xff]
        %v605 = vld [vmem:[#allocation8 + $0x400] sm:$0xff]
        %v606 = vld [vmem:[#allocation8 + $0x408] sm:$0xff]
        %v607 = vld [vmem:[#allocation8 + $0x410] sm:$0xff]
        %v608 = vld [vmem:[#allocation8 + $0x418] sm:$0xff]
        %v609 = vld [vmem:[#allocation8 + $0x420] sm:$0xff]
        %v610 = vld [vmem:[#allocation8 + $0x428] sm:$0xff]
        %v611 = vld [vmem:[#allocation8 + $0x430] sm:$0xff]
        %v612 = vld [vmem:[#allocation8 + $0x438] sm:$0xff]
        %v613 = vld [vmem:[#allocation8 + $0x440] sm:$0xff]
        %v614 = vld [vmem:[#allocation8 + $0x448] sm:$0xff]
        %v615 = vld [vmem:[#allocation8 + $0x450] sm:$0xff]
        %v616 = vld [vmem:[#allocation8 + $0x458] sm:$0xff]
        %v617 = vld [vmem:[#allocation8 + $0x460] sm:$0xff]
        %v618 = vld [vmem:[#allocation8 + $0x468] sm:$0xff]
        %v619 = vld [vmem:[#allocation8 + $0x470] sm:$0xff]
        %v620 = vld [vmem:[#allocation8 + $0x478] sm:$0xff]
        %v621 = vld [vmem:[#allocation8 + $0x480] sm:$0xff]
        %v622 = vld [vmem:[#allocation8 + $0x488] sm:$0xff]
        %v623 = vld [vmem:[#allocation8 + $0x490] sm:$0xff]
        %v624 = vld [vmem:[#allocation8 + $0x498] sm:$0xff]
        %v625 = vld [vmem:[#allocation8 + $0x4a0] sm:$0xff]
        %v626 = vld [vmem:[#allocation8 + $0x4a8] sm:$0xff]
        %v627 = vld [vmem:[#allocation8 + $0x4b0] sm:$0xff]
        %v628 = vld [vmem:[#allocation8 + $0x4b8] sm:$0xff]
        %v629 = vld [vmem:[#allocation8 + $0x4c0] sm:$0xff]
        %v630 = vld [vmem:[#allocation8 + $0x4c8] sm:$0xff]
        %v631 = vld [vmem:[#allocation8 + $0x4d0] sm:$0xff]
        %v632 = vld [vmem:[#allocation8 + $0x4d8] sm:$0xff]
        %v633 = vld [vmem:[#allocation8 + $0x4e0] sm:$0xff]
        %v634 = vld [vmem:[#allocation8 + $0x4e8] sm:$0xff]
        %v635 = vld [vmem:[#allocation8 + $0x4f0] sm:$0xff]
        %v636 = vld [vmem:[#allocation8 + $0x4f8] sm:$0xff]
        %v637 = vld [vmem:[#allocation8 + $0x500] sm:$0xff]
        %v638 = vld [vmem:[#allocation8 + $0x508] sm:$0xff]
        %v639 = vld [vmem:[#allocation8 + $0x510] sm:$0xff]
        %v640 = vld [vmem:[#allocation8 + $0x518] sm:$0xff]
        %v641 = vld [vmem:[#allocation8 + $0x520] sm:$0xff]
        %v642 = vld [vmem:[#allocation8 + $0x528] sm:$0xff]
        %v643 = vld [vmem:[#allocation8 + $0x530] sm:$0xff]
        %v644 = vld [vmem:[#allocation8 + $0x538] sm:$0xff]
        %v645 = vld [vmem:[#allocation8 + $0x540] sm:$0xff]
        %v646 = vld [vmem:[#allocation8 + $0x548] sm:$0xff]
        %v647 = vld [vmem:[#allocation8 + $0x550] sm:$0xff]
        %v648 = vld [vmem:[#allocation8 + $0x558] sm:$0xff]
        %v649 = vld [vmem:[#allocation8 + $0x560] sm:$0xff]
        %v650 = vld [vmem:[#allocation8 + $0x568] sm:$0xff]
        %v651 = vld [vmem:[#allocation8 + $0x570] sm:$0xff]
        %v652 = vld [vmem:[#allocation8 + $0x578] sm:$0xff]
        %v653 = vld [vmem:[#allocation8 + $0x580] sm:$0xff]
        %v654 = vld [vmem:[#allocation8 + $0x588] sm:$0xff]
        %v655 = vld [vmem:[#allocation8 + $0x590] sm:$0xff]
        %v656 = vld [vmem:[#allocation8 + $0x598] sm:$0xff]
        %v657 = vld [vmem:[#allocation8 + $0x5a0] sm:$0xff]
        %v658 = vld [vmem:[#allocation8 + $0x5a8] sm:$0xff]
        %v659 = vld [vmem:[#allocation8 + $0x5b0] sm:$0xff]
        %v660 = vld [vmem:[#allocation8 + $0x5b8] sm:$0xff]
        %v661 = vld [vmem:[#allocation8 + $0x5c0] sm:$0xff]
        %v662 = vld [vmem:[#allocation8 + $0x5c8] sm:$0xff]
        %v663 = vld [vmem:[#allocation8 + $0x5d0] sm:$0xff]
        %v664 = vld [vmem:[#allocation8 + $0x5d8] sm:$0xff]
        %v665 = vld [vmem:[#allocation8 + $0x5e0] sm:$0xff]
        %v666 = vld [vmem:[#allocation8 + $0x5e8] sm:$0xff]
        %v667 = vld [vmem:[#allocation8 + $0x5f0] sm:$0xff]
        %v668 = vld [vmem:[#allocation8 + $0x5f8] sm:$0xff]
        %v669 = vld [vmem:[#allocation8 + $0x600] sm:$0xff]
        %v670 = vld [vmem:[#allocation8 + $0x608] sm:$0xff]
        %v671 = vld [vmem:[#allocation8 + $0x610] sm:$0xff]
        %v672 = vld [vmem:[#allocation8 + $0x618] sm:$0xff]
        %v673 = vld [vmem:[#allocation8 + $0x620] sm:$0xff]
        %v674 = vld [vmem:[#allocation8 + $0x628] sm:$0xff]
        %v675 = vld [vmem:[#allocation8 + $0x630] sm:$0xff]
        %v676 = vld [vmem:[#allocation8 + $0x638] sm:$0xff]
        %v677 = vld [vmem:[#allocation8 + $0x640] sm:$0xff]
        %v678 = vld [vmem:[#allocation8 + $0x648] sm:$0xff]
        %v679 = vld [vmem:[#allocation8 + $0x650] sm:$0xff]
        %v680 = vld [vmem:[#allocation8 + $0x658] sm:$0xff]
        %v681 = vld [vmem:[#allocation8 + $0x660] sm:$0xff]
        %v682 = vld [vmem:[#allocation8 + $0x668] sm:$0xff]
        %v683 = vld [vmem:[#allocation8 + $0x670] sm:$0xff]
        %v684 = vld [vmem:[#allocation8 + $0x678] sm:$0xff]
        %v685 = vld [vmem:[#allocation8 + $0x680] sm:$0xff]
        %v686 = vld [vmem:[#allocation8 + $0x688] sm:$0xff]
        %v687 = vld [vmem:[#allocation8 + $0x690] sm:$0xff]
        %v688 = vld [vmem:[#allocation8 + $0x698] sm:$0xff]
        %v689 = vld [vmem:[#allocation8 + $0x6a0] sm:$0xff]
        %v690 = vld [vmem:[#allocation8 + $0x6a8] sm:$0xff]
        %v691 = vld [vmem:[#allocation8 + $0x6b0] sm:$0xff]
        %v692 = vld [vmem:[#allocation8 + $0x6b8] sm:$0xff]
        %v693 = vld [vmem:[#allocation8 + $0x6c0] sm:$0xff]
        %v694 = vld [vmem:[#allocation8 + $0x6c8] sm:$0xff]
        %v695 = vld [vmem:[#allocation8 + $0x6d0] sm:$0xff]
        %v696 = vld [vmem:[#allocation8 + $0x6d8] sm:$0xff]
        %v697 = vld [vmem:[#allocation8 + $0x6e0] sm:$0xff]
        %v698 = vld [vmem:[#allocation8 + $0x6e8] sm:$0xff]
        %v699 = vld [vmem:[#allocation8 + $0x6f0] sm:$0xff]
        %v700 = vld [vmem:[#allocation8 + $0x6f8] sm:$0xff]
        %v701 = vld [vmem:[#allocation8 + $0x700] sm:$0xff]
        %v702 = vld [vmem:[#allocation8 + $0x708] sm:$0xff]
        %v703 = vld [vmem:[#allocation8 + $0x710] sm:$0xff]
        %v704 = vld [vmem:[#allocation8 + $0x718] sm:$0xff]
        %v705 = vld [vmem:[#allocation8 + $0x720] sm:$0xff]
        %v706 = vld [vmem:[#allocation8 + $0x728] sm:$0xff]
        %v707 = vld [vmem:[#allocation8 + $0x730] sm:$0xff]
        %v708 = vld [vmem:[#allocation8 + $0x738] sm:$0xff]
        %v709 = vld [vmem:[#allocation8 + $0x740] sm:$0xff]
        %v710 = vld [vmem:[#allocation8 + $0x748] sm:$0xff]
        %v711 = vld [vmem:[#allocation8 + $0x750] sm:$0xff]
        %v712 = vld [vmem:[#allocation8 + $0x758] sm:$0xff]
        %v713 = vld [vmem:[#allocation8 + $0x760] sm:$0xff]
        %v714 = vld [vmem:[#allocation8 + $0x768] sm:$0xff]
        %v715 = vld [vmem:[#allocation8 + $0x770] sm:$0xff]
        %v716 = vld [vmem:[#allocation8 + $0x778] sm:$0xff]
        %v717 = vld [vmem:[#allocation8 + $0x780] sm:$0xff]
        %v718 = vld [vmem:[#allocation8 + $0x788] sm:$0xff]
        %v719 = vld [vmem:[#allocation8 + $0x790] sm:$0xff]
        %v720 = vld [vmem:[#allocation8 + $0x798] sm:$0xff]
        %v721 = vld [vmem:[#allocation8 + $0x7a0] sm:$0xff]
        %v722 = vld [vmem:[#allocation8 + $0x7a8] sm:$0xff]
        %v723 = vld [vmem:[#allocation8 + $0x7b0] sm:$0xff]
        %v724 = vld [vmem:[#allocation8 + $0x7b8] sm:$0xff]
        %v725 = vld [vmem:[#allocation8 + $0x7c0] sm:$0xff]
        %v726 = vld [vmem:[#allocation8 + $0x7c8] sm:$0xff]
        %v727 = vld [vmem:[#allocation8 + $0x7d0] sm:$0xff]
        %v728 = vld [vmem:[#allocation8 + $0x7d8] sm:$0xff]
        %v729 = vld [vmem:[#allocation8 + $0x7e0] sm:$0xff]
        %v730 = vld [vmem:[#allocation8 + $0x7e8] sm:$0xff]
        %v731 = vld [vmem:[#allocation8 + $0x7f0] sm:$0xff]
        %v732 = vld [vmem:[#allocation8 + $0x7f8] sm:$0xff]
        %v733 = vld [vmem:[#allocation8 + $0x800] sm:$0xff]
        %v734 = vld [vmem:[#allocation8 + $0x808] sm:$0xff]
        %v735 = vld [vmem:[#allocation8 + $0x810] sm:$0xff]
        %v736 = vld [vmem:[#allocation8 + $0x818] sm:$0xff]
        %v737 = vld [vmem:[#allocation8 + $0x820] sm:$0xff]
        %v738 = vld [vmem:[#allocation8 + $0x828] sm:$0xff]
        %v739 = vld [vmem:[#allocation8 + $0x830] sm:$0xff]
        %v740 = vld [vmem:[#allocation8 + $0x838] sm:$0xff]
        %v741 = vld [vmem:[#allocation8 + $0x840] sm:$0xff]
        %v742 = vld [vmem:[#allocation8 + $0x848] sm:$0xff]
        %v743 = vld [vmem:[#allocation8 + $0x850] sm:$0xff]
        %v744 = vld [vmem:[#allocation8 + $0x858] sm:$0xff]
        %v745 = vld [vmem:[#allocation8 + $0x860] sm:$0xff]
        %v746 = vld [vmem:[#allocation8 + $0x868] sm:$0xff]
        %v747 = vld [vmem:[#allocation8 + $0x870] sm:$0xff]
        %v748 = vld [vmem:[#allocation8 + $0x878] sm:$0xff]
        %v749 = vld [vmem:[#allocation8 + $0x880] sm:$0xff]
        %v750 = vld [vmem:[#allocation8 + $0x888] sm:$0xff]
        %v751 = vld [vmem:[#allocation8 + $0x890] sm:$0xff]
        %v752 = vld [vmem:[#allocation8 + $0x898] sm:$0xff]
        %v753 = vld [vmem:[#allocation8 + $0x8a0] sm:$0xff]
        %v754 = vld [vmem:[#allocation8 + $0x8a8] sm:$0xff]
        %v755 = vld [vmem:[#allocation8 + $0x8b0] sm:$0xff]
        %v756 = vld [vmem:[#allocation8 + $0x8b8] sm:$0xff]
        %v757 = vld [vmem:[#allocation8 + $0x8c0] sm:$0xff]
        %v758 = vld [vmem:[#allocation8 + $0x8c8] sm:$0xff]
        %v759 = vld [vmem:[#allocation8 + $0x8d0] sm:$0xff]
        %v760 = vld [vmem:[#allocation8 + $0x8d8] sm:$0xff]
        %v761 = vld [vmem:[#allocation8 + $0x8e0] sm:$0xff]
        %v762 = vld [vmem:[#allocation8 + $0x8e8] sm:$0xff]
        %v763 = vld [vmem:[#allocation8 + $0x8f0] sm:$0xff]
        %v764 = vld [vmem:[#allocation8 + $0x8f8] sm:$0xff]
        %v765 = vld [vmem:[#allocation8 + $0x900] sm:$0xff]
        %v766 = vld [vmem:[#allocation8 + $0x908] sm:$0xff]
        %v767 = vld [vmem:[#allocation8 + $0x910] sm:$0xff]
        %v768 = vld [vmem:[#allocation8 + $0x918] sm:$0xff]
        %v769 = vld [vmem:[#allocation8 + $0x920] sm:$0xff]
        %v770 = vld [vmem:[#allocation8 + $0x928] sm:$0xff]
        %v771 = vld [vmem:[#allocation8 + $0x930] sm:$0xff]
        %v772 = vld [vmem:[#allocation8 + $0x938] sm:$0xff]
        %v773 = vld [vmem:[#allocation8 + $0x940] sm:$0xff]
        %v774 = vld [vmem:[#allocation8 + $0x948] sm:$0xff]
        %v775 = vld [vmem:[#allocation8 + $0x950] sm:$0xff]
        %v776 = vld [vmem:[#allocation8 + $0x958] sm:$0xff]
        %v777 = vld [vmem:[#allocation8 + $0x960] sm:$0xff]
        %v778 = vld [vmem:[#allocation8 + $0x968] sm:$0xff]
        %v779 = vld [vmem:[#allocation8 + $0x970] sm:$0xff]
        %v780 = vld [vmem:[#allocation8 + $0x978] sm:$0xff]
        %v781 = vld [vmem:[#allocation8 + $0x980] sm:$0xff]
        %v782 = vld [vmem:[#allocation8 + $0x988] sm:$0xff]
        %v783 = vld [vmem:[#allocation8 + $0x990] sm:$0xff]
        %v784 = vld [vmem:[#allocation8 + $0x998] sm:$0xff]
        %v785 = vld [vmem:[#allocation8 + $0x9a0] sm:$0xff]
        %v786 = vld [vmem:[#allocation8 + $0x9a8] sm:$0xff]
        %v787 = vld [vmem:[#allocation8 + $0x9b0] sm:$0xff]
        %v788 = vld [vmem:[#allocation8 + $0x9b8] sm:$0xff]
        %v789 = vld [vmem:[#allocation8 + $0x9c0] sm:$0xff]
        %v790 = vld [vmem:[#allocation8 + $0x9c8] sm:$0xff]
        %v791 = vld [vmem:[#allocation8 + $0x9d0] sm:$0xff]
        %v792 = vld [vmem:[#allocation8 + $0x9d8] sm:$0xff]
        %v793 = vld [vmem:[#allocation8 + $0x9e0] sm:$0xff]
        %v794 = vld [vmem:[#allocation8 + $0x9e8] sm:$0xff]
        %v795 = vld [vmem:[#allocation8 + $0x9f0] sm:$0xff]
        %v796 = vld [vmem:[#allocation8 + $0x9f8] sm:$0xff]
        %v797 = vld [vmem:[#allocation8 + $0xa00] sm:$0xff]
        %v798 = vld [vmem:[#allocation8 + $0xa08] sm:$0xff]
        %v799 = vld [vmem:[#allocation8 + $0xa10] sm:$0xff]
        %v800 = vld [vmem:[#allocation8 + $0xa18] sm:$0xff]
        %v801 = vld [vmem:[#allocation8 + $0xa20] sm:$0xff]
        %v802 = vld [vmem:[#allocation8 + $0xa28] sm:$0xff]
        %v803 = vld [vmem:[#allocation8 + $0xa30] sm:$0xff]
        %v804 = vld [vmem:[#allocation8 + $0xa38] sm:$0xff]
        %v805 = vld [vmem:[#allocation8 + $0xa40] sm:$0xff]
        %v806 = vld [vmem:[#allocation8 + $0xa48] sm:$0xff]
        %v807 = vld [vmem:[#allocation8 + $0xa50] sm:$0xff]
        %v808 = vld [vmem:[#allocation8 + $0xa58] sm:$0xff]
        %v809 = vld [vmem:[#allocation8 + $0xa60] sm:$0xff]
        %v810 = vld [vmem:[#allocation8 + $0xa68] sm:$0xff]
        %v811 = vld [vmem:[#allocation8 + $0xa70] sm:$0xff]
        %v812 = vld [vmem:[#allocation8 + $0xa78] sm:$0xff]
        %v813 = vld [vmem:[#allocation8 + $0xa80] sm:$0xff]
        %v814 = vld [vmem:[#allocation8 + $0xa88] sm:$0xff]
        %v815 = vld [vmem:[#allocation8 + $0xa90] sm:$0xff]
        %v816 = vld [vmem:[#allocation8 + $0xa98] sm:$0xff]
        %v817 = vld [vmem:[#allocation8 + $0xaa0] sm:$0xff]
        %v818 = vld [vmem:[#allocation8 + $0xaa8] sm:$0xff]
        %v819 = vld [vmem:[#allocation8 + $0xab0] sm:$0xff]
        %v820 = vld [vmem:[#allocation8 + $0xab8] sm:$0xff]
        %v821 = vld [vmem:[#allocation8 + $0xac0] sm:$0xff]
        %v822 = vld [vmem:[#allocation8 + $0xac8] sm:$0xff]
        %v823 = vld [vmem:[#allocation8 + $0xad0] sm:$0xff]
        %v824 = vld [vmem:[#allocation8 + $0xad8] sm:$0xff]
        %v825 = vld [vmem:[#allocation8 + $0xae0] sm:$0xff]
        %v826 = vld [vmem:[#allocation8 + $0xae8] sm:$0xff]
        %v827 = vld [vmem:[#allocation8 + $0xaf0] sm:$0xff]
        %v828 = vld [vmem:[#allocation8 + $0xaf8] sm:$0xff]
        %v829 = vld [vmem:[#allocation8 + $0xb00] sm:$0xff]
        %v830 = vld [vmem:[#allocation8 + $0xb08] sm:$0xff]
        %v831 = vld [vmem:[#allocation8 + $0xb10] sm:$0xff]
        %v832 = vld [vmem:[#allocation8 + $0xb18] sm:$0xff]
        %v833 = vld [vmem:[#allocation8 + $0xb20] sm:$0xff]
        %v834 = vld [vmem:[#allocation8 + $0xb28] sm:$0xff]
        %v835 = vld [vmem:[#allocation8 + $0xb30] sm:$0xff]
        %v836 = vld [vmem:[#allocation8 + $0xb38] sm:$0xff]
        %v837 = vld [vmem:[#allocation8 + $0xb40] sm:$0xff]
        %v838 = vld [vmem:[#allocation8 + $0xb48] sm:$0xff]
        %v839 = vld [vmem:[#allocation8 + $0xb50] sm:$0xff]
        %v840 = vld [vmem:[#allocation8 + $0xb58] sm:$0xff]
        %v841 = vld [vmem:[#allocation8 + $0xb60] sm:$0xff]
        %v842 = vld [vmem:[#allocation8 + $0xb68] sm:$0xff]
        %v843 = vld [vmem:[#allocation8 + $0xb70] sm:$0xff]
        %v844 = vld [vmem:[#allocation8 + $0xb78] sm:$0xff]
        %v845 = vld [vmem:[#allocation8 + $0xb80] sm:$0xff]
        %v846 = vld [vmem:[#allocation8 + $0xb88] sm:$0xff]
        %v847 = vld [vmem:[#allocation8 + $0xb90] sm:$0xff]
        %v848 = vld [vmem:[#allocation8 + $0xb98] sm:$0xff]
        %v849 = vld [vmem:[#allocation8 + $0xba0] sm:$0xff]
        %v850 = vld [vmem:[#allocation8 + $0xba8] sm:$0xff]
        %v851 = vld [vmem:[#allocation8 + $0xbb0] sm:$0xff]
        %v852 = vld [vmem:[#allocation8 + $0xbb8] sm:$0xff]
        %v853 = vld [vmem:[#allocation8 + $0xbc0] sm:$0xff]
        %v854 = vld [vmem:[#allocation8 + $0xbc8] sm:$0xff]
        %v855 = vld [vmem:[#allocation8 + $0xbd0] sm:$0xff]
        %v856 = vld [vmem:[#allocation8 + $0xbd8] sm:$0xff]
        %v857 = vld [vmem:[#allocation8 + $0xbe0] sm:$0xff]
        %v858 = vld [vmem:[#allocation8 + $0xbe8] sm:$0xff]
        %v859 = vld [vmem:[#allocation8 + $0xbf0] sm:$0xff]
        %v860 = vld [vmem:[#allocation8 + $0xbf8] sm:$0xff]
        %v861 = vld [vmem:[#allocation8 + $0xc00] sm:$0xff]
        %v862 = vld [vmem:[#allocation8 + $0xc08] sm:$0xff]
        %v863 = vld [vmem:[#allocation8 + $0xc10] sm:$0xff]
        %v864 = vld [vmem:[#allocation8 + $0xc18] sm:$0xff]
        %v865 = vld [vmem:[#allocation8 + $0xc20] sm:$0xff]
        %v866 = vld [vmem:[#allocation8 + $0xc28] sm:$0xff]
        %v867 = vld [vmem:[#allocation8 + $0xc30] sm:$0xff]
        %v868 = vld [vmem:[#allocation8 + $0xc38] sm:$0xff]
        %v869 = vld [vmem:[#allocation8 + $0xc40] sm:$0xff]
        %v870 = vld [vmem:[#allocation8 + $0xc48] sm:$0xff]
        %v871 = vld [vmem:[#allocation8 + $0xc50] sm:$0xff]
        %v872 = vld [vmem:[#allocation8 + $0xc58] sm:$0xff]
        %v873 = vld [vmem:[#allocation8 + $0xc60] sm:$0xff]
        %v874 = vld [vmem:[#allocation8 + $0xc68] sm:$0xff]
        %v875 = vld [vmem:[#allocation8 + $0xc70] sm:$0xff]
        %v876 = vld [vmem:[#allocation8 + $0xc78] sm:$0xff]
        %v877 = vld [vmem:[#allocation8 + $0xc80] sm:$0xff]
        %v878 = vld [vmem:[#allocation8 + $0xc88] sm:$0xff]
        %v879 = vld [vmem:[#allocation8 + $0xc90] sm:$0xff]
        %v880 = vld [vmem:[#allocation8 + $0xc98] sm:$0xff]
        %v881 = vld [vmem:[#allocation8 + $0xca0] sm:$0xff]
        %v882 = vld [vmem:[#allocation8 + $0xca8] sm:$0xff]
        %v883 = vld [vmem:[#allocation8 + $0xcb0] sm:$0xff]
        %v884 = vld [vmem:[#allocation8 + $0xcb8] sm:$0xff]
        %v885 = vld [vmem:[#allocation8 + $0xcc0] sm:$0xff]
        %v886 = vld [vmem:[#allocation8 + $0xcc8] sm:$0xff]
        %v887 = vld [vmem:[#allocation8 + $0xcd0] sm:$0xff]
        %v888 = vld [vmem:[#allocation8 + $0xcd8] sm:$0xff]
        %v889 = vld [vmem:[#allocation8 + $0xce0] sm:$0xff]
        %v890 = vld [vmem:[#allocation8 + $0xce8] sm:$0xff]
        %v891 = vld [vmem:[#allocation8 + $0xcf0] sm:$0xff]
        %v892 = vld [vmem:[#allocation8 + $0xcf8] sm:$0xff]
        %v893 = vld [vmem:[#allocation8 + $0xd00] sm:$0xff]
        %v894 = vld [vmem:[#allocation8 + $0xd08] sm:$0xff]
        %v895 = vld [vmem:[#allocation8 + $0xd10] sm:$0xff]
        %v896 = vld [vmem:[#allocation8 + $0xd18] sm:$0xff]
        %v897 = vld [vmem:[#allocation8 + $0xd20] sm:$0xff]
        %v898 = vld [vmem:[#allocation8 + $0xd28] sm:$0xff]
        %v899 = vld [vmem:[#allocation8 + $0xd30] sm:$0xff]
        %v900 = vld [vmem:[#allocation8 + $0xd38] sm:$0xff]
        %v901 = vld [vmem:[#allocation8 + $0xd40] sm:$0xff]
        %v902 = vld [vmem:[#allocation8 + $0xd48] sm:$0xff]
        %v903 = vld [vmem:[#allocation8 + $0xd50] sm:$0xff]
        %v904 = vld [vmem:[#allocation8 + $0xd58] sm:$0xff]
        %v905 = vld [vmem:[#allocation8 + $0xd60] sm:$0xff]
        %v906 = vld [vmem:[#allocation8 + $0xd68] sm:$0xff]
        %v907 = vld [vmem:[#allocation8 + $0xd70] sm:$0xff]
        %v908 = vld [vmem:[#allocation8 + $0xd78] sm:$0xff]
        %v909 = vld [vmem:[#allocation8 + $0xd80] sm:$0xff]
        %v910 = vld [vmem:[#allocation8 + $0xd88] sm:$0xff]
        %v911 = vld [vmem:[#allocation8 + $0xd90] sm:$0xff]
        %v912 = vld [vmem:[#allocation8 + $0xd98] sm:$0xff]
        %v913 = vld [vmem:[#allocation8 + $0xda0] sm:$0xff]
        %v914 = vld [vmem:[#allocation8 + $0xda8] sm:$0xff]
        %v915 = vld [vmem:[#allocation8 + $0xdb0] sm:$0xff]
        %v916 = vld [vmem:[#allocation8 + $0xdb8] sm:$0xff]
        %v917 = vld [vmem:[#allocation8 + $0xdc0] sm:$0xff]
        %v918 = vld [vmem:[#allocation8 + $0xdc8] sm:$0xff]
        %v919 = vld [vmem:[#allocation8 + $0xdd0] sm:$0xff]
        %v920 = vld [vmem:[#allocation8 + $0xdd8] sm:$0xff]
        %v921 = vld [vmem:[#allocation8 + $0xde0] sm:$0xff]
        %v922 = vld [vmem:[#allocation8 + $0xde8] sm:$0xff]
        %v923 = vld [vmem:[#allocation8 + $0xdf0] sm:$0xff]
        %v924 = vld [vmem:[#allocation8 + $0xdf8] sm:$0xff]
        %v925 = vld [vmem:[#allocation8 + $0xe00] sm:$0xff]
        %v926 = vld [vmem:[#allocation8 + $0xe08] sm:$0xff]
        %v927 = vld [vmem:[#allocation8 + $0xe10] sm:$0xff]
        %v928 = vld [vmem:[#allocation8 + $0xe18] sm:$0xff]
        %v929 = vld [vmem:[#allocation8 + $0xe20] sm:$0xff]
        %v930 = vld [vmem:[#allocation8 + $0xe28] sm:$0xff]
        %v931 = vld [vmem:[#allocation8 + $0xe30] sm:$0xff]
        %v932 = vld [vmem:[#allocation8 + $0xe38] sm:$0xff]
        %v933 = vld [vmem:[#allocation8 + $0xe40] sm:$0xff]
        %v934 = vld [vmem:[#allocation8 + $0xe48] sm:$0xff]
        %v935 = vld [vmem:[#allocation8 + $0xe50] sm:$0xff]
        %v936 = vld [vmem:[#allocation8 + $0xe58] sm:$0xff]
        %v937 = vld [vmem:[#allocation8 + $0xe60] sm:$0xff]
        %v938 = vld [vmem:[#allocation8 + $0xe68] sm:$0xff]
        %v939 = vld [vmem:[#allocation8 + $0xe70] sm:$0xff]
        %v940 = vld [vmem:[#allocation8 + $0xe78] sm:$0xff]
        %v941 = vld [vmem:[#allocation8 + $0xe80] sm:$0xff]
        %v942 = vld [vmem:[#allocation8 + $0xe88] sm:$0xff]
        %v943 = vld [vmem:[#allocation8 + $0xe90] sm:$0xff]
        %v944 = vld [vmem:[#allocation8 + $0xe98] sm:$0xff]
        %v945 = vld [vmem:[#allocation8 + $0xea0] sm:$0xff]
        %v946 = vld [vmem:[#allocation8 + $0xea8] sm:$0xff]
        %v947 = vld [vmem:[#allocation8 + $0xeb0] sm:$0xff]
        %v948 = vld [vmem:[#allocation8 + $0xeb8] sm:$0xff]
        %v949 = vld [vmem:[#allocation8 + $0xec0] sm:$0xff]
        %v950 = vld [vmem:[#allocation8 + $0xec8] sm:$0xff]
        %v951 = vld [vmem:[#allocation8 + $0xed0] sm:$0xff]
        %v952 = vld [vmem:[#allocation8 + $0xed8] sm:$0xff]
        %v953 = vld [vmem:[#allocation8 + $0xee0] sm:$0xff]
        %v954 = vld [vmem:[#allocation8 + $0xee8] sm:$0xff]
        %v955 = vld [vmem:[#allocation8 + $0xef0] sm:$0xff]
        %v956 = vld [vmem:[#allocation8 + $0xef8] sm:$0xff]
        %v957 = vld [vmem:[#allocation8 + $0xf00] sm:$0xff]
        %v958 = vld [vmem:[#allocation8 + $0xf08] sm:$0xff]
        %v959 = vld [vmem:[#allocation8 + $0xf10] sm:$0xff]
        %v960 = vld [vmem:[#allocation8 + $0xf18] sm:$0xff]
        %v961 = vld [vmem:[#allocation8 + $0xf20] sm:$0xff]
        %v962 = vld [vmem:[#allocation8 + $0xf28] sm:$0xff]
        %v963 = vld [vmem:[#allocation8 + $0xf30] sm:$0xff]
        %v964 = vld [vmem:[#allocation8 + $0xf38] sm:$0xff]
        %v965 = vld [vmem:[#allocation8 + $0xf40] sm:$0xff]
        %v966 = vld [vmem:[#allocation8 + $0xf48] sm:$0xff]
        %v967 = vld [vmem:[#allocation8 + $0xf50] sm:$0xff]
        %v968 = vld [vmem:[#allocation8 + $0xf58] sm:$0xff]
        %v969 = vld [vmem:[#allocation8 + $0xf60] sm:$0xff]
        %v970 = vld [vmem:[#allocation8 + $0xf68] sm:$0xff]
        %v971 = vld [vmem:[#allocation8 + $0xf70] sm:$0xff]
        %v972 = vld [vmem:[#allocation8 + $0xf78] sm:$0xff]
        %v973 = vld [vmem:[#allocation8 + $0xf80] sm:$0xff]
        %v974 = vld [vmem:[#allocation8 + $0xf88] sm:$0xff]
        %v975 = vld [vmem:[#allocation8 + $0xf90] sm:$0xff]
        %v976 = vld [vmem:[#allocation8 + $0xf98] sm:$0xff]
        %v977 = vld [vmem:[#allocation8 + $0xfa0] sm:$0xff]
        %v978 = vld [vmem:[#allocation8 + $0xfa8] sm:$0xff]
        %v979 = vld [vmem:[#allocation8 + $0xfb0] sm:$0xff]
        %v980 = vld [vmem:[#allocation8 + $0xfb8] sm:$0xff]
        %v981 = vld [vmem:[#allocation8 + $0xfc0] sm:$0xff]
        %v982 = vld [vmem:[#allocation8 + $0xfc8] sm:$0xff]
        %v983 = vld [vmem:[#allocation8 + $0xfd0] sm:$0xff]
        %v984 = vld [vmem:[#allocation8 + $0xfd8] sm:$0xff]
        %v985 = vld [vmem:[#allocation8 + $0xfe0] sm:$0xff]
        %v986 = vld [vmem:[#allocation8 + $0xfe8] sm:$0xff]
        %v987 = vld [vmem:[#allocation8 + $0xff0] sm:$0xff]
        %v988 = vld [vmem:[#allocation8 + $0xff8] sm:$0xff]
        %v989 = vld [vmem:[#allocation8 + $0x1000] sm:$0xff]
        %v990 = vld [vmem:[#allocation8 + $0x1008] sm:$0xff]
        %v991 = vld [vmem:[#allocation8 + $0x1010] sm:$0xff]
        %v992 = vld [vmem:[#allocation8 + $0x1018] sm:$0xff]
        %v993 = vld [vmem:[#allocation8 + $0x1020] sm:$0xff]
        %v994 = vld [vmem:[#allocation8 + $0x1028] sm:$0xff]
        %v995 = vld [vmem:[#allocation8 + $0x1030] sm:$0xff]
        %v996 = vld [vmem:[#allocation8 + $0x1038] sm:$0xff]
        %v997 = vld [vmem:[#allocation8 + $0x1040] sm:$0xff]
        %v998 = vld [vmem:[#allocation8 + $0x1048] sm:$0xff]
        %v999 = vld [vmem:[#allocation8 + $0x1050] sm:$0xff]
        %v1000 = vld [vmem:[#allocation8 + $0x1058] sm:$0xff]
        %v1001 = vld [vmem:[#allocation8 + $0x1060] sm:$0xff]
        %v1002 = vld [vmem:[#allocation8 + $0x1068] sm:$0xff]
        %v1003 = vld [vmem:[#allocation8 + $0x1070] sm:$0xff]
        %v1004 = vld [vmem:[#allocation8 + $0x1078] sm:$0xff]
        %v1005 = vld [vmem:[#allocation8 + $0x1080] sm:$0xff]
        %v1006 = vld [vmem:[#allocation8 + $0x1088] sm:$0xff]
        %v1007 = vld [vmem:[#allocation8 + $0x1090] sm:$0xff]
        %v1008 = vld [vmem:[#allocation8 + $0x1098] sm:$0xff]
        %v1009 = vld [vmem:[#allocation8 + $0x10a0] sm:$0xff]
        %v1010 = vld [vmem:[#allocation8 + $0x10a8] sm:$0xff]
        %v1011 = vld [vmem:[#allocation8 + $0x10b0] sm:$0xff]
        %v1012 = vld [vmem:[#allocation8 + $0x10b8] sm:$0xff]
        %v1013 = vld [vmem:[#allocation8 + $0x10c0] sm:$0xff]
        %v1014 = vld [vmem:[#allocation8 + $0x10c8] sm:$0xff]
        %v1015 = vld [vmem:[#allocation8 + $0x10d0] sm:$0xff]
        %v1016 = vld [vmem:[#allocation8 + $0x10d8] sm:$0xff]
        %v1017 = vld [vmem:[#allocation8 + $0x10e0] sm:$0xff]
        %v1018 = vld [vmem:[#allocation8 + $0x10e8] sm:$0xff]
        %v1019 = vld [vmem:[#allocation8 + $0x10f0] sm:$0xff]
        %v1020 = vld [vmem:[#allocation8 + $0x10f8] sm:$0xff]
        %v1021 = vld [vmem:[#allocation8 + $0x1100] sm:$0xff]
        %v1022 = vld [vmem:[#allocation8 + $0x1108] sm:$0xff]
        %v1023 = vld [vmem:[#allocation8 + $0x1110] sm:$0xff]
        %v1024 = vld [vmem:[#allocation8 + $0x1118] sm:$0xff]
        %v1025 = vld [vmem:[#allocation8 + $0x1120] sm:$0xff]
        %v1026 = vld [vmem:[#allocation8 + $0x1128] sm:$0xff]
        %v1027 = vld [vmem:[#allocation8 + $0x1130] sm:$0xff]
        %v1028 = vld [vmem:[#allocation8 + $0x1138] sm:$0xff]
        %v1029 = vld [vmem:[#allocation8 + $0x1140] sm:$0xff]
        %v1030 = vld [vmem:[#allocation8 + $0x1148] sm:$0xff]
        %v1031 = vld [vmem:[#allocation8 + $0x1150] sm:$0xff]
        %v1032 = vld [vmem:[#allocation8 + $0x1158] sm:$0xff]
        %v1033 = vld [vmem:[#allocation8 + $0x1160] sm:$0xff]
        %v1034 = vld [vmem:[#allocation8 + $0x1168] sm:$0xff]
        %v1035 = vld [vmem:[#allocation8 + $0x1170] sm:$0xff]
        %v1036 = vld [vmem:[#allocation8 + $0x1178] sm:$0xff]
        %v1037 = vld [vmem:[#allocation8 + $0x1180] sm:$0xff]
        %v1038 = vld [vmem:[#allocation8 + $0x1188] sm:$0xff]
        %v1039 = vld [vmem:[#allocation8 + $0x1190] sm:$0xff]
        %v1040 = vld [vmem:[#allocation8 + $0x1198] sm:$0xff]
        %v1041 = vld [vmem:[#allocation8 + $0x11a0] sm:$0xff]
        %v1042 = vld [vmem:[#allocation8 + $0x11a8] sm:$0xff]
        %v1043 = vld [vmem:[#allocation8 + $0x11b0] sm:$0xff]
        %v1044 = vld [vmem:[#allocation8 + $0x11b8] sm:$0xff]
        %v1045 = vld [vmem:[#allocation8 + $0x11c0] sm:$0xff]
        %v1046 = vld [vmem:[#allocation8 + $0x11c8] sm:$0xff]
        %v1047 = vld [vmem:[#allocation8 + $0x11d0] sm:$0xff]
        %v1048 = vld [vmem:[#allocation8 + $0x11d8] sm:$0xff]
        %v1049 = vld [vmem:[#allocation8 + $0x11e0] sm:$0xff]
        %v1050 = vld [vmem:[#allocation8 + $0x11e8] sm:$0xff]
        %v1051 = vld [vmem:[#allocation8 + $0x11f0] sm:$0xff]
        %v1052 = vld [vmem:[#allocation8 + $0x11f8] sm:$0xff]
        %v1053 = vld [vmem:[#allocation8 + $0x1200] sm:$0xff]
        %v1054 = vld [vmem:[#allocation8 + $0x1208] sm:$0xff]
        %v1055 = vld [vmem:[#allocation8 + $0x1210] sm:$0xff]
        %v1056 = vld [vmem:[#allocation8 + $0x1218] sm:$0xff]
        %v1057 = vld [vmem:[#allocation8 + $0x1220] sm:$0xff]
        %v1058 = vld [vmem:[#allocation8 + $0x1228] sm:$0xff]
        %v1059 = vld [vmem:[#allocation8 + $0x1230] sm:$0xff]
        %v1060 = vld [vmem:[#allocation8 + $0x1238] sm:$0xff]
        %v1061 = vld [vmem:[#allocation8 + $0x1240] sm:$0xff]
        %v1062 = vld [vmem:[#allocation8 + $0x1248] sm:$0xff]
        %v1063 = vld [vmem:[#allocation8 + $0x1250] sm:$0xff]
        %v1064 = vld [vmem:[#allocation8 + $0x1258] sm:$0xff]
        %v1065 = vld [vmem:[#allocation8 + $0x1260] sm:$0xff]
        %v1066 = vld [vmem:[#allocation8 + $0x1268] sm:$0xff]
        %v1067 = vld [vmem:[#allocation8 + $0x1270] sm:$0xff]
        %v1068 = vld [vmem:[#allocation8 + $0x1278] sm:$0xff]
        %v1069 = vld [vmem:[#allocation8 + $0x1280] sm:$0xff]
        %v1070 = vld [vmem:[#allocation8 + $0x1288] sm:$0xff]
        %v1071 = vld [vmem:[#allocation8 + $0x1290] sm:$0xff]
        %v1072 = vld [vmem:[#allocation8 + $0x1298] sm:$0xff]
        %v1073 = vld [vmem:[#allocation8 + $0x12a0] sm:$0xff]
        %v1074 = vld [vmem:[#allocation8 + $0x12a8] sm:$0xff]
        %v1075 = vld [vmem:[#allocation8 + $0x12b0] sm:$0xff]
        %v1076 = vld [vmem:[#allocation8 + $0x12b8] sm:$0xff]
        %v1077 = vld [vmem:[#allocation8 + $0x12c0] sm:$0xff]
        %v1078 = vld [vmem:[#allocation8 + $0x12c8] sm:$0xff]
        %v1079 = vld [vmem:[#allocation8 + $0x12d0] sm:$0xff]
        %v1080 = vld [vmem:[#allocation8 + $0x12d8] sm:$0xff]
        %v1081 = vld [vmem:[#allocation8 + $0x12e0] sm:$0xff]
        %v1082 = vld [vmem:[#allocation8 + $0x12e8] sm:$0xff]
        %v1083 = vld [vmem:[#allocation8 + $0x12f0] sm:$0xff]
        %v1084 = vld [vmem:[#allocation8 + $0x12f8] sm:$0xff]
        %v1085 = vld [vmem:[#allocation8 + $0x1300] sm:$0xff]
        %v1086 = vld [vmem:[#allocation8 + $0x1308] sm:$0xff]
        %v1087 = vld [vmem:[#allocation8 + $0x1310] sm:$0xff]
        %v1088 = vld [vmem:[#allocation8 + $0x1318] sm:$0xff]
        %v1089 = vld [vmem:[#allocation8 + $0x1320] sm:$0xff]
        %v1090 = vld [vmem:[#allocation8 + $0x1328] sm:$0xff]
        %v1091 = vld [vmem:[#allocation8 + $0x1330] sm:$0xff]
        %v1092 = vld [vmem:[#allocation8 + $0x1338] sm:$0xff]
        %v1093 = vld [vmem:[#allocation8 + $0x1340] sm:$0xff]
        %v1094 = vld [vmem:[#allocation8 + $0x1348] sm:$0xff]
        %v1095 = vld [vmem:[#allocation8 + $0x1350] sm:$0xff]
        %v1096 = vld [vmem:[#allocation8 + $0x1358] sm:$0xff]
        %v1097 = vld [vmem:[#allocation8 + $0x1360] sm:$0xff]
        %v1098 = vld [vmem:[#allocation8 + $0x1368] sm:$0xff]
        %v1099 = vld [vmem:[#allocation8 + $0x1370] sm:$0xff]
        %v1100 = vld [vmem:[#allocation8 + $0x1378] sm:$0xff]
        %v1101 = vld [vmem:[#allocation8 + $0x1380] sm:$0xff]
        %v1102 = vld [vmem:[#allocation8 + $0x1388] sm:$0xff]
        %v1103 = vld [vmem:[#allocation8 + $0x1390] sm:$0xff]
        %v1104 = vld [vmem:[#allocation8 + $0x1398] sm:$0xff]
        %v1105 = vld [vmem:[#allocation8 + $0x13a0] sm:$0xff]
        %v1106 = vld [vmem:[#allocation8 + $0x13a8] sm:$0xff]
        %v1107 = vld [vmem:[#allocation8 + $0x13b0] sm:$0xff]
        %v1108 = vld [vmem:[#allocation8 + $0x13b8] sm:$0xff]
        %v1109 = vld [vmem:[#allocation8 + $0x13c0] sm:$0xff]
        %v1110 = vld [vmem:[#allocation8 + $0x13c8] sm:$0xff]
        %v1111 = vld [vmem:[#allocation8 + $0x13d0] sm:$0xff]
        %v1112 = vld [vmem:[#allocation8 + $0x13d8] sm:$0xff]
        %v1113 = vld [vmem:[#allocation8 + $0x13e0] sm:$0xff]
        %v1114 = vld [vmem:[#allocation8 + $0x13e8] sm:$0xff]
        %v1115 = vld [vmem:[#allocation8 + $0x13f0] sm:$0xff]
        %v1116 = vld [vmem:[#allocation8 + $0x13f8] sm:$0xff]
        %v1117 = vld [vmem:[#allocation8 + $0x1400] sm:$0xff]
        %v1118 = vld [vmem:[#allocation8 + $0x1408] sm:$0xff]
        %v1119 = vld [vmem:[#allocation8 + $0x1410] sm:$0xff]
        %v1120 = vld [vmem:[#allocation8 + $0x1418] sm:$0xff]
        %v1121 = vld [vmem:[#allocation8 + $0x1420] sm:$0xff]
        %v1122 = vld [vmem:[#allocation8 + $0x1428] sm:$0xff]
        %v1123 = vld [vmem:[#allocation8 + $0x1430] sm:$0xff]
        %v1124 = vld [vmem:[#allocation8 + $0x1438] sm:$0xff]
        %v1125 = vld [vmem:[#allocation8 + $0x1440] sm:$0xff]
        %v1126 = vld [vmem:[#allocation8 + $0x1448] sm:$0xff]
        %v1127 = vld [vmem:[#allocation8 + $0x1450] sm:$0xff]
        %v1128 = vld [vmem:[#allocation8 + $0x1458] sm:$0xff]
        %v1129 = vld [vmem:[#allocation8 + $0x1460] sm:$0xff]
        %v1130 = vld [vmem:[#allocation8 + $0x1468] sm:$0xff]
        %v1131 = vld [vmem:[#allocation8 + $0x1470] sm:$0xff]
        %v1132 = vld [vmem:[#allocation8 + $0x1478] sm:$0xff]
        %v1133 = vld [vmem:[#allocation8 + $0x1480] sm:$0xff]
        %v1134 = vld [vmem:[#allocation8 + $0x1488] sm:$0xff]
        %v1135 = vld [vmem:[#allocation8 + $0x1490] sm:$0xff]
        %v1136 = vld [vmem:[#allocation8 + $0x1498] sm:$0xff]
        %v1137 = vld [vmem:[#allocation8 + $0x14a0] sm:$0xff]
        %v1138 = vld [vmem:[#allocation8 + $0x14a8] sm:$0xff]
        %v1139 = vld [vmem:[#allocation8 + $0x14b0] sm:$0xff]
        %v1140 = vld [vmem:[#allocation8 + $0x14b8] sm:$0xff]
        %v1141 = vld [vmem:[#allocation8 + $0x14c0] sm:$0xff]
        %v1142 = vld [vmem:[#allocation8 + $0x14c8] sm:$0xff]
        %v1143 = vld [vmem:[#allocation8 + $0x14d0] sm:$0xff]
        %v1144 = vld [vmem:[#allocation8 + $0x14d8] sm:$0xff]
        %v1145 = vld [vmem:[#allocation8 + $0x14e0] sm:$0xff]
        %v1146 = vld [vmem:[#allocation8 + $0x14e8] sm:$0xff]
        %v1147 = vld [vmem:[#allocation8 + $0x14f0] sm:$0xff]
        %v1148 = vld [vmem:[#allocation8 + $0x14f8] sm:$0xff]
        %v1149 = vld [vmem:[#allocation8 + $0x1500] sm:$0xff]
        %v1150 = vld [vmem:[#allocation8 + $0x1508] sm:$0xff]
        %v1151 = vld [vmem:[#allocation8 + $0x1510] sm:$0xff]
        %v1152 = vld [vmem:[#allocation8 + $0x1518] sm:$0xff]
        %v1153 = vld [vmem:[#allocation8 + $0x1520] sm:$0xff]
        %v1154 = vld [vmem:[#allocation8 + $0x1528] sm:$0xff]
        %v1155 = vld [vmem:[#allocation8 + $0x1530] sm:$0xff]
        %v1156 = vld [vmem:[#allocation8 + $0x1538] sm:$0xff]
        %v1157 = vld [vmem:[#allocation8 + $0x1540] sm:$0xff]
        %v1158 = vld [vmem:[#allocation8 + $0x1548] sm:$0xff]
        %v1159 = vld [vmem:[#allocation8 + $0x1550] sm:$0xff]
        %v1160 = vld [vmem:[#allocation8 + $0x1558] sm:$0xff]
        %v1161 = vld [vmem:[#allocation8 + $0x1560] sm:$0xff]
        %v1162 = vld [vmem:[#allocation8 + $0x1568] sm:$0xff]
        %v1163 = vld [vmem:[#allocation8 + $0x1570] sm:$0xff]
        %v1164 = vld [vmem:[#allocation8 + $0x1578] sm:$0xff]
        %v1165 = vld [vmem:[#allocation8 + $0x1580] sm:$0xff]
        %v1166 = vld [vmem:[#allocation8 + $0x1588] sm:$0xff]
        %v1167 = vld [vmem:[#allocation8 + $0x1590] sm:$0xff]
        %v1168 = vld [vmem:[#allocation8 + $0x1598] sm:$0xff]
        %v1169 = vld [vmem:[#allocation8 + $0x15a0] sm:$0xff]
        %v1170 = vld [vmem:[#allocation8 + $0x15a8] sm:$0xff]
        %v1171 = vld [vmem:[#allocation8 + $0x15b0] sm:$0xff]
        %v1172 = vld [vmem:[#allocation8 + $0x15b8] sm:$0xff]
        %v1173 = vld [vmem:[#allocation8 + $0x15c0] sm:$0xff]
        %v1174 = vld [vmem:[#allocation8 + $0x15c8] sm:$0xff]
        %v1175 = vld [vmem:[#allocation8 + $0x15d0] sm:$0xff]
        %v1176 = vld [vmem:[#allocation8 + $0x15d8] sm:$0xff]
        %v1177 = vld [vmem:[#allocation8 + $0x15e0] sm:$0xff]
        %v1178 = vld [vmem:[#allocation8 + $0x15e8] sm:$0xff]
        %v1179 = vld [vmem:[#allocation8 + $0x15f0] sm:$0xff]
        %v1180 = vld [vmem:[#allocation8 + $0x15f8] sm:$0xff]
        %v1181 = vld [vmem:[#allocation8 + $0x1600] sm:$0xff]
        %v1182 = vld [vmem:[#allocation8 + $0x1608] sm:$0xff]
        %v1183 = vld [vmem:[#allocation8 + $0x1610] sm:$0xff]
        %v1184 = vld [vmem:[#allocation8 + $0x1618] sm:$0xff]
        %v1185 = vld [vmem:[#allocation8 + $0x1620] sm:$0xff]
        %v1186 = vld [vmem:[#allocation8 + $0x1628] sm:$0xff]
        %v1187 = vld [vmem:[#allocation8 + $0x1630] sm:$0xff]
        %v1188 = vld [vmem:[#allocation8 + $0x1638] sm:$0xff]
        %v1189 = vld [vmem:[#allocation8 + $0x1640] sm:$0xff]
        %v1190 = vld [vmem:[#allocation8 + $0x1648] sm:$0xff]
        %v1191 = vld [vmem:[#allocation8 + $0x1650] sm:$0xff]
        %v1192 = vld [vmem:[#allocation8 + $0x1658] sm:$0xff]
        %v1193 = vld [vmem:[#allocation8 + $0x1660] sm:$0xff]
        %v1194 = vld [vmem:[#allocation8 + $0x1668] sm:$0xff]
        %v1195 = vld [vmem:[#allocation8 + $0x1670] sm:$0xff]
        %v1196 = vld [vmem:[#allocation8 + $0x1678] sm:$0xff]
        %v1197 = vld [vmem:[#allocation8 + $0x1680] sm:$0xff]
        %v1198 = vld [vmem:[#allocation8 + $0x1688] sm:$0xff]
        %v1199 = vld [vmem:[#allocation8 + $0x1690] sm:$0xff]
        %v1200 = vld [vmem:[#allocation8 + $0x1698] sm:$0xff]
        %v1201 = vld [vmem:[#allocation8 + $0x16a0] sm:$0xff]
        %v1202 = vld [vmem:[#allocation8 + $0x16a8] sm:$0xff]
        %v1203 = vld [vmem:[#allocation8 + $0x16b0] sm:$0xff]
        %v1204 = vld [vmem:[#allocation8 + $0x16b8] sm:$0xff]
        %v1205 = vld [vmem:[#allocation8 + $0x16c0] sm:$0xff]
        %v1206 = vld [vmem:[#allocation8 + $0x16c8] sm:$0xff]
        %v1207 = vld [vmem:[#allocation8 + $0x16d0] sm:$0xff]
        %v1208 = vld [vmem:[#allocation8 + $0x16d8] sm:$0xff]
        %v1209 = vld [vmem:[#allocation8 + $0x16e0] sm:$0xff]
        %v1210 = vld [vmem:[#allocation8 + $0x16e8] sm:$0xff]
        %v1211 = vld [vmem:[#allocation8 + $0x16f0] sm:$0xff]
        %v1212 = vld [vmem:[#allocation8 + $0x16f8] sm:$0xff]
        %v1213 = vld [vmem:[#allocation8 + $0x1700] sm:$0xff]
        %v1214 = vld [vmem:[#allocation8 + $0x1708] sm:$0xff]
        %v1215 = vld [vmem:[#allocation8 + $0x1710] sm:$0xff]
        %v1216 = vld [vmem:[#allocation8 + $0x1718] sm:$0xff]
        %v1217 = vld [vmem:[#allocation8 + $0x1720] sm:$0xff]
        %v1218 = vld [vmem:[#allocation8 + $0x1728] sm:$0xff]
        %v1219 = vld [vmem:[#allocation8 + $0x1730] sm:$0xff]
        %v1220 = vld [vmem:[#allocation8 + $0x1738] sm:$0xff]
        %v1221 = vld [vmem:[#allocation8 + $0x1740] sm:$0xff]
        %v1222 = vld [vmem:[#allocation8 + $0x1748] sm:$0xff]
        %v1223 = vld [vmem:[#allocation8 + $0x1750] sm:$0xff]
        %v1224 = vld [vmem:[#allocation8 + $0x1758] sm:$0xff]
        %v1225 = vld [vmem:[#allocation8 + $0x1760] sm:$0xff]
        %v1226 = vld [vmem:[#allocation8 + $0x1768] sm:$0xff]
        %v1227 = vld [vmem:[#allocation8 + $0x1770] sm:$0xff]
        %v1228 = vld [vmem:[#allocation8 + $0x1778] sm:$0xff]
        %v1229 = vld [vmem:[#allocation8 + $0x1780] sm:$0xff]
        %v1230 = vld [vmem:[#allocation8 + $0x1788] sm:$0xff]
        %v1231 = vld [vmem:[#allocation8 + $0x1790] sm:$0xff]
        %v1232 = vld [vmem:[#allocation8 + $0x1798] sm:$0xff]
        %v1233 = vld [vmem:[#allocation8 + $0x17a0] sm:$0xff]
        %v1234 = vld [vmem:[#allocation8 + $0x17a8] sm:$0xff]
        %v1235 = vld [vmem:[#allocation8 + $0x17b0] sm:$0xff]
        %v1236 = vld [vmem:[#allocation8 + $0x17b8] sm:$0xff]
        %v1237 = vld [vmem:[#allocation8 + $0x17c0] sm:$0xff]
        %v1238 = vld [vmem:[#allocation8 + $0x17c8] sm:$0xff]
        %v1239 = vld [vmem:[#allocation8 + $0x17d0] sm:$0xff]
        %v1240 = vld [vmem:[#allocation8 + $0x17d8] sm:$0xff]
        %v1241 = vld [vmem:[#allocation8 + $0x17e0] sm:$0xff]
        %v1242 = vld [vmem:[#allocation8 + $0x17e8] sm:$0xff]
        %v1243 = vld [vmem:[#allocation8 + $0x17f0] sm:$0xff]
        %v1244 = vld [vmem:[#allocation8 + $0x17f8] sm:$0xff]
        %v1245 = vld [vmem:[#allocation8 + $0x1800] sm:$0xff]
        %v1246 = vld [vmem:[#allocation8 + $0x1808] sm:$0xff]
        %v1247 = vld [vmem:[#allocation8 + $0x1810] sm:$0xff]
        %v1248 = vld [vmem:[#allocation8 + $0x1818] sm:$0xff]
        %v1249 = vld [vmem:[#allocation8 + $0x1820] sm:$0xff]
        %v1250 = vld [vmem:[#allocation8 + $0x1828] sm:$0xff]
        %v1251 = vld [vmem:[#allocation8 + $0x1830] sm:$0xff]
        %v1252 = vld [vmem:[#allocation8 + $0x1838] sm:$0xff]
        %v1253 = vld [vmem:[#allocation8 + $0x1840] sm:$0xff]
        %v1254 = vld [vmem:[#allocation8 + $0x1848] sm:$0xff]
        %v1255 = vld [vmem:[#allocation8 + $0x1850] sm:$0xff]
        %v1256 = vld [vmem:[#allocation8 + $0x1858] sm:$0xff]
        %v1257 = vld [vmem:[#allocation8 + $0x1860] sm:$0xff]
        %v1258 = vld [vmem:[#allocation8 + $0x1868] sm:$0xff]
        %v1259 = vld [vmem:[#allocation8 + $0x1870] sm:$0xff]
        %v1260 = vld [vmem:[#allocation8 + $0x1878] sm:$0xff]
        %v1261 = vld [vmem:[#allocation8 + $0x1880] sm:$0xff]
        %v1262 = vld [vmem:[#allocation8 + $0x1888] sm:$0xff]
        %v1263 = vld [vmem:[#allocation8 + $0x1890] sm:$0xff]
        %v1264 = vld [vmem:[#allocation8 + $0x1898] sm:$0xff]
        %v1265 = vld [vmem:[#allocation8 + $0x18a0] sm:$0xff]
        %v1266 = vld [vmem:[#allocation8 + $0x18a8] sm:$0xff]
        %v1267 = vld [vmem:[#allocation8 + $0x18b0] sm:$0xff]
        %v1268 = vld [vmem:[#allocation8 + $0x18b8] sm:$0xff]
        %v1269 = vld [vmem:[#allocation8 + $0x18c0] sm:$0xff]
        %v1270 = vld [vmem:[#allocation8 + $0x18c8] sm:$0xff]
        %v1271 = vld [vmem:[#allocation8 + $0x18d0] sm:$0xff]
        %v1272 = vld [vmem:[#allocation8 + $0x18d8] sm:$0xff]
        %v1273 = vld [vmem:[#allocation8 + $0x18e0] sm:$0xff]
        %v1274 = vld [vmem:[#allocation8 + $0x18e8] sm:$0xff]
        %v1275 = vld [vmem:[#allocation8 + $0x18f0] sm:$0xff]
        %v1276 = vld [vmem:[#allocation8 + $0x18f8] sm:$0xff]
        %v1277 = vld [vmem:[#allocation8 + $0x1900] sm:$0xff]
        %v1278 = vld [vmem:[#allocation8 + $0x1908] sm:$0xff]
        %v1279 = vld [vmem:[#allocation8 + $0x1910] sm:$0xff]
        %v1280 = vld [vmem:[#allocation8 + $0x1918] sm:$0xff]
        %v1281 = vld [vmem:[#allocation8 + $0x1920] sm:$0xff]
        %v1282 = vld [vmem:[#allocation8 + $0x1928] sm:$0xff]
        %v1283 = vld [vmem:[#allocation8 + $0x1930] sm:$0xff]
        %v1284 = vld [vmem:[#allocation8 + $0x1938] sm:$0xff]
        %v1285 = vld [vmem:[#allocation8 + $0x1940] sm:$0xff]
        %v1286 = vld [vmem:[#allocation8 + $0x1948] sm:$0xff]
        %v1287 = vld [vmem:[#allocation8 + $0x1950] sm:$0xff]
        %v1288 = vld [vmem:[#allocation8 + $0x1958] sm:$0xff]
        %v1289 = vld [vmem:[#allocation8 + $0x1960] sm:$0xff]
        %v1290 = vld [vmem:[#allocation8 + $0x1968] sm:$0xff]
        %v1291 = vld [vmem:[#allocation8 + $0x1970] sm:$0xff]
        %v1292 = vld [vmem:[#allocation8 + $0x1978] sm:$0xff]
        %v1293 = vld [vmem:[#allocation8 + $0x1980] sm:$0xff]
        %v1294 = vld [vmem:[#allocation8 + $0x1988] sm:$0xff]
        %v1295 = vld [vmem:[#allocation8 + $0x1990] sm:$0xff]
        %v1296 = vld [vmem:[#allocation8 + $0x1998] sm:$0xff]
        %v1297 = vld [vmem:[#allocation8 + $0x19a0] sm:$0xff]
        %v1298 = vld [vmem:[#allocation8 + $0x19a8] sm:$0xff]
        %v1299 = vld [vmem:[#allocation8 + $0x19b0] sm:$0xff]
        %v1300 = vld [vmem:[#allocation8 + $0x19b8] sm:$0xff]
        %v1301 = vld [vmem:[#allocation8 + $0x19c0] sm:$0xff]
        %v1302 = vld [vmem:[#allocation8 + $0x19c8] sm:$0xff]
        %v1303 = vld [vmem:[#allocation8 + $0x19d0] sm:$0xff]
        %v1304 = vld [vmem:[#allocation8 + $0x19d8] sm:$0xff]
        %v1305 = vld [vmem:[#allocation8 + $0x19e0] sm:$0xff]
        %v1306 = vld [vmem:[#allocation8 + $0x19e8] sm:$0xff]
        %v1307 = vld [vmem:[#allocation8 + $0x19f0] sm:$0xff]
        %v1308 = vld [vmem:[#allocation8 + $0x19f8] sm:$0xff]
        %v1309 = vld [vmem:[#allocation8 + $0x1a00] sm:$0xff]
        %v1310 = vld [vmem:[#allocation8 + $0x1a08] sm:$0xff]
        %v1311 = vld [vmem:[#allocation8 + $0x1a10] sm:$0xff]
        %v1312 = vld [vmem:[#allocation8 + $0x1a18] sm:$0xff]
        %v1313 = vld [vmem:[#allocation8 + $0x1a20] sm:$0xff]
        %v1314 = vld [vmem:[#allocation8 + $0x1a28] sm:$0xff]
        %v1315 = vld [vmem:[#allocation8 + $0x1a30] sm:$0xff]
        %v1316 = vld [vmem:[#allocation8 + $0x1a38] sm:$0xff]
        %v1317 = vld [vmem:[#allocation8 + $0x1a40] sm:$0xff]
        %v1318 = vld [vmem:[#allocation8 + $0x1a48] sm:$0xff]
        %v1319 = vld [vmem:[#allocation8 + $0x1a50] sm:$0xff]
        %v1320 = vld [vmem:[#allocation8 + $0x1a58] sm:$0xff]
        %v1321 = vld [vmem:[#allocation8 + $0x1a60] sm:$0xff]
        %v1322 = vld [vmem:[#allocation8 + $0x1a68] sm:$0xff]
        %v1323 = vld [vmem:[#allocation8 + $0x1a70] sm:$0xff]
        %v1324 = vld [vmem:[#allocation8 + $0x1a78] sm:$0xff]
        %v1325 = vld [vmem:[#allocation8 + $0x1a80] sm:$0xff]
        %v1326 = vld [vmem:[#allocation8 + $0x1a88] sm:$0xff]
        %v1327 = vld [vmem:[#allocation8 + $0x1a90] sm:$0xff]
        %v1328 = vld [vmem:[#allocation8 + $0x1a98] sm:$0xff]
        %v1329 = vld [vmem:[#allocation8 + $0x1aa0] sm:$0xff]
        %v1330 = vld [vmem:[#allocation8 + $0x1aa8] sm:$0xff]
        %v1331 = vld [vmem:[#allocation8 + $0x1ab0] sm:$0xff]
        %v1332 = vld [vmem:[#allocation8 + $0x1ab8] sm:$0xff]
        %v1333 = vld [vmem:[#allocation8 + $0x1ac0] sm:$0xff]
        %v1334 = vld [vmem:[#allocation8 + $0x1ac8] sm:$0xff]
        %v1335 = vld [vmem:[#allocation8 + $0x1ad0] sm:$0xff]
        %v1336 = vld [vmem:[#allocation8 + $0x1ad8] sm:$0xff]
        %v1337 = vld [vmem:[#allocation8 + $0x1ae0] sm:$0xff]
        %v1338 = vld [vmem:[#allocation8 + $0x1ae8] sm:$0xff]
        %v1339 = vld [vmem:[#allocation8 + $0x1af0] sm:$0xff]
        %v1340 = vld [vmem:[#allocation8 + $0x1af8] sm:$0xff]
        %v1341 = vld [vmem:[#allocation10] sm:$0xff]
        %v1342 = vld [vmem:[#allocation10 + $0x8] sm:$0xff]
        %v1343 = vld [vmem:[#allocation10 + $0x10] sm:$0x3]
        %v1347 = vlaneseq
        %v1348 = vshrl.u32 %v1347, 7
        %v1349 = vsub.s32 0, %v1348
        %v1350 = vrot.slane %v1341, %v1349
        %v1351 = vlaneseq
        %v1352 = vshrl.u32 %v1351, 7
        %v1353 = vsub.s32 1, %v1352
        %v1354 = vrot.slane %v1341, %v1353
        %v1355 = vlaneseq
        %v1356 = vshrl.u32 %v1355, 7
        %v1357 = vsub.s32 2, %v1356
        %v1358 = vrot.slane %v1341, %v1357
        %v1359 = vlaneseq
        %v1360 = vshrl.u32 %v1359, 7
        %v1361 = vsub.s32 3, %v1360
        %v1362 = vrot.slane %v1341, %v1361
        %v1363 = vlaneseq
        %v1364 = vshrl.u32 %v1363, 7
        %v1365 = vsub.s32 4, %v1364
        %v1366 = vrot.slane %v1341, %v1365
        %v1367 = vlaneseq
        %v1368 = vshrl.u32 %v1367, 7
        %v1369 = vsub.s32 5, %v1368
        %v1370 = vrot.slane %v1341, %v1369
        %v1371 = vlaneseq
        %v1372 = vshrl.u32 %v1371, 7
        %v1373 = vsub.s32 6, %v1372
        %v1374 = vrot.slane %v1341, %v1373
        %v1375 = vlaneseq
        %v1376 = vshrl.u32 %v1375, 7
        %v1377 = vsub.s32 7, %v1376
        %v1378 = vrot.slane %v1341, %v1377
        %v1379 = vlaneseq
        %v1380 = vshrl.u32 %v1379, 7
        %v1381 = vsub.s32 0, %v1380
        %v1382 = vrot.slane %v1342, %v1381
        %v1383 = vlaneseq
        %v1384 = vshrl.u32 %v1383, 7
        %v1385 = vsub.s32 1, %v1384
        %v1386 = vrot.slane %v1342, %v1385
        %v1387 = vlaneseq
        %v1388 = vshrl.u32 %v1387, 7
        %v1389 = vsub.s32 2, %v1388
        %v1390 = vrot.slane %v1342, %v1389
        %v1391 = vlaneseq
        %v1392 = vshrl.u32 %v1391, 7
        %v1393 = vsub.s32 3, %v1392
        %v1394 = vrot.slane %v1342, %v1393
        %v1395 = vlaneseq
        %v1396 = vshrl.u32 %v1395, 7
        %v1397 = vsub.s32 4, %v1396
        %v1398 = vrot.slane %v1342, %v1397
        %v1399 = vlaneseq
        %v1400 = vshrl.u32 %v1399, 7
        %v1401 = vsub.s32 5, %v1400
        %v1402 = vrot.slane %v1342, %v1401
        %v1403 = vlaneseq
        %v1404 = vshrl.u32 %v1403, 7
        %v1405 = vsub.s32 6, %v1404
        %v1406 = vrot.slane %v1342, %v1405
        %v1407 = vlaneseq
        %v1408 = vshrl.u32 %v1407, 7
        %v1409 = vsub.s32 7, %v1408
        %v1410 = vrot.slane %v1342, %v1409
        %v1411 = vlaneseq
        %v1412 = vshrl.u32 %v1411, 7
        %v1413 = vsub.s32 0, %v1412
        %v1414 = vrot.slane %v1343, %v1413
        %v1415 = vlaneseq
        %v1416 = vshrl.u32 %v1415, 7
        %v1417 = vsub.s32 1, %v1416
        %v1418 = vrot.slane %v1343, %v1417
        %v2301 = vunpack.c.l.b16 %v477
        %v2302 = vunpack.c.h.b16 %v477
        %v2303 = vunpack.c.l.b16 %v478
        %v2304 = vunpack.c.h.b16 %v478
        %v2305 = vunpack.c.l.b16 %v479
        %v2306 = vunpack.c.h.b16 %v479
        %v2307 = vunpack.c.l.b16 %v480
        %v2308 = vunpack.c.h.b16 %v480
        %v2309 = vunpack.c.l.b16 %v481
        %v2310 = vunpack.c.h.b16 %v481
        %v2311 = vunpack.c.l.b16 %v482
        %v2312 = vunpack.c.h.b16 %v482
        %v2313 = vunpack.c.l.b16 %v483
        %v2314 = vunpack.c.h.b16 %v483
        %v2315 = vunpack.c.l.b16 %v484
        %v2316 = vunpack.c.h.b16 %v484
        %v2317 = vunpack.c.l.b16 %v485
        %v2318 = vunpack.c.h.b16 %v485
        %v2319 = vunpack.c.l.b16 %v486
        %v2320 = vunpack.c.h.b16 %v486
        %v2321 = vunpack.c.l.b16 %v487
        %v2322 = vunpack.c.h.b16 %v487
        %v2323 = vunpack.c.l.b16 %v488
        %v2324 = vunpack.c.h.b16 %v488
        %v2325 = vunpack.c.l.b16 %v489
        %v2326 = vunpack.c.h.b16 %v489
        %v2327 = vunpack.c.l.b16 %v490
        %v2328 = vunpack.c.h.b16 %v490
        %v2329 = vunpack.c.l.b16 %v491
        %v2330 = vunpack.c.h.b16 %v491
        %v2331 = vunpack.c.l.b16 %v492
        %v2332 = vunpack.c.h.b16 %v492
        %v2333 = vunpack.c.l.b16 %v493
        %v2334 = vunpack.c.h.b16 %v493
        %v2335 = vunpack.c.l.b16 %v494
        %v2336 = vunpack.c.h.b16 %v494
        %v2337 = vunpack.c.l.b16 %v495
        %v2338 = vunpack.c.h.b16 %v495
        %v2339 = vunpack.c.l.b16 %v496
        %v2340 = vunpack.c.h.b16 %v496
        %v2341 = vunpack.c.l.b16 %v497
        %v2342 = vunpack.c.h.b16 %v497
        %v2343 = vunpack.c.l.b16 %v498
        %v2344 = vunpack.c.h.b16 %v498
        %v2345 = vunpack.c.l.b16 %v499
        %v2346 = vunpack.c.h.b16 %v499
        %v2347 = vunpack.c.l.b16 %v500
        %v2348 = vunpack.c.h.b16 %v500
        %v2349 = vunpack.c.l.b16 %v501
        %v2350 = vunpack.c.h.b16 %v501
        %v2351 = vunpack.c.l.b16 %v502
        %v2352 = vunpack.c.h.b16 %v502
        %v2353 = vunpack.c.l.b16 %v503
        %v2354 = vunpack.c.h.b16 %v503
        %v2355 = vunpack.c.l.b16 %v504
        %v2356 = vunpack.c.h.b16 %v504
        %v2357 = vunpack.c.l.b16 %v505
        %v2358 = vunpack.c.h.b16 %v505
        %v2359 = vunpack.c.l.b16 %v506
        %v2360 = vunpack.c.h.b16 %v506
        %v2361 = vunpack.c.l.b16 %v507
        %v2362 = vunpack.c.h.b16 %v507
        %v2363 = vunpack.c.l.b16 %v508
        %v2364 = vunpack.c.h.b16 %v508
        %v2365 = vunpack.c.l.b16 %v509
        %v2366 = vunpack.c.h.b16 %v509
        %v2367 = vunpack.c.l.b16 %v510
        %v2368 = vunpack.c.h.b16 %v510
        %v2369 = vunpack.c.l.b16 %v511
        %v2370 = vunpack.c.h.b16 %v511
        %v2371 = vunpack.c.l.b16 %v512
        %v2372 = vunpack.c.h.b16 %v512
        %v2373 = vunpack.c.l.b16 %v513
        %v2374 = vunpack.c.h.b16 %v513
        %v2375 = vunpack.c.l.b16 %v514
        %v2376 = vunpack.c.h.b16 %v514
        %v2377 = vunpack.c.l.b16 %v515
        %v2378 = vunpack.c.h.b16 %v515
        %v2379 = vunpack.c.l.b16 %v516
        %v2380 = vunpack.c.h.b16 %v516
        %v2381 = vunpack.c.l.b16 %v517
        %v2382 = vunpack.c.h.b16 %v517
        %v2383 = vunpack.c.l.b16 %v518
        %v2384 = vunpack.c.h.b16 %v518
        %v2385 = vunpack.c.l.b16 %v519
        %v2386 = vunpack.c.h.b16 %v519
        %v2387 = vunpack.c.l.b16 %v520
        %v2388 = vunpack.c.h.b16 %v520
        %v2389 = vunpack.c.l.b16 %v521
        %v2390 = vunpack.c.h.b16 %v521
        %v2391 = vunpack.c.l.b16 %v522
        %v2392 = vunpack.c.h.b16 %v522
        %v2393 = vunpack.c.l.b16 %v523
        %v2394 = vunpack.c.h.b16 %v523
        %v2395 = vunpack.c.l.b16 %v524
        %v2396 = vunpack.c.h.b16 %v524
        %v2397 = vunpack.c.l.b16 %v525
        %v2398 = vunpack.c.h.b16 %v525
        %v2399 = vunpack.c.l.b16 %v526
        %v2400 = vunpack.c.h.b16 %v526
        %v2401 = vunpack.c.l.b16 %v527
        %v2402 = vunpack.c.h.b16 %v527
        %v2403 = vunpack.c.l.b16 %v528
        %v2404 = vunpack.c.h.b16 %v528
        %v2405 = vunpack.c.l.b16 %v529
        %v2406 = vunpack.c.h.b16 %v529
        %v2407 = vunpack.c.l.b16 %v530
        %v2408 = vunpack.c.h.b16 %v530
        %v2409 = vunpack.c.l.b16 %v531
        %v2410 = vunpack.c.h.b16 %v531
        %v2411 = vunpack.c.l.b16 %v532
        %v2412 = vunpack.c.h.b16 %v532
        %v2413 = vunpack.c.l.b16 %v533
        %v2414 = vunpack.c.h.b16 %v533
        %v2415 = vunpack.c.l.b16 %v534
        %v2416 = vunpack.c.h.b16 %v534
        %v2417 = vunpack.c.l.b16 %v535
        %v2418 = vunpack.c.h.b16 %v535
        %v2419 = vunpack.c.l.b16 %v536
        %v2420 = vunpack.c.h.b16 %v536
        %v2421 = vunpack.c.l.b16 %v537
        %v2422 = vunpack.c.h.b16 %v537
        %v2423 = vunpack.c.l.b16 %v538
        %v2424 = vunpack.c.h.b16 %v538
        %v2425 = vunpack.c.l.b16 %v539
        %v2426 = vunpack.c.h.b16 %v539
        %v2427 = vunpack.c.l.b16 %v540
        %v2428 = vunpack.c.h.b16 %v540
        %v2429 = vunpack.c.l.b16 %v541
        %v2430 = vunpack.c.h.b16 %v541
        %v2431 = vunpack.c.l.b16 %v542
        %v2432 = vunpack.c.h.b16 %v542
        %v2433 = vunpack.c.l.b16 %v543
        %v2434 = vunpack.c.h.b16 %v543
        %v2435 = vunpack.c.l.b16 %v544
        %v2436 = vunpack.c.h.b16 %v544
        %v2437 = vunpack.c.l.b16 %v545
        %v2438 = vunpack.c.h.b16 %v545
        %v2439 = vunpack.c.l.b16 %v546
        %v2440 = vunpack.c.h.b16 %v546
        %v2441 = vunpack.c.l.b16 %v547
        %v2442 = vunpack.c.h.b16 %v547
        %v2443 = vunpack.c.l.b16 %v548
        %v2444 = vunpack.c.h.b16 %v548
        %v2445 = vunpack.c.l.b16 %v549
        %v2446 = vunpack.c.h.b16 %v549
        %v2447 = vunpack.c.l.b16 %v550
        %v2448 = vunpack.c.h.b16 %v550
        %v2449 = vunpack.c.l.b16 %v551
        %v2450 = vunpack.c.h.b16 %v551
        %v2451 = vunpack.c.l.b16 %v552
        %v2452 = vunpack.c.h.b16 %v552
        %v2453 = vunpack.c.l.b16 %v553
        %v2454 = vunpack.c.h.b16 %v553
        %v2455 = vunpack.c.l.b16 %v554
        %v2456 = vunpack.c.h.b16 %v554
        %v2457 = vunpack.c.l.b16 %v555
        %v2458 = vunpack.c.h.b16 %v555
        %v2459 = vunpack.c.l.b16 %v556
        %v2460 = vunpack.c.h.b16 %v556
        %v2461 = vunpack.c.l.b16 %v557
        %v2462 = vunpack.c.h.b16 %v557
        %v2463 = vunpack.c.l.b16 %v558
        %v2464 = vunpack.c.h.b16 %v558
        %v2465 = vunpack.c.l.b16 %v559
        %v2466 = vunpack.c.h.b16 %v559
        %v2467 = vunpack.c.l.b16 %v560
        %v2468 = vunpack.c.h.b16 %v560
        %v2469 = vunpack.c.l.b16 %v561
        %v2470 = vunpack.c.h.b16 %v561
        %v2471 = vunpack.c.l.b16 %v562
        %v2472 = vunpack.c.h.b16 %v562
        %v2473 = vunpack.c.l.b16 %v563
        %v2474 = vunpack.c.h.b16 %v563
        %v2475 = vunpack.c.l.b16 %v564
        %v2476 = vunpack.c.h.b16 %v564
        %v2477 = vunpack.c.l.b16 %v565
        %v2478 = vunpack.c.h.b16 %v565
        %v2479 = vunpack.c.l.b16 %v566
        %v2480 = vunpack.c.h.b16 %v566
        %v2481 = vunpack.c.l.b16 %v567
        %v2482 = vunpack.c.h.b16 %v567
        %v2483 = vunpack.c.l.b16 %v568
        %v2484 = vunpack.c.h.b16 %v568
        %v2485 = vunpack.c.l.b16 %v569
        %v2486 = vunpack.c.h.b16 %v569
        %v2487 = vunpack.c.l.b16 %v570
        %v2488 = vunpack.c.h.b16 %v570
        %v2489 = vunpack.c.l.b16 %v571
        %v2490 = vunpack.c.h.b16 %v571
        %v2491 = vunpack.c.l.b16 %v572
        %v2492 = vunpack.c.h.b16 %v572
        %v2493 = vunpack.c.l.b16 %v573
        %v2494 = vunpack.c.h.b16 %v573
        %v2495 = vunpack.c.l.b16 %v574
        %v2496 = vunpack.c.h.b16 %v574
        %v2497 = vunpack.c.l.b16 %v575
        %v2498 = vunpack.c.h.b16 %v575
        %v2499 = vunpack.c.l.b16 %v576
        %v2500 = vunpack.c.h.b16 %v576
        %v2501 = vunpack.c.l.b16 %v577
        %v2502 = vunpack.c.h.b16 %v577
        %v2503 = vunpack.c.l.b16 %v578
        %v2504 = vunpack.c.h.b16 %v578
        %v2505 = vunpack.c.l.b16 %v579
        %v2506 = vunpack.c.h.b16 %v579
        %v2507 = vunpack.c.l.b16 %v580
        %v2508 = vunpack.c.h.b16 %v580
        %v2509 = vunpack.c.l.b16 %v581
        %v2510 = vunpack.c.h.b16 %v581
        %v2511 = vunpack.c.l.b16 %v582
        %v2512 = vunpack.c.h.b16 %v582
        %v2513 = vunpack.c.l.b16 %v583
        %v2514 = vunpack.c.h.b16 %v583
        %v2515 = vunpack.c.l.b16 %v584
        %v2516 = vunpack.c.h.b16 %v584
        %v2517 = vunpack.c.l.b16 %v585
        %v2518 = vunpack.c.h.b16 %v585
        %v2519 = vunpack.c.l.b16 %v586
        %v2520 = vunpack.c.h.b16 %v586
        %v2521 = vunpack.c.l.b16 %v587
        %v2522 = vunpack.c.h.b16 %v587
        %v2523 = vunpack.c.l.b16 %v588
        %v2524 = vunpack.c.h.b16 %v588
        %v2525 = vunpack.c.l.b16 %v589
        %v2526 = vunpack.c.h.b16 %v589
        %v2527 = vunpack.c.l.b16 %v590
        %v2528 = vunpack.c.h.b16 %v590
        %v2529 = vunpack.c.l.b16 %v591
        %v2530 = vunpack.c.h.b16 %v591
        %v2531 = vunpack.c.l.b16 %v592
        %v2532 = vunpack.c.h.b16 %v592
        %v2533 = vunpack.c.l.b16 %v593
        %v2534 = vunpack.c.h.b16 %v593
        %v2535 = vunpack.c.l.b16 %v594
        %v2536 = vunpack.c.h.b16 %v594
        %v2537 = vunpack.c.l.b16 %v595
        %v2538 = vunpack.c.h.b16 %v595
        %v2539 = vunpack.c.l.b16 %v596
        %v2540 = vunpack.c.h.b16 %v596
        %v2541 = vunpack.c.l.b16 %v597
        %v2542 = vunpack.c.h.b16 %v597
        %v2543 = vunpack.c.l.b16 %v598
        %v2544 = vunpack.c.h.b16 %v598
        %v2545 = vunpack.c.l.b16 %v599
        %v2546 = vunpack.c.h.b16 %v599
        %v2547 = vunpack.c.l.b16 %v600
        %v2548 = vunpack.c.h.b16 %v600
        %v2549 = vunpack.c.l.b16 %v601
        %v2550 = vunpack.c.h.b16 %v601
        %v2551 = vunpack.c.l.b16 %v602
        %v2552 = vunpack.c.h.b16 %v602
        %v2553 = vunpack.c.l.b16 %v603
        %v2554 = vunpack.c.h.b16 %v603
        %v2555 = vunpack.c.l.b16 %v604
        %v2556 = vunpack.c.h.b16 %v604
        %v2557 = vunpack.c.l.b16 %v605
        %v2558 = vunpack.c.h.b16 %v605
        %v2559 = vunpack.c.l.b16 %v606
        %v2560 = vunpack.c.h.b16 %v606
        %v2561 = vunpack.c.l.b16 %v607
        %v2562 = vunpack.c.h.b16 %v607
        %v2563 = vunpack.c.l.b16 %v608
        %v2564 = vunpack.c.h.b16 %v608
        %v2565 = vunpack.c.l.b16 %v609
        %v2566 = vunpack.c.h.b16 %v609
        %v2567 = vunpack.c.l.b16 %v610
        %v2568 = vunpack.c.h.b16 %v610
        %v2569 = vunpack.c.l.b16 %v611
        %v2570 = vunpack.c.h.b16 %v611
        %v2571 = vunpack.c.l.b16 %v612
        %v2572 = vunpack.c.h.b16 %v612
        %v2573 = vunpack.c.l.b16 %v613
        %v2574 = vunpack.c.h.b16 %v613
        %v2575 = vunpack.c.l.b16 %v614
        %v2576 = vunpack.c.h.b16 %v614
        %v2577 = vunpack.c.l.b16 %v615
        %v2578 = vunpack.c.h.b16 %v615
        %v2579 = vunpack.c.l.b16 %v616
        %v2580 = vunpack.c.h.b16 %v616
        %v2581 = vunpack.c.l.b16 %v617
        %v2582 = vunpack.c.h.b16 %v617
        %v2583 = vunpack.c.l.b16 %v618
        %v2584 = vunpack.c.h.b16 %v618
        %v2585 = vunpack.c.l.b16 %v619
        %v2586 = vunpack.c.h.b16 %v619
        %v2587 = vunpack.c.l.b16 %v620
        %v2588 = vunpack.c.h.b16 %v620
        %v2589 = vunpack.c.l.b16 %v621
        %v2590 = vunpack.c.h.b16 %v621
        %v2591 = vunpack.c.l.b16 %v622
        %v2592 = vunpack.c.h.b16 %v622
        %v2593 = vunpack.c.l.b16 %v623
        %v2594 = vunpack.c.h.b16 %v623
        %v2595 = vunpack.c.l.b16 %v624
        %v2596 = vunpack.c.h.b16 %v624
        %v2597 = vunpack.c.l.b16 %v625
        %v2598 = vunpack.c.h.b16 %v625
        %v2599 = vunpack.c.l.b16 %v626
        %v2600 = vunpack.c.h.b16 %v626
        %v2601 = vunpack.c.l.b16 %v627
        %v2602 = vunpack.c.h.b16 %v627
        %v2603 = vunpack.c.l.b16 %v628
        %v2604 = vunpack.c.h.b16 %v628
        %v2605 = vunpack.c.l.b16 %v629
        %v2606 = vunpack.c.h.b16 %v629
        %v2607 = vunpack.c.l.b16 %v630
        %v2608 = vunpack.c.h.b16 %v630
        %v2609 = vunpack.c.l.b16 %v631
        %v2610 = vunpack.c.h.b16 %v631
        %v2611 = vunpack.c.l.b16 %v632
        %v2612 = vunpack.c.h.b16 %v632
        %v2613 = vunpack.c.l.b16 %v633
        %v2614 = vunpack.c.h.b16 %v633
        %v2615 = vunpack.c.l.b16 %v634
        %v2616 = vunpack.c.h.b16 %v634
        %v2617 = vunpack.c.l.b16 %v635
        %v2618 = vunpack.c.h.b16 %v635
        %v2619 = vunpack.c.l.b16 %v636
        %v2620 = vunpack.c.h.b16 %v636
        %v2621 = vunpack.c.l.b16 %v637
        %v2622 = vunpack.c.h.b16 %v637
        %v2623 = vunpack.c.l.b16 %v638
        %v2624 = vunpack.c.h.b16 %v638
        %v2625 = vunpack.c.l.b16 %v639
        %v2626 = vunpack.c.h.b16 %v639
        %v2627 = vunpack.c.l.b16 %v640
        %v2628 = vunpack.c.h.b16 %v640
        %v2629 = vunpack.c.l.b16 %v641
        %v2630 = vunpack.c.h.b16 %v641
        %v2631 = vunpack.c.l.b16 %v642
        %v2632 = vunpack.c.h.b16 %v642
        %v2633 = vunpack.c.l.b16 %v643
        %v2634 = vunpack.c.h.b16 %v643
        %v2635 = vunpack.c.l.b16 %v644
        %v2636 = vunpack.c.h.b16 %v644
        %v2637 = vunpack.c.l.b16 %v645
        %v2638 = vunpack.c.h.b16 %v645
        %v2639 = vunpack.c.l.b16 %v646
        %v2640 = vunpack.c.h.b16 %v646
        %v2641 = vunpack.c.l.b16 %v647
        %v2642 = vunpack.c.h.b16 %v647
        %v2643 = vunpack.c.l.b16 %v648
        %v2644 = vunpack.c.h.b16 %v648
        %v2645 = vunpack.c.l.b16 %v649
        %v2646 = vunpack.c.h.b16 %v649
        %v2647 = vunpack.c.l.b16 %v650
        %v2648 = vunpack.c.h.b16 %v650
        %v2649 = vunpack.c.l.b16 %v651
        %v2650 = vunpack.c.h.b16 %v651
        %v2651 = vunpack.c.l.b16 %v652
        %v2652 = vunpack.c.h.b16 %v652
        %v2653 = vunpack.c.l.b16 %v653
        %v2654 = vunpack.c.h.b16 %v653
        %v2655 = vunpack.c.l.b16 %v654
        %v2656 = vunpack.c.h.b16 %v654
        %v2657 = vunpack.c.l.b16 %v655
        %v2658 = vunpack.c.h.b16 %v655
        %v2659 = vunpack.c.l.b16 %v656
        %v2660 = vunpack.c.h.b16 %v656
        %v2661 = vunpack.c.l.b16 %v657
        %v2662 = vunpack.c.h.b16 %v657
        %v2663 = vunpack.c.l.b16 %v658
        %v2664 = vunpack.c.h.b16 %v658
        %v2665 = vunpack.c.l.b16 %v659
        %v2666 = vunpack.c.h.b16 %v659
        %v2667 = vunpack.c.l.b16 %v660
        %v2668 = vunpack.c.h.b16 %v660
        %v2669 = vunpack.c.l.b16 %v661
        %v2670 = vunpack.c.h.b16 %v661
        %v2671 = vunpack.c.l.b16 %v662
        %v2672 = vunpack.c.h.b16 %v662
        %v2673 = vunpack.c.l.b16 %v663
        %v2674 = vunpack.c.h.b16 %v663
        %v2675 = vunpack.c.l.b16 %v664
        %v2676 = vunpack.c.h.b16 %v664
        %v2677 = vunpack.c.l.b16 %v665
        %v2678 = vunpack.c.h.b16 %v665
        %v2679 = vunpack.c.l.b16 %v666
        %v2680 = vunpack.c.h.b16 %v666
        %v2681 = vunpack.c.l.b16 %v667
        %v2682 = vunpack.c.h.b16 %v667
        %v2683 = vunpack.c.l.b16 %v668
        %v2684 = vunpack.c.h.b16 %v668
        %v2685 = vunpack.c.l.b16 %v669
        %v2686 = vunpack.c.h.b16 %v669
        %v2687 = vunpack.c.l.b16 %v670
        %v2688 = vunpack.c.h.b16 %v670
        %v2689 = vunpack.c.l.b16 %v671
        %v2690 = vunpack.c.h.b16 %v671
        %v2691 = vunpack.c.l.b16 %v672
        %v2692 = vunpack.c.h.b16 %v672
        %v2693 = vunpack.c.l.b16 %v673
        %v2694 = vunpack.c.h.b16 %v673
        %v2695 = vunpack.c.l.b16 %v674
        %v2696 = vunpack.c.h.b16 %v674
        %v2697 = vunpack.c.l.b16 %v675
        %v2698 = vunpack.c.h.b16 %v675
        %v2699 = vunpack.c.l.b16 %v676
        %v2700 = vunpack.c.h.b16 %v676
        %v2701 = vunpack.c.l.b16 %v677
        %v2702 = vunpack.c.h.b16 %v677
        %v2703 = vunpack.c.l.b16 %v678
        %v2704 = vunpack.c.h.b16 %v678
        %v2705 = vunpack.c.l.b16 %v679
        %v2706 = vunpack.c.h.b16 %v679
        %v2707 = vunpack.c.l.b16 %v680
        %v2708 = vunpack.c.h.b16 %v680
        %v2709 = vunpack.c.l.b16 %v681
        %v2710 = vunpack.c.h.b16 %v681
        %v2711 = vunpack.c.l.b16 %v682
        %v2712 = vunpack.c.h.b16 %v682
        %v2713 = vunpack.c.l.b16 %v683
        %v2714 = vunpack.c.h.b16 %v683
        %v2715 = vunpack.c.l.b16 %v684
        %v2716 = vunpack.c.h.b16 %v684
        %v2717 = vunpack.c.l.b16 %v685
        %v2718 = vunpack.c.h.b16 %v685
        %v2719 = vunpack.c.l.b16 %v686
        %v2720 = vunpack.c.h.b16 %v686
        %v2721 = vunpack.c.l.b16 %v687
        %v2722 = vunpack.c.h.b16 %v687
        %v2723 = vunpack.c.l.b16 %v688
        %v2724 = vunpack.c.h.b16 %v688
        %v2725 = vunpack.c.l.b16 %v689
        %v2726 = vunpack.c.h.b16 %v689
        %v2727 = vunpack.c.l.b16 %v690
        %v2728 = vunpack.c.h.b16 %v690
        %v2729 = vunpack.c.l.b16 %v691
        %v2730 = vunpack.c.h.b16 %v691
        %v2731 = vunpack.c.l.b16 %v692
        %v2732 = vunpack.c.h.b16 %v692
        %v2733 = vunpack.c.l.b16 %v693
        %v2734 = vunpack.c.h.b16 %v693
        %v2735 = vunpack.c.l.b16 %v694
        %v2736 = vunpack.c.h.b16 %v694
        %v2737 = vunpack.c.l.b16 %v695
        %v2738 = vunpack.c.h.b16 %v695
        %v2739 = vunpack.c.l.b16 %v696
        %v2740 = vunpack.c.h.b16 %v696
        %v2741 = vunpack.c.l.b16 %v697
        %v2742 = vunpack.c.h.b16 %v697
        %v2743 = vunpack.c.l.b16 %v698
        %v2744 = vunpack.c.h.b16 %v698
        %v2745 = vunpack.c.l.b16 %v699
        %v2746 = vunpack.c.h.b16 %v699
        %v2747 = vunpack.c.l.b16 %v700
        %v2748 = vunpack.c.h.b16 %v700
        %v2749 = vunpack.c.l.b16 %v701
        %v2750 = vunpack.c.h.b16 %v701
        %v2751 = vunpack.c.l.b16 %v702
        %v2752 = vunpack.c.h.b16 %v702
        %v2753 = vunpack.c.l.b16 %v703
        %v2754 = vunpack.c.h.b16 %v703
        %v2755 = vunpack.c.l.b16 %v704
        %v2756 = vunpack.c.h.b16 %v704
        %v2757 = vunpack.c.l.b16 %v705
        %v2758 = vunpack.c.h.b16 %v705
        %v2759 = vunpack.c.l.b16 %v706
        %v2760 = vunpack.c.h.b16 %v706
        %v2761 = vunpack.c.l.b16 %v707
        %v2762 = vunpack.c.h.b16 %v707
        %v2763 = vunpack.c.l.b16 %v708
        %v2764 = vunpack.c.h.b16 %v708
        %v2765 = vunpack.c.l.b16 %v709
        %v2766 = vunpack.c.h.b16 %v709
        %v2767 = vunpack.c.l.b16 %v710
        %v2768 = vunpack.c.h.b16 %v710
        %v2769 = vunpack.c.l.b16 %v711
        %v2770 = vunpack.c.h.b16 %v711
        %v2771 = vunpack.c.l.b16 %v712
        %v2772 = vunpack.c.h.b16 %v712
        %v2773 = vunpack.c.l.b16 %v713
        %v2774 = vunpack.c.h.b16 %v713
        %v2775 = vunpack.c.l.b16 %v714
        %v2776 = vunpack.c.h.b16 %v714
        %v2777 = vunpack.c.l.b16 %v715
        %v2778 = vunpack.c.h.b16 %v715
        %v2779 = vunpack.c.l.b16 %v716
        %v2780 = vunpack.c.h.b16 %v716
        %v2781 = vunpack.c.l.b16 %v717
        %v2782 = vunpack.c.h.b16 %v717
        %v2783 = vunpack.c.l.b16 %v718
        %v2784 = vunpack.c.h.b16 %v718
        %v2785 = vunpack.c.l.b16 %v719
        %v2786 = vunpack.c.h.b16 %v719
        %v2787 = vunpack.c.l.b16 %v720
        %v2788 = vunpack.c.h.b16 %v720
        %v2789 = vunpack.c.l.b16 %v721
        %v2790 = vunpack.c.h.b16 %v721
        %v2791 = vunpack.c.l.b16 %v722
        %v2792 = vunpack.c.h.b16 %v722
        %v2793 = vunpack.c.l.b16 %v723
        %v2794 = vunpack.c.h.b16 %v723
        %v2795 = vunpack.c.l.b16 %v724
        %v2796 = vunpack.c.h.b16 %v724
        %v2797 = vunpack.c.l.b16 %v725
        %v2798 = vunpack.c.h.b16 %v725
        %v2799 = vunpack.c.l.b16 %v726
        %v2800 = vunpack.c.h.b16 %v726
        %v2801 = vunpack.c.l.b16 %v727
        %v2802 = vunpack.c.h.b16 %v727
        %v2803 = vunpack.c.l.b16 %v728
        %v2804 = vunpack.c.h.b16 %v728
        %v2805 = vunpack.c.l.b16 %v729
        %v2806 = vunpack.c.h.b16 %v729
        %v2807 = vunpack.c.l.b16 %v730
        %v2808 = vunpack.c.h.b16 %v730
        %v2809 = vunpack.c.l.b16 %v731
        %v2810 = vunpack.c.h.b16 %v731
        %v2811 = vunpack.c.l.b16 %v732
        %v2812 = vunpack.c.h.b16 %v732
        %v2813 = vunpack.c.l.b16 %v733
        %v2814 = vunpack.c.h.b16 %v733
        %v2815 = vunpack.c.l.b16 %v734
        %v2816 = vunpack.c.h.b16 %v734
        %v2817 = vunpack.c.l.b16 %v735
        %v2818 = vunpack.c.h.b16 %v735
        %v2819 = vunpack.c.l.b16 %v736
        %v2820 = vunpack.c.h.b16 %v736
        %v2821 = vunpack.c.l.b16 %v737
        %v2822 = vunpack.c.h.b16 %v737
        %v2823 = vunpack.c.l.b16 %v738
        %v2824 = vunpack.c.h.b16 %v738
        %v2825 = vunpack.c.l.b16 %v739
        %v2826 = vunpack.c.h.b16 %v739
        %v2827 = vunpack.c.l.b16 %v740
        %v2828 = vunpack.c.h.b16 %v740
        %v2829 = vunpack.c.l.b16 %v741
        %v2830 = vunpack.c.h.b16 %v741
        %v2831 = vunpack.c.l.b16 %v742
        %v2832 = vunpack.c.h.b16 %v742
        %v2833 = vunpack.c.l.b16 %v743
        %v2834 = vunpack.c.h.b16 %v743
        %v2835 = vunpack.c.l.b16 %v744
        %v2836 = vunpack.c.h.b16 %v744
        %v2837 = vunpack.c.l.b16 %v745
        %v2838 = vunpack.c.h.b16 %v745
        %v2839 = vunpack.c.l.b16 %v746
        %v2840 = vunpack.c.h.b16 %v746
        %v2841 = vunpack.c.l.b16 %v747
        %v2842 = vunpack.c.h.b16 %v747
        %v2843 = vunpack.c.l.b16 %v748
        %v2844 = vunpack.c.h.b16 %v748
        %v2845 = vunpack.c.l.b16 %v749
        %v2846 = vunpack.c.h.b16 %v749
        %v2847 = vunpack.c.l.b16 %v750
        %v2848 = vunpack.c.h.b16 %v750
        %v2849 = vunpack.c.l.b16 %v751
        %v2850 = vunpack.c.h.b16 %v751
        %v2851 = vunpack.c.l.b16 %v752
        %v2852 = vunpack.c.h.b16 %v752
        %v2853 = vunpack.c.l.b16 %v753
        %v2854 = vunpack.c.h.b16 %v753
        %v2855 = vunpack.c.l.b16 %v754
        %v2856 = vunpack.c.h.b16 %v754
        %v2857 = vunpack.c.l.b16 %v755
        %v2858 = vunpack.c.h.b16 %v755
        %v2859 = vunpack.c.l.b16 %v756
        %v2860 = vunpack.c.h.b16 %v756
        %v2861 = vunpack.c.l.b16 %v757
        %v2862 = vunpack.c.h.b16 %v757
        %v2863 = vunpack.c.l.b16 %v758
        %v2864 = vunpack.c.h.b16 %v758
        %v2865 = vunpack.c.l.b16 %v759
        %v2866 = vunpack.c.h.b16 %v759
        %v2867 = vunpack.c.l.b16 %v760
        %v2868 = vunpack.c.h.b16 %v760
        %v2869 = vunpack.c.l.b16 %v761
        %v2870 = vunpack.c.h.b16 %v761
        %v2871 = vunpack.c.l.b16 %v762
        %v2872 = vunpack.c.h.b16 %v762
        %v2873 = vunpack.c.l.b16 %v763
        %v2874 = vunpack.c.h.b16 %v763
        %v2875 = vunpack.c.l.b16 %v764
        %v2876 = vunpack.c.h.b16 %v764
        %v2877 = vunpack.c.l.b16 %v765
        %v2878 = vunpack.c.h.b16 %v765
        %v2879 = vunpack.c.l.b16 %v766
        %v2880 = vunpack.c.h.b16 %v766
        %v2881 = vunpack.c.l.b16 %v767
        %v2882 = vunpack.c.h.b16 %v767
        %v2883 = vunpack.c.l.b16 %v768
        %v2884 = vunpack.c.h.b16 %v768
        %v2885 = vunpack.c.l.b16 %v769
        %v2886 = vunpack.c.h.b16 %v769
        %v2887 = vunpack.c.l.b16 %v770
        %v2888 = vunpack.c.h.b16 %v770
        %v2889 = vunpack.c.l.b16 %v771
        %v2890 = vunpack.c.h.b16 %v771
        %v2891 = vunpack.c.l.b16 %v772
        %v2892 = vunpack.c.h.b16 %v772
        %v2893 = vunpack.c.l.b16 %v773
        %v2894 = vunpack.c.h.b16 %v773
        %v2895 = vunpack.c.l.b16 %v774
        %v2896 = vunpack.c.h.b16 %v774
        %v2897 = vunpack.c.l.b16 %v775
        %v2898 = vunpack.c.h.b16 %v775
        %v2899 = vunpack.c.l.b16 %v776
        %v2900 = vunpack.c.h.b16 %v776
        %v2901 = vunpack.c.l.b16 %v777
        %v2902 = vunpack.c.h.b16 %v777
        %v2903 = vunpack.c.l.b16 %v778
        %v2904 = vunpack.c.h.b16 %v778
        %v2905 = vunpack.c.l.b16 %v779
        %v2906 = vunpack.c.h.b16 %v779
        %v2907 = vunpack.c.l.b16 %v780
        %v2908 = vunpack.c.h.b16 %v780
        %v2909 = vunpack.c.l.b16 %v781
        %v2910 = vunpack.c.h.b16 %v781
        %v2911 = vunpack.c.l.b16 %v782
        %v2912 = vunpack.c.h.b16 %v782
        %v2913 = vunpack.c.l.b16 %v783
        %v2914 = vunpack.c.h.b16 %v783
        %v2915 = vunpack.c.l.b16 %v784
        %v2916 = vunpack.c.h.b16 %v784
        %v2917 = vunpack.c.l.b16 %v785
        %v2918 = vunpack.c.h.b16 %v785
        %v2919 = vunpack.c.l.b16 %v786
        %v2920 = vunpack.c.h.b16 %v786
        %v2921 = vunpack.c.l.b16 %v787
        %v2922 = vunpack.c.h.b16 %v787
        %v2923 = vunpack.c.l.b16 %v788
        %v2924 = vunpack.c.h.b16 %v788
        %v2925 = vunpack.c.l.b16 %v789
        %v2926 = vunpack.c.h.b16 %v789
        %v2927 = vunpack.c.l.b16 %v790
        %v2928 = vunpack.c.h.b16 %v790
        %v2929 = vunpack.c.l.b16 %v791
        %v2930 = vunpack.c.h.b16 %v791
        %v2931 = vunpack.c.l.b16 %v792
        %v2932 = vunpack.c.h.b16 %v792
        %v2933 = vunpack.c.l.b16 %v793
        %v2934 = vunpack.c.h.b16 %v793
        %v2935 = vunpack.c.l.b16 %v794
        %v2936 = vunpack.c.h.b16 %v794
        %v2937 = vunpack.c.l.b16 %v795
        %v2938 = vunpack.c.h.b16 %v795
        %v2939 = vunpack.c.l.b16 %v796
        %v2940 = vunpack.c.h.b16 %v796
        %v2941 = vunpack.c.l.b16 %v797
        %v2942 = vunpack.c.h.b16 %v797
        %v2943 = vunpack.c.l.b16 %v798
        %v2944 = vunpack.c.h.b16 %v798
        %v2945 = vunpack.c.l.b16 %v799
        %v2946 = vunpack.c.h.b16 %v799
        %v2947 = vunpack.c.l.b16 %v800
        %v2948 = vunpack.c.h.b16 %v800
        %v2949 = vunpack.c.l.b16 %v801
        %v2950 = vunpack.c.h.b16 %v801
        %v2951 = vunpack.c.l.b16 %v802
        %v2952 = vunpack.c.h.b16 %v802
        %v2953 = vunpack.c.l.b16 %v803
        %v2954 = vunpack.c.h.b16 %v803
        %v2955 = vunpack.c.l.b16 %v804
        %v2956 = vunpack.c.h.b16 %v804
        %v2957 = vunpack.c.l.b16 %v805
        %v2958 = vunpack.c.h.b16 %v805
        %v2959 = vunpack.c.l.b16 %v806
        %v2960 = vunpack.c.h.b16 %v806
        %v2961 = vunpack.c.l.b16 %v807
        %v2962 = vunpack.c.h.b16 %v807
        %v2963 = vunpack.c.l.b16 %v808
        %v2964 = vunpack.c.h.b16 %v808
        %v2965 = vunpack.c.l.b16 %v809
        %v2966 = vunpack.c.h.b16 %v809
        %v2967 = vunpack.c.l.b16 %v810
        %v2968 = vunpack.c.h.b16 %v810
        %v2969 = vunpack.c.l.b16 %v811
        %v2970 = vunpack.c.h.b16 %v811
        %v2971 = vunpack.c.l.b16 %v812
        %v2972 = vunpack.c.h.b16 %v812
        %v2973 = vunpack.c.l.b16 %v813
        %v2974 = vunpack.c.h.b16 %v813
        %v2975 = vunpack.c.l.b16 %v814
        %v2976 = vunpack.c.h.b16 %v814
        %v2977 = vunpack.c.l.b16 %v815
        %v2978 = vunpack.c.h.b16 %v815
        %v2979 = vunpack.c.l.b16 %v816
        %v2980 = vunpack.c.h.b16 %v816
        %v2981 = vunpack.c.l.b16 %v817
        %v2982 = vunpack.c.h.b16 %v817
        %v2983 = vunpack.c.l.b16 %v818
        %v2984 = vunpack.c.h.b16 %v818
        %v2985 = vunpack.c.l.b16 %v819
        %v2986 = vunpack.c.h.b16 %v819
        %v2987 = vunpack.c.l.b16 %v820
        %v2988 = vunpack.c.h.b16 %v820
        %v2989 = vunpack.c.l.b16 %v821
        %v2990 = vunpack.c.h.b16 %v821
        %v2991 = vunpack.c.l.b16 %v822
        %v2992 = vunpack.c.h.b16 %v822
        %v2993 = vunpack.c.l.b16 %v823
        %v2994 = vunpack.c.h.b16 %v823
        %v2995 = vunpack.c.l.b16 %v824
        %v2996 = vunpack.c.h.b16 %v824
        %v2997 = vunpack.c.l.b16 %v825
        %v2998 = vunpack.c.h.b16 %v825
        %v2999 = vunpack.c.l.b16 %v826
        %v3000 = vunpack.c.h.b16 %v826
        %v3001 = vunpack.c.l.b16 %v827
        %v3002 = vunpack.c.h.b16 %v827
        %v3003 = vunpack.c.l.b16 %v828
        %v3004 = vunpack.c.h.b16 %v828
        %v3005 = vunpack.c.l.b16 %v829
        %v3006 = vunpack.c.h.b16 %v829
        %v3007 = vunpack.c.l.b16 %v830
        %v3008 = vunpack.c.h.b16 %v830
        %v3009 = vunpack.c.l.b16 %v831
        %v3010 = vunpack.c.h.b16 %v831
        %v3011 = vunpack.c.l.b16 %v832
        %v3012 = vunpack.c.h.b16 %v832
        %v3013 = vunpack.c.l.b16 %v833
        %v3014 = vunpack.c.h.b16 %v833
        %v3015 = vunpack.c.l.b16 %v834
        %v3016 = vunpack.c.h.b16 %v834
        %v3017 = vunpack.c.l.b16 %v835
        %v3018 = vunpack.c.h.b16 %v835
        %v3019 = vunpack.c.l.b16 %v836
        %v3020 = vunpack.c.h.b16 %v836
        %v3021 = vunpack.c.l.b16 %v837
        %v3022 = vunpack.c.h.b16 %v837
        %v3023 = vunpack.c.l.b16 %v838
        %v3024 = vunpack.c.h.b16 %v838
        %v3025 = vunpack.c.l.b16 %v839
        %v3026 = vunpack.c.h.b16 %v839
        %v3027 = vunpack.c.l.b16 %v840
        %v3028 = vunpack.c.h.b16 %v840
        %v3029 = vunpack.c.l.b16 %v841
        %v3030 = vunpack.c.h.b16 %v841
        %v3031 = vunpack.c.l.b16 %v842
        %v3032 = vunpack.c.h.b16 %v842
        %v3033 = vunpack.c.l.b16 %v843
        %v3034 = vunpack.c.h.b16 %v843
        %v3035 = vunpack.c.l.b16 %v844
        %v3036 = vunpack.c.h.b16 %v844
        %v3037 = vunpack.c.l.b16 %v845
        %v3038 = vunpack.c.h.b16 %v845
        %v3039 = vunpack.c.l.b16 %v846
        %v3040 = vunpack.c.h.b16 %v846
        %v3041 = vunpack.c.l.b16 %v847
        %v3042 = vunpack.c.h.b16 %v847
        %v3043 = vunpack.c.l.b16 %v848
        %v3044 = vunpack.c.h.b16 %v848
        %v3045 = vunpack.c.l.b16 %v849
        %v3046 = vunpack.c.h.b16 %v849
        %v3047 = vunpack.c.l.b16 %v850
        %v3048 = vunpack.c.h.b16 %v850
        %v3049 = vunpack.c.l.b16 %v851
        %v3050 = vunpack.c.h.b16 %v851
        %v3051 = vunpack.c.l.b16 %v852
        %v3052 = vunpack.c.h.b16 %v852
        %v3053 = vunpack.c.l.b16 %v853
        %v3054 = vunpack.c.h.b16 %v853
        %v3055 = vunpack.c.l.b16 %v854
        %v3056 = vunpack.c.h.b16 %v854
        %v3057 = vunpack.c.l.b16 %v855
        %v3058 = vunpack.c.h.b16 %v855
        %v3059 = vunpack.c.l.b16 %v856
        %v3060 = vunpack.c.h.b16 %v856
        %v3061 = vunpack.c.l.b16 %v857
        %v3062 = vunpack.c.h.b16 %v857
        %v3063 = vunpack.c.l.b16 %v858
        %v3064 = vunpack.c.h.b16 %v858
        %v3065 = vunpack.c.l.b16 %v859
        %v3066 = vunpack.c.h.b16 %v859
        %v3067 = vunpack.c.l.b16 %v860
        %v3068 = vunpack.c.h.b16 %v860
        %v3069 = vunpack.c.l.b16 %v861
        %v3070 = vunpack.c.h.b16 %v861
        %v3071 = vunpack.c.l.b16 %v862
        %v3072 = vunpack.c.h.b16 %v862
        %v3073 = vunpack.c.l.b16 %v863
        %v3074 = vunpack.c.h.b16 %v863
        %v3075 = vunpack.c.l.b16 %v864
        %v3076 = vunpack.c.h.b16 %v864
        %v3077 = vunpack.c.l.b16 %v865
        %v3078 = vunpack.c.h.b16 %v865
        %v3079 = vunpack.c.l.b16 %v866
        %v3080 = vunpack.c.h.b16 %v866
        %v3081 = vunpack.c.l.b16 %v867
        %v3082 = vunpack.c.h.b16 %v867
        %v3083 = vunpack.c.l.b16 %v868
        %v3084 = vunpack.c.h.b16 %v868
        %v3085 = vunpack.c.l.b16 %v869
        %v3086 = vunpack.c.h.b16 %v869
        %v3087 = vunpack.c.l.b16 %v870
        %v3088 = vunpack.c.h.b16 %v870
        %v3089 = vunpack.c.l.b16 %v871
        %v3090 = vunpack.c.h.b16 %v871
        %v3091 = vunpack.c.l.b16 %v872
        %v3092 = vunpack.c.h.b16 %v872
        %v3093 = vunpack.c.l.b16 %v873
        %v3094 = vunpack.c.h.b16 %v873
        %v3095 = vunpack.c.l.b16 %v874
        %v3096 = vunpack.c.h.b16 %v874
        %v3097 = vunpack.c.l.b16 %v875
        %v3098 = vunpack.c.h.b16 %v875
        %v3099 = vunpack.c.l.b16 %v876
        %v3100 = vunpack.c.h.b16 %v876
        %v3101 = vunpack.c.l.b16 %v877
        %v3102 = vunpack.c.h.b16 %v877
        %v3103 = vunpack.c.l.b16 %v878
        %v3104 = vunpack.c.h.b16 %v878
        %v3105 = vunpack.c.l.b16 %v879
        %v3106 = vunpack.c.h.b16 %v879
        %v3107 = vunpack.c.l.b16 %v880
        %v3108 = vunpack.c.h.b16 %v880
        %v3109 = vunpack.c.l.b16 %v881
        %v3110 = vunpack.c.h.b16 %v881
        %v3111 = vunpack.c.l.b16 %v882
        %v3112 = vunpack.c.h.b16 %v882
        %v3113 = vunpack.c.l.b16 %v883
        %v3114 = vunpack.c.h.b16 %v883
        %v3115 = vunpack.c.l.b16 %v884
        %v3116 = vunpack.c.h.b16 %v884
        %v3117 = vunpack.c.l.b16 %v885
        %v3118 = vunpack.c.h.b16 %v885
        %v3119 = vunpack.c.l.b16 %v886
        %v3120 = vunpack.c.h.b16 %v886
        %v3121 = vunpack.c.l.b16 %v887
        %v3122 = vunpack.c.h.b16 %v887
        %v3123 = vunpack.c.l.b16 %v888
        %v3124 = vunpack.c.h.b16 %v888
        %v3125 = vunpack.c.l.b16 %v889
        %v3126 = vunpack.c.h.b16 %v889
        %v3127 = vunpack.c.l.b16 %v890
        %v3128 = vunpack.c.h.b16 %v890
        %v3129 = vunpack.c.l.b16 %v891
        %v3130 = vunpack.c.h.b16 %v891
        %v3131 = vunpack.c.l.b16 %v892
        %v3132 = vunpack.c.h.b16 %v892
        %v3133 = vunpack.c.l.b16 %v893
        %v3134 = vunpack.c.h.b16 %v893
        %v3135 = vunpack.c.l.b16 %v894
        %v3136 = vunpack.c.h.b16 %v894
        %v3137 = vunpack.c.l.b16 %v895
        %v3138 = vunpack.c.h.b16 %v895
        %v3139 = vunpack.c.l.b16 %v896
        %v3140 = vunpack.c.h.b16 %v896
        %v3141 = vunpack.c.l.b16 %v897
        %v3142 = vunpack.c.h.b16 %v897
        %v3143 = vunpack.c.l.b16 %v898
        %v3144 = vunpack.c.h.b16 %v898
        %v3145 = vunpack.c.l.b16 %v899
        %v3146 = vunpack.c.h.b16 %v899
        %v3147 = vunpack.c.l.b16 %v900
        %v3148 = vunpack.c.h.b16 %v900
        %v3149 = vunpack.c.l.b16 %v901
        %v3150 = vunpack.c.h.b16 %v901
        %v3151 = vunpack.c.l.b16 %v902
        %v3152 = vunpack.c.h.b16 %v902
        %v3153 = vunpack.c.l.b16 %v903
        %v3154 = vunpack.c.h.b16 %v903
        %v3155 = vunpack.c.l.b16 %v904
        %v3156 = vunpack.c.h.b16 %v904
        %v3157 = vunpack.c.l.b16 %v905
        %v3158 = vunpack.c.h.b16 %v905
        %v3159 = vunpack.c.l.b16 %v906
        %v3160 = vunpack.c.h.b16 %v906
        %v3161 = vunpack.c.l.b16 %v907
        %v3162 = vunpack.c.h.b16 %v907
        %v3163 = vunpack.c.l.b16 %v908
        %v3164 = vunpack.c.h.b16 %v908
        %v3165 = vunpack.c.l.b16 %v909
        %v3166 = vunpack.c.h.b16 %v909
        %v3167 = vunpack.c.l.b16 %v910
        %v3168 = vunpack.c.h.b16 %v910
        %v3169 = vunpack.c.l.b16 %v911
        %v3170 = vunpack.c.h.b16 %v911
        %v3171 = vunpack.c.l.b16 %v912
        %v3172 = vunpack.c.h.b16 %v912
        %v3173 = vunpack.c.l.b16 %v913
        %v3174 = vunpack.c.h.b16 %v913
        %v3175 = vunpack.c.l.b16 %v914
        %v3176 = vunpack.c.h.b16 %v914
        %v3177 = vunpack.c.l.b16 %v915
        %v3178 = vunpack.c.h.b16 %v915
        %v3179 = vunpack.c.l.b16 %v916
        %v3180 = vunpack.c.h.b16 %v916
        %v3181 = vunpack.c.l.b16 %v917
        %v3182 = vunpack.c.h.b16 %v917
        %v3183 = vunpack.c.l.b16 %v918
        %v3184 = vunpack.c.h.b16 %v918
        %v3185 = vunpack.c.l.b16 %v919
        %v3186 = vunpack.c.h.b16 %v919
        %v3187 = vunpack.c.l.b16 %v920
        %v3188 = vunpack.c.h.b16 %v920
        %v3189 = vunpack.c.l.b16 %v921
        %v3190 = vunpack.c.h.b16 %v921
        %v3191 = vunpack.c.l.b16 %v922
        %v3192 = vunpack.c.h.b16 %v922
        %v3193 = vunpack.c.l.b16 %v923
        %v3194 = vunpack.c.h.b16 %v923
        %v3195 = vunpack.c.l.b16 %v924
        %v3196 = vunpack.c.h.b16 %v924
        %v3197 = vunpack.c.l.b16 %v925
        %v3198 = vunpack.c.h.b16 %v925
        %v3199 = vunpack.c.l.b16 %v926
        %v3200 = vunpack.c.h.b16 %v926
        %v3201 = vunpack.c.l.b16 %v927
        %v3202 = vunpack.c.h.b16 %v927
        %v3203 = vunpack.c.l.b16 %v928
        %v3204 = vunpack.c.h.b16 %v928
        %v3205 = vunpack.c.l.b16 %v929
        %v3206 = vunpack.c.h.b16 %v929
        %v3207 = vunpack.c.l.b16 %v930
        %v3208 = vunpack.c.h.b16 %v930
        %v3209 = vunpack.c.l.b16 %v931
        %v3210 = vunpack.c.h.b16 %v931
        %v3211 = vunpack.c.l.b16 %v932
        %v3212 = vunpack.c.h.b16 %v932
        %v3213 = vunpack.c.l.b16 %v933
        %v3214 = vunpack.c.h.b16 %v933
        %v3215 = vunpack.c.l.b16 %v934
        %v3216 = vunpack.c.h.b16 %v934
        %v3217 = vunpack.c.l.b16 %v935
        %v3218 = vunpack.c.h.b16 %v935
        %v3219 = vunpack.c.l.b16 %v936
        %v3220 = vunpack.c.h.b16 %v936
        %v3221 = vunpack.c.l.b16 %v937
        %v3222 = vunpack.c.h.b16 %v937
        %v3223 = vunpack.c.l.b16 %v938
        %v3224 = vunpack.c.h.b16 %v938
        %v3225 = vunpack.c.l.b16 %v939
        %v3226 = vunpack.c.h.b16 %v939
        %v3227 = vunpack.c.l.b16 %v940
        %v3228 = vunpack.c.h.b16 %v940
        %v3229 = vunpack.c.l.b16 %v941
        %v3230 = vunpack.c.h.b16 %v941
        %v3231 = vunpack.c.l.b16 %v942
        %v3232 = vunpack.c.h.b16 %v942
        %v3233 = vunpack.c.l.b16 %v943
        %v3234 = vunpack.c.h.b16 %v943
        %v3235 = vunpack.c.l.b16 %v944
        %v3236 = vunpack.c.h.b16 %v944
        %v3237 = vunpack.c.l.b16 %v945
        %v3238 = vunpack.c.h.b16 %v945
        %v3239 = vunpack.c.l.b16 %v946
        %v3240 = vunpack.c.h.b16 %v946
        %v3241 = vunpack.c.l.b16 %v947
        %v3242 = vunpack.c.h.b16 %v947
        %v3243 = vunpack.c.l.b16 %v948
        %v3244 = vunpack.c.h.b16 %v948
        %v3245 = vunpack.c.l.b16 %v949
        %v3246 = vunpack.c.h.b16 %v949
        %v3247 = vunpack.c.l.b16 %v950
        %v3248 = vunpack.c.h.b16 %v950
        %v3249 = vunpack.c.l.b16 %v951
        %v3250 = vunpack.c.h.b16 %v951
        %v3251 = vunpack.c.l.b16 %v952
        %v3252 = vunpack.c.h.b16 %v952
        %v3253 = vunpack.c.l.b16 %v953
        %v3254 = vunpack.c.h.b16 %v953
        %v3255 = vunpack.c.l.b16 %v954
        %v3256 = vunpack.c.h.b16 %v954
        %v3257 = vunpack.c.l.b16 %v955
        %v3258 = vunpack.c.h.b16 %v955
        %v3259 = vunpack.c.l.b16 %v956
        %v3260 = vunpack.c.h.b16 %v956
        %v3261 = vunpack.c.l.b16 %v957
        %v3262 = vunpack.c.h.b16 %v957
        %v3263 = vunpack.c.l.b16 %v958
        %v3264 = vunpack.c.h.b16 %v958
        %v3265 = vunpack.c.l.b16 %v959
        %v3266 = vunpack.c.h.b16 %v959
        %v3267 = vunpack.c.l.b16 %v960
        %v3268 = vunpack.c.h.b16 %v960
        %v3269 = vunpack.c.l.b16 %v961
        %v3270 = vunpack.c.h.b16 %v961
        %v3271 = vunpack.c.l.b16 %v962
        %v3272 = vunpack.c.h.b16 %v962
        %v3273 = vunpack.c.l.b16 %v963
        %v3274 = vunpack.c.h.b16 %v963
        %v3275 = vunpack.c.l.b16 %v964
        %v3276 = vunpack.c.h.b16 %v964
        %v3277 = vunpack.c.l.b16 %v965
        %v3278 = vunpack.c.h.b16 %v965
        %v3279 = vunpack.c.l.b16 %v966
        %v3280 = vunpack.c.h.b16 %v966
        %v3281 = vunpack.c.l.b16 %v967
        %v3282 = vunpack.c.h.b16 %v967
        %v3283 = vunpack.c.l.b16 %v968
        %v3284 = vunpack.c.h.b16 %v968
        %v3285 = vunpack.c.l.b16 %v969
        %v3286 = vunpack.c.h.b16 %v969
        %v3287 = vunpack.c.l.b16 %v970
        %v3288 = vunpack.c.h.b16 %v970
        %v3289 = vunpack.c.l.b16 %v971
        %v3290 = vunpack.c.h.b16 %v971
        %v3291 = vunpack.c.l.b16 %v972
        %v3292 = vunpack.c.h.b16 %v972
        %v3293 = vunpack.c.l.b16 %v973
        %v3294 = vunpack.c.h.b16 %v973
        %v3295 = vunpack.c.l.b16 %v974
        %v3296 = vunpack.c.h.b16 %v974
        %v3297 = vunpack.c.l.b16 %v975
        %v3298 = vunpack.c.h.b16 %v975
        %v3299 = vunpack.c.l.b16 %v976
        %v3300 = vunpack.c.h.b16 %v976
        %v3301 = vunpack.c.l.b16 %v977
        %v3302 = vunpack.c.h.b16 %v977
        %v3303 = vunpack.c.l.b16 %v978
        %v3304 = vunpack.c.h.b16 %v978
        %v3305 = vunpack.c.l.b16 %v979
        %v3306 = vunpack.c.h.b16 %v979
        %v3307 = vunpack.c.l.b16 %v980
        %v3308 = vunpack.c.h.b16 %v980
        %v3309 = vunpack.c.l.b16 %v981
        %v3310 = vunpack.c.h.b16 %v981
        %v3311 = vunpack.c.l.b16 %v982
        %v3312 = vunpack.c.h.b16 %v982
        %v3313 = vunpack.c.l.b16 %v983
        %v3314 = vunpack.c.h.b16 %v983
        %v3315 = vunpack.c.l.b16 %v984
        %v3316 = vunpack.c.h.b16 %v984
        %v3317 = vunpack.c.l.b16 %v985
        %v3318 = vunpack.c.h.b16 %v985
        %v3319 = vunpack.c.l.b16 %v986
        %v3320 = vunpack.c.h.b16 %v986
        %v3321 = vunpack.c.l.b16 %v987
        %v3322 = vunpack.c.h.b16 %v987
        %v3323 = vunpack.c.l.b16 %v988
        %v3324 = vunpack.c.h.b16 %v988
        %v3325 = vunpack.c.l.b16 %v989
        %v3326 = vunpack.c.h.b16 %v989
        %v3327 = vunpack.c.l.b16 %v990
        %v3328 = vunpack.c.h.b16 %v990
        %v3329 = vunpack.c.l.b16 %v991
        %v3330 = vunpack.c.h.b16 %v991
        %v3331 = vunpack.c.l.b16 %v992
        %v3332 = vunpack.c.h.b16 %v992
        %v3333 = vunpack.c.l.b16 %v993
        %v3334 = vunpack.c.h.b16 %v993
        %v3335 = vunpack.c.l.b16 %v994
        %v3336 = vunpack.c.h.b16 %v994
        %v3337 = vunpack.c.l.b16 %v995
        %v3338 = vunpack.c.h.b16 %v995
        %v3339 = vunpack.c.l.b16 %v996
        %v3340 = vunpack.c.h.b16 %v996
        %v3341 = vunpack.c.l.b16 %v997
        %v3342 = vunpack.c.h.b16 %v997
        %v3343 = vunpack.c.l.b16 %v998
        %v3344 = vunpack.c.h.b16 %v998
        %v3345 = vunpack.c.l.b16 %v999
        %v3346 = vunpack.c.h.b16 %v999
        %v3347 = vunpack.c.l.b16 %v1000
        %v3348 = vunpack.c.h.b16 %v1000
        %v3349 = vunpack.c.l.b16 %v1001
        %v3350 = vunpack.c.h.b16 %v1001
        %v3351 = vunpack.c.l.b16 %v1002
        %v3352 = vunpack.c.h.b16 %v1002
        %v3353 = vunpack.c.l.b16 %v1003
        %v3354 = vunpack.c.h.b16 %v1003
        %v3355 = vunpack.c.l.b16 %v1004
        %v3356 = vunpack.c.h.b16 %v1004
        %v3357 = vunpack.c.l.b16 %v1005
        %v3358 = vunpack.c.h.b16 %v1005
        %v3359 = vunpack.c.l.b16 %v1006
        %v3360 = vunpack.c.h.b16 %v1006
        %v3361 = vunpack.c.l.b16 %v1007
        %v3362 = vunpack.c.h.b16 %v1007
        %v3363 = vunpack.c.l.b16 %v1008
        %v3364 = vunpack.c.h.b16 %v1008
        %v3365 = vunpack.c.l.b16 %v1009
        %v3366 = vunpack.c.h.b16 %v1009
        %v3367 = vunpack.c.l.b16 %v1010
        %v3368 = vunpack.c.h.b16 %v1010
        %v3369 = vunpack.c.l.b16 %v1011
        %v3370 = vunpack.c.h.b16 %v1011
        %v3371 = vunpack.c.l.b16 %v1012
        %v3372 = vunpack.c.h.b16 %v1012
        %v3373 = vunpack.c.l.b16 %v1013
        %v3374 = vunpack.c.h.b16 %v1013
        %v3375 = vunpack.c.l.b16 %v1014
        %v3376 = vunpack.c.h.b16 %v1014
        %v3377 = vunpack.c.l.b16 %v1015
        %v3378 = vunpack.c.h.b16 %v1015
        %v3379 = vunpack.c.l.b16 %v1016
        %v3380 = vunpack.c.h.b16 %v1016
        %v3381 = vunpack.c.l.b16 %v1017
        %v3382 = vunpack.c.h.b16 %v1017
        %v3383 = vunpack.c.l.b16 %v1018
        %v3384 = vunpack.c.h.b16 %v1018
        %v3385 = vunpack.c.l.b16 %v1019
        %v3386 = vunpack.c.h.b16 %v1019
        %v3387 = vunpack.c.l.b16 %v1020
        %v3388 = vunpack.c.h.b16 %v1020
        %v3389 = vunpack.c.l.b16 %v1021
        %v3390 = vunpack.c.h.b16 %v1021
        %v3391 = vunpack.c.l.b16 %v1022
        %v3392 = vunpack.c.h.b16 %v1022
        %v3393 = vunpack.c.l.b16 %v1023
        %v3394 = vunpack.c.h.b16 %v1023
        %v3395 = vunpack.c.l.b16 %v1024
        %v3396 = vunpack.c.h.b16 %v1024
        %v3397 = vunpack.c.l.b16 %v1025
        %v3398 = vunpack.c.h.b16 %v1025
        %v3399 = vunpack.c.l.b16 %v1026
        %v3400 = vunpack.c.h.b16 %v1026
        %v3401 = vunpack.c.l.b16 %v1027
        %v3402 = vunpack.c.h.b16 %v1027
        %v3403 = vunpack.c.l.b16 %v1028
        %v3404 = vunpack.c.h.b16 %v1028
        %v3405 = vunpack.c.l.b16 %v1029
        %v3406 = vunpack.c.h.b16 %v1029
        %v3407 = vunpack.c.l.b16 %v1030
        %v3408 = vunpack.c.h.b16 %v1030
        %v3409 = vunpack.c.l.b16 %v1031
        %v3410 = vunpack.c.h.b16 %v1031
        %v3411 = vunpack.c.l.b16 %v1032
        %v3412 = vunpack.c.h.b16 %v1032
        %v3413 = vunpack.c.l.b16 %v1033
        %v3414 = vunpack.c.h.b16 %v1033
        %v3415 = vunpack.c.l.b16 %v1034
        %v3416 = vunpack.c.h.b16 %v1034
        %v3417 = vunpack.c.l.b16 %v1035
        %v3418 = vunpack.c.h.b16 %v1035
        %v3419 = vunpack.c.l.b16 %v1036
        %v3420 = vunpack.c.h.b16 %v1036
        %v3421 = vunpack.c.l.b16 %v1037
        %v3422 = vunpack.c.h.b16 %v1037
        %v3423 = vunpack.c.l.b16 %v1038
        %v3424 = vunpack.c.h.b16 %v1038
        %v3425 = vunpack.c.l.b16 %v1039
        %v3426 = vunpack.c.h.b16 %v1039
        %v3427 = vunpack.c.l.b16 %v1040
        %v3428 = vunpack.c.h.b16 %v1040
        %v3429 = vunpack.c.l.b16 %v1041
        %v3430 = vunpack.c.h.b16 %v1041
        %v3431 = vunpack.c.l.b16 %v1042
        %v3432 = vunpack.c.h.b16 %v1042
        %v3433 = vunpack.c.l.b16 %v1043
        %v3434 = vunpack.c.h.b16 %v1043
        %v3435 = vunpack.c.l.b16 %v1044
        %v3436 = vunpack.c.h.b16 %v1044
        %v3437 = vunpack.c.l.b16 %v1045
        %v3438 = vunpack.c.h.b16 %v1045
        %v3439 = vunpack.c.l.b16 %v1046
        %v3440 = vunpack.c.h.b16 %v1046
        %v3441 = vunpack.c.l.b16 %v1047
        %v3442 = vunpack.c.h.b16 %v1047
        %v3443 = vunpack.c.l.b16 %v1048
        %v3444 = vunpack.c.h.b16 %v1048
        %v3445 = vunpack.c.l.b16 %v1049
        %v3446 = vunpack.c.h.b16 %v1049
        %v3447 = vunpack.c.l.b16 %v1050
        %v3448 = vunpack.c.h.b16 %v1050
        %v3449 = vunpack.c.l.b16 %v1051
        %v3450 = vunpack.c.h.b16 %v1051
        %v3451 = vunpack.c.l.b16 %v1052
        %v3452 = vunpack.c.h.b16 %v1052
        %v3453 = vunpack.c.l.b16 %v1053
        %v3454 = vunpack.c.h.b16 %v1053
        %v3455 = vunpack.c.l.b16 %v1054
        %v3456 = vunpack.c.h.b16 %v1054
        %v3457 = vunpack.c.l.b16 %v1055
        %v3458 = vunpack.c.h.b16 %v1055
        %v3459 = vunpack.c.l.b16 %v1056
        %v3460 = vunpack.c.h.b16 %v1056
        %v3461 = vunpack.c.l.b16 %v1057
        %v3462 = vunpack.c.h.b16 %v1057
        %v3463 = vunpack.c.l.b16 %v1058
        %v3464 = vunpack.c.h.b16 %v1058
        %v3465 = vunpack.c.l.b16 %v1059
        %v3466 = vunpack.c.h.b16 %v1059
        %v3467 = vunpack.c.l.b16 %v1060
        %v3468 = vunpack.c.h.b16 %v1060
        %v3469 = vunpack.c.l.b16 %v1061
        %v3470 = vunpack.c.h.b16 %v1061
        %v3471 = vunpack.c.l.b16 %v1062
        %v3472 = vunpack.c.h.b16 %v1062
        %v3473 = vunpack.c.l.b16 %v1063
        %v3474 = vunpack.c.h.b16 %v1063
        %v3475 = vunpack.c.l.b16 %v1064
        %v3476 = vunpack.c.h.b16 %v1064
        %v3477 = vunpack.c.l.b16 %v1065
        %v3478 = vunpack.c.h.b16 %v1065
        %v3479 = vunpack.c.l.b16 %v1066
        %v3480 = vunpack.c.h.b16 %v1066
        %v3481 = vunpack.c.l.b16 %v1067
        %v3482 = vunpack.c.h.b16 %v1067
        %v3483 = vunpack.c.l.b16 %v1068
        %v3484 = vunpack.c.h.b16 %v1068
        %v3485 = vunpack.c.l.b16 %v1069
        %v3486 = vunpack.c.h.b16 %v1069
        %v3487 = vunpack.c.l.b16 %v1070
        %v3488 = vunpack.c.h.b16 %v1070
        %v3489 = vunpack.c.l.b16 %v1071
        %v3490 = vunpack.c.h.b16 %v1071
        %v3491 = vunpack.c.l.b16 %v1072
        %v3492 = vunpack.c.h.b16 %v1072
        %v3493 = vunpack.c.l.b16 %v1073
        %v3494 = vunpack.c.h.b16 %v1073
        %v3495 = vunpack.c.l.b16 %v1074
        %v3496 = vunpack.c.h.b16 %v1074
        %v3497 = vunpack.c.l.b16 %v1075
        %v3498 = vunpack.c.h.b16 %v1075
        %v3499 = vunpack.c.l.b16 %v1076
        %v3500 = vunpack.c.h.b16 %v1076
        %v3501 = vunpack.c.l.b16 %v1077
        %v3502 = vunpack.c.h.b16 %v1077
        %v3503 = vunpack.c.l.b16 %v1078
        %v3504 = vunpack.c.h.b16 %v1078
        %v3505 = vunpack.c.l.b16 %v1079
        %v3506 = vunpack.c.h.b16 %v1079
        %v3507 = vunpack.c.l.b16 %v1080
        %v3508 = vunpack.c.h.b16 %v1080
        %v3509 = vunpack.c.l.b16 %v1081
        %v3510 = vunpack.c.h.b16 %v1081
        %v3511 = vunpack.c.l.b16 %v1082
        %v3512 = vunpack.c.h.b16 %v1082
        %v3513 = vunpack.c.l.b16 %v1083
        %v3514 = vunpack.c.h.b16 %v1083
        %v3515 = vunpack.c.l.b16 %v1084
        %v3516 = vunpack.c.h.b16 %v1084
        %v3517 = vunpack.c.l.b16 %v1085
        %v3518 = vunpack.c.h.b16 %v1085
        %v3519 = vunpack.c.l.b16 %v1086
        %v3520 = vunpack.c.h.b16 %v1086
        %v3521 = vunpack.c.l.b16 %v1087
        %v3522 = vunpack.c.h.b16 %v1087
        %v3523 = vunpack.c.l.b16 %v1088
        %v3524 = vunpack.c.h.b16 %v1088
        %v3525 = vunpack.c.l.b16 %v1089
        %v3526 = vunpack.c.h.b16 %v1089
        %v3527 = vunpack.c.l.b16 %v1090
        %v3528 = vunpack.c.h.b16 %v1090
        %v3529 = vunpack.c.l.b16 %v1091
        %v3530 = vunpack.c.h.b16 %v1091
        %v3531 = vunpack.c.l.b16 %v1092
        %v3532 = vunpack.c.h.b16 %v1092
        %v3533 = vunpack.c.l.b16 %v1093
        %v3534 = vunpack.c.h.b16 %v1093
        %v3535 = vunpack.c.l.b16 %v1094
        %v3536 = vunpack.c.h.b16 %v1094
        %v3537 = vunpack.c.l.b16 %v1095
        %v3538 = vunpack.c.h.b16 %v1095
        %v3539 = vunpack.c.l.b16 %v1096
        %v3540 = vunpack.c.h.b16 %v1096
        %v3541 = vunpack.c.l.b16 %v1097
        %v3542 = vunpack.c.h.b16 %v1097
        %v3543 = vunpack.c.l.b16 %v1098
        %v3544 = vunpack.c.h.b16 %v1098
        %v3545 = vunpack.c.l.b16 %v1099
        %v3546 = vunpack.c.h.b16 %v1099
        %v3547 = vunpack.c.l.b16 %v1100
        %v3548 = vunpack.c.h.b16 %v1100
        %v3549 = vunpack.c.l.b16 %v1101
        %v3550 = vunpack.c.h.b16 %v1101
        %v3551 = vunpack.c.l.b16 %v1102
        %v3552 = vunpack.c.h.b16 %v1102
        %v3553 = vunpack.c.l.b16 %v1103
        %v3554 = vunpack.c.h.b16 %v1103
        %v3555 = vunpack.c.l.b16 %v1104
        %v3556 = vunpack.c.h.b16 %v1104
        %v3557 = vunpack.c.l.b16 %v1105
        %v3558 = vunpack.c.h.b16 %v1105
        %v3559 = vunpack.c.l.b16 %v1106
        %v3560 = vunpack.c.h.b16 %v1106
        %v3561 = vunpack.c.l.b16 %v1107
        %v3562 = vunpack.c.h.b16 %v1107
        %v3563 = vunpack.c.l.b16 %v1108
        %v3564 = vunpack.c.h.b16 %v1108
        %v3565 = vunpack.c.l.b16 %v1109
        %v3566 = vunpack.c.h.b16 %v1109
        %v3567 = vunpack.c.l.b16 %v1110
        %v3568 = vunpack.c.h.b16 %v1110
        %v3569 = vunpack.c.l.b16 %v1111
        %v3570 = vunpack.c.h.b16 %v1111
        %v3571 = vunpack.c.l.b16 %v1112
        %v3572 = vunpack.c.h.b16 %v1112
        %v3573 = vunpack.c.l.b16 %v1113
        %v3574 = vunpack.c.h.b16 %v1113
        %v3575 = vunpack.c.l.b16 %v1114
        %v3576 = vunpack.c.h.b16 %v1114
        %v3577 = vunpack.c.l.b16 %v1115
        %v3578 = vunpack.c.h.b16 %v1115
        %v3579 = vunpack.c.l.b16 %v1116
        %v3580 = vunpack.c.h.b16 %v1116
        %v3581 = vunpack.c.l.b16 %v1117
        %v3582 = vunpack.c.h.b16 %v1117
        %v3583 = vunpack.c.l.b16 %v1118
        %v3584 = vunpack.c.h.b16 %v1118
        %v3585 = vunpack.c.l.b16 %v1119
        %v3586 = vunpack.c.h.b16 %v1119
        %v3587 = vunpack.c.l.b16 %v1120
        %v3588 = vunpack.c.h.b16 %v1120
        %v3589 = vunpack.c.l.b16 %v1121
        %v3590 = vunpack.c.h.b16 %v1121
        %v3591 = vunpack.c.l.b16 %v1122
        %v3592 = vunpack.c.h.b16 %v1122
        %v3593 = vunpack.c.l.b16 %v1123
        %v3594 = vunpack.c.h.b16 %v1123
        %v3595 = vunpack.c.l.b16 %v1124
        %v3596 = vunpack.c.h.b16 %v1124
        %v3597 = vunpack.c.l.b16 %v1125
        %v3598 = vunpack.c.h.b16 %v1125
        %v3599 = vunpack.c.l.b16 %v1126
        %v3600 = vunpack.c.h.b16 %v1126
        %v3601 = vunpack.c.l.b16 %v1127
        %v3602 = vunpack.c.h.b16 %v1127
        %v3603 = vunpack.c.l.b16 %v1128
        %v3604 = vunpack.c.h.b16 %v1128
        %v3605 = vunpack.c.l.b16 %v1129
        %v3606 = vunpack.c.h.b16 %v1129
        %v3607 = vunpack.c.l.b16 %v1130
        %v3608 = vunpack.c.h.b16 %v1130
        %v3609 = vunpack.c.l.b16 %v1131
        %v3610 = vunpack.c.h.b16 %v1131
        %v3611 = vunpack.c.l.b16 %v1132
        %v3612 = vunpack.c.h.b16 %v1132
        %v3613 = vunpack.c.l.b16 %v1133
        %v3614 = vunpack.c.h.b16 %v1133
        %v3615 = vunpack.c.l.b16 %v1134
        %v3616 = vunpack.c.h.b16 %v1134
        %v3617 = vunpack.c.l.b16 %v1135
        %v3618 = vunpack.c.h.b16 %v1135
        %v3619 = vunpack.c.l.b16 %v1136
        %v3620 = vunpack.c.h.b16 %v1136
        %v3621 = vunpack.c.l.b16 %v1137
        %v3622 = vunpack.c.h.b16 %v1137
        %v3623 = vunpack.c.l.b16 %v1138
        %v3624 = vunpack.c.h.b16 %v1138
        %v3625 = vunpack.c.l.b16 %v1139
        %v3626 = vunpack.c.h.b16 %v1139
        %v3627 = vunpack.c.l.b16 %v1140
        %v3628 = vunpack.c.h.b16 %v1140
        %v3629 = vunpack.c.l.b16 %v1141
        %v3630 = vunpack.c.h.b16 %v1141
        %v3631 = vunpack.c.l.b16 %v1142
        %v3632 = vunpack.c.h.b16 %v1142
        %v3633 = vunpack.c.l.b16 %v1143
        %v3634 = vunpack.c.h.b16 %v1143
        %v3635 = vunpack.c.l.b16 %v1144
        %v3636 = vunpack.c.h.b16 %v1144
        %v3637 = vunpack.c.l.b16 %v1145
        %v3638 = vunpack.c.h.b16 %v1145
        %v3639 = vunpack.c.l.b16 %v1146
        %v3640 = vunpack.c.h.b16 %v1146
        %v3641 = vunpack.c.l.b16 %v1147
        %v3642 = vunpack.c.h.b16 %v1147
        %v3643 = vunpack.c.l.b16 %v1148
        %v3644 = vunpack.c.h.b16 %v1148
        %v3645 = vunpack.c.l.b16 %v1149
        %v3646 = vunpack.c.h.b16 %v1149
        %v3647 = vunpack.c.l.b16 %v1150
        %v3648 = vunpack.c.h.b16 %v1150
        %v3649 = vunpack.c.l.b16 %v1151
        %v3650 = vunpack.c.h.b16 %v1151
        %v3651 = vunpack.c.l.b16 %v1152
        %v3652 = vunpack.c.h.b16 %v1152
        %v3653 = vunpack.c.l.b16 %v1153
        %v3654 = vunpack.c.h.b16 %v1153
        %v3655 = vunpack.c.l.b16 %v1154
        %v3656 = vunpack.c.h.b16 %v1154
        %v3657 = vunpack.c.l.b16 %v1155
        %v3658 = vunpack.c.h.b16 %v1155
        %v3659 = vunpack.c.l.b16 %v1156
        %v3660 = vunpack.c.h.b16 %v1156
        %v3661 = vunpack.c.l.b16 %v1157
        %v3662 = vunpack.c.h.b16 %v1157
        %v3663 = vunpack.c.l.b16 %v1158
        %v3664 = vunpack.c.h.b16 %v1158
        %v3665 = vunpack.c.l.b16 %v1159
        %v3666 = vunpack.c.h.b16 %v1159
        %v3667 = vunpack.c.l.b16 %v1160
        %v3668 = vunpack.c.h.b16 %v1160
        %v3669 = vunpack.c.l.b16 %v1161
        %v3670 = vunpack.c.h.b16 %v1161
        %v3671 = vunpack.c.l.b16 %v1162
        %v3672 = vunpack.c.h.b16 %v1162
        %v3673 = vunpack.c.l.b16 %v1163
        %v3674 = vunpack.c.h.b16 %v1163
        %v3675 = vunpack.c.l.b16 %v1164
        %v3676 = vunpack.c.h.b16 %v1164
        %v3677 = vunpack.c.l.b16 %v1165
        %v3678 = vunpack.c.h.b16 %v1165
        %v3679 = vunpack.c.l.b16 %v1166
        %v3680 = vunpack.c.h.b16 %v1166
        %v3681 = vunpack.c.l.b16 %v1167
        %v3682 = vunpack.c.h.b16 %v1167
        %v3683 = vunpack.c.l.b16 %v1168
        %v3684 = vunpack.c.h.b16 %v1168
        %v3685 = vunpack.c.l.b16 %v1169
        %v3686 = vunpack.c.h.b16 %v1169
        %v3687 = vunpack.c.l.b16 %v1170
        %v3688 = vunpack.c.h.b16 %v1170
        %v3689 = vunpack.c.l.b16 %v1171
        %v3690 = vunpack.c.h.b16 %v1171
        %v3691 = vunpack.c.l.b16 %v1172
        %v3692 = vunpack.c.h.b16 %v1172
        %v3693 = vunpack.c.l.b16 %v1173
        %v3694 = vunpack.c.h.b16 %v1173
        %v3695 = vunpack.c.l.b16 %v1174
        %v3696 = vunpack.c.h.b16 %v1174
        %v3697 = vunpack.c.l.b16 %v1175
        %v3698 = vunpack.c.h.b16 %v1175
        %v3699 = vunpack.c.l.b16 %v1176
        %v3700 = vunpack.c.h.b16 %v1176
        %v3701 = vunpack.c.l.b16 %v1177
        %v3702 = vunpack.c.h.b16 %v1177
        %v3703 = vunpack.c.l.b16 %v1178
        %v3704 = vunpack.c.h.b16 %v1178
        %v3705 = vunpack.c.l.b16 %v1179
        %v3706 = vunpack.c.h.b16 %v1179
        %v3707 = vunpack.c.l.b16 %v1180
        %v3708 = vunpack.c.h.b16 %v1180
        %v3709 = vunpack.c.l.b16 %v1181
        %v3710 = vunpack.c.h.b16 %v1181
        %v3711 = vunpack.c.l.b16 %v1182
        %v3712 = vunpack.c.h.b16 %v1182
        %v3713 = vunpack.c.l.b16 %v1183
        %v3714 = vunpack.c.h.b16 %v1183
        %v3715 = vunpack.c.l.b16 %v1184
        %v3716 = vunpack.c.h.b16 %v1184
        %v3717 = vunpack.c.l.b16 %v1185
        %v3718 = vunpack.c.h.b16 %v1185
        %v3719 = vunpack.c.l.b16 %v1186
        %v3720 = vunpack.c.h.b16 %v1186
        %v3721 = vunpack.c.l.b16 %v1187
        %v3722 = vunpack.c.h.b16 %v1187
        %v3723 = vunpack.c.l.b16 %v1188
        %v3724 = vunpack.c.h.b16 %v1188
        %v3725 = vunpack.c.l.b16 %v1189
        %v3726 = vunpack.c.h.b16 %v1189
        %v3727 = vunpack.c.l.b16 %v1190
        %v3728 = vunpack.c.h.b16 %v1190
        %v3729 = vunpack.c.l.b16 %v1191
        %v3730 = vunpack.c.h.b16 %v1191
        %v3731 = vunpack.c.l.b16 %v1192
        %v3732 = vunpack.c.h.b16 %v1192
        %v3733 = vunpack.c.l.b16 %v1193
        %v3734 = vunpack.c.h.b16 %v1193
        %v3735 = vunpack.c.l.b16 %v1194
        %v3736 = vunpack.c.h.b16 %v1194
        %v3737 = vunpack.c.l.b16 %v1195
        %v3738 = vunpack.c.h.b16 %v1195
        %v3739 = vunpack.c.l.b16 %v1196
        %v3740 = vunpack.c.h.b16 %v1196
        %v3741 = vunpack.c.l.b16 %v1197
        %v3742 = vunpack.c.h.b16 %v1197
        %v3743 = vunpack.c.l.b16 %v1198
        %v3744 = vunpack.c.h.b16 %v1198
        %v3745 = vunpack.c.l.b16 %v1199
        %v3746 = vunpack.c.h.b16 %v1199
        %v3747 = vunpack.c.l.b16 %v1200
        %v3748 = vunpack.c.h.b16 %v1200
        %v3749 = vunpack.c.l.b16 %v1201
        %v3750 = vunpack.c.h.b16 %v1201
        %v3751 = vunpack.c.l.b16 %v1202
        %v3752 = vunpack.c.h.b16 %v1202
        %v3753 = vunpack.c.l.b16 %v1203
        %v3754 = vunpack.c.h.b16 %v1203
        %v3755 = vunpack.c.l.b16 %v1204
        %v3756 = vunpack.c.h.b16 %v1204
        %v3757 = vunpack.c.l.b16 %v1205
        %v3758 = vunpack.c.h.b16 %v1205
        %v3759 = vunpack.c.l.b16 %v1206
        %v3760 = vunpack.c.h.b16 %v1206
        %v3761 = vunpack.c.l.b16 %v1207
        %v3762 = vunpack.c.h.b16 %v1207
        %v3763 = vunpack.c.l.b16 %v1208
        %v3764 = vunpack.c.h.b16 %v1208
        %v3765 = vunpack.c.l.b16 %v1209
        %v3766 = vunpack.c.h.b16 %v1209
        %v3767 = vunpack.c.l.b16 %v1210
        %v3768 = vunpack.c.h.b16 %v1210
        %v3769 = vunpack.c.l.b16 %v1211
        %v3770 = vunpack.c.h.b16 %v1211
        %v3771 = vunpack.c.l.b16 %v1212
        %v3772 = vunpack.c.h.b16 %v1212
        %v3773 = vunpack.c.l.b16 %v1213
        %v3774 = vunpack.c.h.b16 %v1213
        %v3775 = vunpack.c.l.b16 %v1214
        %v3776 = vunpack.c.h.b16 %v1214
        %v3777 = vunpack.c.l.b16 %v1215
        %v3778 = vunpack.c.h.b16 %v1215
        %v3779 = vunpack.c.l.b16 %v1216
        %v3780 = vunpack.c.h.b16 %v1216
        %v3781 = vunpack.c.l.b16 %v1217
        %v3782 = vunpack.c.h.b16 %v1217
        %v3783 = vunpack.c.l.b16 %v1218
        %v3784 = vunpack.c.h.b16 %v1218
        %v3785 = vunpack.c.l.b16 %v1219
        %v3786 = vunpack.c.h.b16 %v1219
        %v3787 = vunpack.c.l.b16 %v1220
        %v3788 = vunpack.c.h.b16 %v1220
        %v3789 = vunpack.c.l.b16 %v1221
        %v3790 = vunpack.c.h.b16 %v1221
        %v3791 = vunpack.c.l.b16 %v1222
        %v3792 = vunpack.c.h.b16 %v1222
        %v3793 = vunpack.c.l.b16 %v1223
        %v3794 = vunpack.c.h.b16 %v1223
        %v3795 = vunpack.c.l.b16 %v1224
        %v3796 = vunpack.c.h.b16 %v1224
        %v3797 = vunpack.c.l.b16 %v1225
        %v3798 = vunpack.c.h.b16 %v1225
        %v3799 = vunpack.c.l.b16 %v1226
        %v3800 = vunpack.c.h.b16 %v1226
        %v3801 = vunpack.c.l.b16 %v1227
        %v3802 = vunpack.c.h.b16 %v1227
        %v3803 = vunpack.c.l.b16 %v1228
        %v3804 = vunpack.c.h.b16 %v1228
        %v3805 = vunpack.c.l.b16 %v1229
        %v3806 = vunpack.c.h.b16 %v1229
        %v3807 = vunpack.c.l.b16 %v1230
        %v3808 = vunpack.c.h.b16 %v1230
        %v3809 = vunpack.c.l.b16 %v1231
        %v3810 = vunpack.c.h.b16 %v1231
        %v3811 = vunpack.c.l.b16 %v1232
        %v3812 = vunpack.c.h.b16 %v1232
        %v3813 = vunpack.c.l.b16 %v1233
        %v3814 = vunpack.c.h.b16 %v1233
        %v3815 = vunpack.c.l.b16 %v1234
        %v3816 = vunpack.c.h.b16 %v1234
        %v3817 = vunpack.c.l.b16 %v1235
        %v3818 = vunpack.c.h.b16 %v1235
        %v3819 = vunpack.c.l.b16 %v1236
        %v3820 = vunpack.c.h.b16 %v1236
        %v3821 = vunpack.c.l.b16 %v1237
        %v3822 = vunpack.c.h.b16 %v1237
        %v3823 = vunpack.c.l.b16 %v1238
        %v3824 = vunpack.c.h.b16 %v1238
        %v3825 = vunpack.c.l.b16 %v1239
        %v3826 = vunpack.c.h.b16 %v1239
        %v3827 = vunpack.c.l.b16 %v1240
        %v3828 = vunpack.c.h.b16 %v1240
        %v3829 = vunpack.c.l.b16 %v1241
        %v3830 = vunpack.c.h.b16 %v1241
        %v3831 = vunpack.c.l.b16 %v1242
        %v3832 = vunpack.c.h.b16 %v1242
        %v3833 = vunpack.c.l.b16 %v1243
        %v3834 = vunpack.c.h.b16 %v1243
        %v3835 = vunpack.c.l.b16 %v1244
        %v3836 = vunpack.c.h.b16 %v1244
        %v3837 = vunpack.c.l.b16 %v1245
        %v3838 = vunpack.c.h.b16 %v1245
        %v3839 = vunpack.c.l.b16 %v1246
        %v3840 = vunpack.c.h.b16 %v1246
        %v3841 = vunpack.c.l.b16 %v1247
        %v3842 = vunpack.c.h.b16 %v1247
        %v3843 = vunpack.c.l.b16 %v1248
        %v3844 = vunpack.c.h.b16 %v1248
        %v3845 = vunpack.c.l.b16 %v1249
        %v3846 = vunpack.c.h.b16 %v1249
        %v3847 = vunpack.c.l.b16 %v1250
        %v3848 = vunpack.c.h.b16 %v1250
        %v3849 = vunpack.c.l.b16 %v1251
        %v3850 = vunpack.c.h.b16 %v1251
        %v3851 = vunpack.c.l.b16 %v1252
        %v3852 = vunpack.c.h.b16 %v1252
        %v3853 = vunpack.c.l.b16 %v1253
        %v3854 = vunpack.c.h.b16 %v1253
        %v3855 = vunpack.c.l.b16 %v1254
        %v3856 = vunpack.c.h.b16 %v1254
        %v3857 = vunpack.c.l.b16 %v1255
        %v3858 = vunpack.c.h.b16 %v1255
        %v3859 = vunpack.c.l.b16 %v1256
        %v3860 = vunpack.c.h.b16 %v1256
        %v3861 = vunpack.c.l.b16 %v1257
        %v3862 = vunpack.c.h.b16 %v1257
        %v3863 = vunpack.c.l.b16 %v1258
        %v3864 = vunpack.c.h.b16 %v1258
        %v3865 = vunpack.c.l.b16 %v1259
        %v3866 = vunpack.c.h.b16 %v1259
        %v3867 = vunpack.c.l.b16 %v1260
        %v3868 = vunpack.c.h.b16 %v1260
        %v3869 = vunpack.c.l.b16 %v1261
        %v3870 = vunpack.c.h.b16 %v1261
        %v3871 = vunpack.c.l.b16 %v1262
        %v3872 = vunpack.c.h.b16 %v1262
        %v3873 = vunpack.c.l.b16 %v1263
        %v3874 = vunpack.c.h.b16 %v1263
        %v3875 = vunpack.c.l.b16 %v1264
        %v3876 = vunpack.c.h.b16 %v1264
        %v3877 = vunpack.c.l.b16 %v1265
        %v3878 = vunpack.c.h.b16 %v1265
        %v3879 = vunpack.c.l.b16 %v1266
        %v3880 = vunpack.c.h.b16 %v1266
        %v3881 = vunpack.c.l.b16 %v1267
        %v3882 = vunpack.c.h.b16 %v1267
        %v3883 = vunpack.c.l.b16 %v1268
        %v3884 = vunpack.c.h.b16 %v1268
        %v3885 = vunpack.c.l.b16 %v1269
        %v3886 = vunpack.c.h.b16 %v1269
        %v3887 = vunpack.c.l.b16 %v1270
        %v3888 = vunpack.c.h.b16 %v1270
        %v3889 = vunpack.c.l.b16 %v1271
        %v3890 = vunpack.c.h.b16 %v1271
        %v3891 = vunpack.c.l.b16 %v1272
        %v3892 = vunpack.c.h.b16 %v1272
        %v3893 = vunpack.c.l.b16 %v1273
        %v3894 = vunpack.c.h.b16 %v1273
        %v3895 = vunpack.c.l.b16 %v1274
        %v3896 = vunpack.c.h.b16 %v1274
        %v3897 = vunpack.c.l.b16 %v1275
        %v3898 = vunpack.c.h.b16 %v1275
        %v3899 = vunpack.c.l.b16 %v1276
        %v3900 = vunpack.c.h.b16 %v1276
        %v3901 = vunpack.c.l.b16 %v1277
        %v3902 = vunpack.c.h.b16 %v1277
        %v3903 = vunpack.c.l.b16 %v1278
        %v3904 = vunpack.c.h.b16 %v1278
        %v3905 = vunpack.c.l.b16 %v1279
        %v3906 = vunpack.c.h.b16 %v1279
        %v3907 = vunpack.c.l.b16 %v1280
        %v3908 = vunpack.c.h.b16 %v1280
        %v3909 = vunpack.c.l.b16 %v1281
        %v3910 = vunpack.c.h.b16 %v1281
        %v3911 = vunpack.c.l.b16 %v1282
        %v3912 = vunpack.c.h.b16 %v1282
        %v3913 = vunpack.c.l.b16 %v1283
        %v3914 = vunpack.c.h.b16 %v1283
        %v3915 = vunpack.c.l.b16 %v1284
        %v3916 = vunpack.c.h.b16 %v1284
        %v3917 = vunpack.c.l.b16 %v1285
        %v3918 = vunpack.c.h.b16 %v1285
        %v3919 = vunpack.c.l.b16 %v1286
        %v3920 = vunpack.c.h.b16 %v1286
        %v3921 = vunpack.c.l.b16 %v1287
        %v3922 = vunpack.c.h.b16 %v1287
        %v3923 = vunpack.c.l.b16 %v1288
        %v3924 = vunpack.c.h.b16 %v1288
        %v3925 = vunpack.c.l.b16 %v1289
        %v3926 = vunpack.c.h.b16 %v1289
        %v3927 = vunpack.c.l.b16 %v1290
        %v3928 = vunpack.c.h.b16 %v1290
        %v3929 = vunpack.c.l.b16 %v1291
        %v3930 = vunpack.c.h.b16 %v1291
        %v3931 = vunpack.c.l.b16 %v1292
        %v3932 = vunpack.c.h.b16 %v1292
        %v3933 = vunpack.c.l.b16 %v1293
        %v3934 = vunpack.c.h.b16 %v1293
        %v3935 = vunpack.c.l.b16 %v1294
        %v3936 = vunpack.c.h.b16 %v1294
        %v3937 = vunpack.c.l.b16 %v1295
        %v3938 = vunpack.c.h.b16 %v1295
        %v3939 = vunpack.c.l.b16 %v1296
        %v3940 = vunpack.c.h.b16 %v1296
        %v3941 = vunpack.c.l.b16 %v1297
        %v3942 = vunpack.c.h.b16 %v1297
        %v3943 = vunpack.c.l.b16 %v1298
        %v3944 = vunpack.c.h.b16 %v1298
        %v3945 = vunpack.c.l.b16 %v1299
        %v3946 = vunpack.c.h.b16 %v1299
        %v3947 = vunpack.c.l.b16 %v1300
        %v3948 = vunpack.c.h.b16 %v1300
        %v3949 = vunpack.c.l.b16 %v1301
        %v3950 = vunpack.c.h.b16 %v1301
        %v3951 = vunpack.c.l.b16 %v1302
        %v3952 = vunpack.c.h.b16 %v1302
        %v3953 = vunpack.c.l.b16 %v1303
        %v3954 = vunpack.c.h.b16 %v1303
        %v3955 = vunpack.c.l.b16 %v1304
        %v3956 = vunpack.c.h.b16 %v1304
        %v3957 = vunpack.c.l.b16 %v1305
        %v3958 = vunpack.c.h.b16 %v1305
        %v3959 = vunpack.c.l.b16 %v1306
        %v3960 = vunpack.c.h.b16 %v1306
        %v3961 = vunpack.c.l.b16 %v1307
        %v3962 = vunpack.c.h.b16 %v1307
        %v3963 = vunpack.c.l.b16 %v1308
        %v3964 = vunpack.c.h.b16 %v1308
        %v3965 = vunpack.c.l.b16 %v1309
        %v3966 = vunpack.c.h.b16 %v1309
        %v3967 = vunpack.c.l.b16 %v1310
        %v3968 = vunpack.c.h.b16 %v1310
        %v3969 = vunpack.c.l.b16 %v1311
        %v3970 = vunpack.c.h.b16 %v1311
        %v3971 = vunpack.c.l.b16 %v1312
        %v3972 = vunpack.c.h.b16 %v1312
        %v3973 = vunpack.c.l.b16 %v1313
        %v3974 = vunpack.c.h.b16 %v1313
        %v3975 = vunpack.c.l.b16 %v1314
        %v3976 = vunpack.c.h.b16 %v1314
        %v3977 = vunpack.c.l.b16 %v1315
        %v3978 = vunpack.c.h.b16 %v1315
        %v3979 = vunpack.c.l.b16 %v1316
        %v3980 = vunpack.c.h.b16 %v1316
        %v3981 = vunpack.c.l.b16 %v1317
        %v3982 = vunpack.c.h.b16 %v1317
        %v3983 = vunpack.c.l.b16 %v1318
        %v3984 = vunpack.c.h.b16 %v1318
        %v3985 = vunpack.c.l.b16 %v1319
        %v3986 = vunpack.c.h.b16 %v1319
        %v3987 = vunpack.c.l.b16 %v1320
        %v3988 = vunpack.c.h.b16 %v1320
        %v3989 = vunpack.c.l.b16 %v1321
        %v3990 = vunpack.c.h.b16 %v1321
        %v3991 = vunpack.c.l.b16 %v1322
        %v3992 = vunpack.c.h.b16 %v1322
        %v3993 = vunpack.c.l.b16 %v1323
        %v3994 = vunpack.c.h.b16 %v1323
        %v3995 = vunpack.c.l.b16 %v1324
        %v3996 = vunpack.c.h.b16 %v1324
        %v3997 = vunpack.c.l.b16 %v1325
        %v3998 = vunpack.c.h.b16 %v1325
        %v3999 = vunpack.c.l.b16 %v1326
        %v4000 = vunpack.c.h.b16 %v1326
        %v4001 = vunpack.c.l.b16 %v1327
        %v4002 = vunpack.c.h.b16 %v1327
        %v4003 = vunpack.c.l.b16 %v1328
        %v4004 = vunpack.c.h.b16 %v1328
        %v4005 = vunpack.c.l.b16 %v1329
        %v4006 = vunpack.c.h.b16 %v1329
        %v4007 = vunpack.c.l.b16 %v1330
        %v4008 = vunpack.c.h.b16 %v1330
        %v4009 = vunpack.c.l.b16 %v1331
        %v4010 = vunpack.c.h.b16 %v1331
        %v4011 = vunpack.c.l.b16 %v1332
        %v4012 = vunpack.c.h.b16 %v1332
        %v4013 = vunpack.c.l.b16 %v1333
        %v4014 = vunpack.c.h.b16 %v1333
        %v4015 = vunpack.c.l.b16 %v1334
        %v4016 = vunpack.c.h.b16 %v1334
        %v4017 = vunpack.c.l.b16 %v1335
        %v4018 = vunpack.c.h.b16 %v1335
        %v4019 = vunpack.c.l.b16 %v1336
        %v4020 = vunpack.c.h.b16 %v1336
        %v4021 = vunpack.c.l.b16 %v1337
        %v4022 = vunpack.c.h.b16 %v1337
        %v4023 = vunpack.c.l.b16 %v1338
        %v4024 = vunpack.c.h.b16 %v1338
        %v4025 = vunpack.c.l.b16 %v1339
        %v4026 = vunpack.c.h.b16 %v1339
        %v4027 = vunpack.c.l.b16 %v1340
        %v4028 = vunpack.c.h.b16 %v1340
        %v4029 = vpack.c.b16 %v2319, %v2301
        %v4030 = vpack.c.b16 %v2320, %v2302
        %v4031 = vpack.c.b16 %v2321, %v2303
        %v4032 = vpack.c.b16 %v2322, %v2304
        %v4033 = vpack.c.b16 %v2323, %v2305
        %v4034 = vpack.c.b16 %v2324, %v2306
        %v4035 = vpack.c.b16 %v2325, %v2307
        %v4036 = vpack.c.b16 %v2326, %v2308
        %v4037 = vpack.c.b16 %v2327, %v2309
        %v4038 = vpack.c.b16 %v2328, %v2310
        %v4039 = vpack.c.b16 %v2329, %v2311
        %v4040 = vpack.c.b16 %v2330, %v2312
        %v4041 = vpack.c.b16 %v2331, %v2313
        %v4042 = vpack.c.b16 %v2332, %v2314
        %v4043 = vpack.c.b16 %v2333, %v2315
        %v4044 = vpack.c.b16 %v2334, %v2316
        %v4045 = vpack.c.b16 %v2335, %v2317
        %v4046 = vpack.c.b16 %v2336, %v2318
        %v4047 = vpack.c.b16 %v2355, %v2337
        %v4048 = vpack.c.b16 %v2356, %v2338
        %v4049 = vpack.c.b16 %v2357, %v2339
        %v4050 = vpack.c.b16 %v2358, %v2340
        %v4051 = vpack.c.b16 %v2359, %v2341
        %v4052 = vpack.c.b16 %v2360, %v2342
        %v4053 = vpack.c.b16 %v2361, %v2343
        %v4054 = vpack.c.b16 %v2362, %v2344
        %v4055 = vpack.c.b16 %v2363, %v2345
        %v4056 = vpack.c.b16 %v2364, %v2346
        %v4057 = vpack.c.b16 %v2365, %v2347
        %v4058 = vpack.c.b16 %v2366, %v2348
        %v4059 = vpack.c.b16 %v2367, %v2349
        %v4060 = vpack.c.b16 %v2368, %v2350
        %v4061 = vpack.c.b16 %v2369, %v2351
        %v4062 = vpack.c.b16 %v2370, %v2352
        %v4063 = vpack.c.b16 %v2371, %v2353
        %v4064 = vpack.c.b16 %v2372, %v2354
        %v4065 = vpack.c.b16 %v2391, %v2373
        %v4066 = vpack.c.b16 %v2392, %v2374
        %v4067 = vpack.c.b16 %v2393, %v2375
        %v4068 = vpack.c.b16 %v2394, %v2376
        %v4069 = vpack.c.b16 %v2395, %v2377
        %v4070 = vpack.c.b16 %v2396, %v2378
        %v4071 = vpack.c.b16 %v2397, %v2379
        %v4072 = vpack.c.b16 %v2398, %v2380
        %v4073 = vpack.c.b16 %v2399, %v2381
        %v4074 = vpack.c.b16 %v2400, %v2382
        %v4075 = vpack.c.b16 %v2401, %v2383
        %v4076 = vpack.c.b16 %v2402, %v2384
        %v4077 = vpack.c.b16 %v2403, %v2385
        %v4078 = vpack.c.b16 %v2404, %v2386
        %v4079 = vpack.c.b16 %v2405, %v2387
        %v4080 = vpack.c.b16 %v2406, %v2388
        %v4081 = vpack.c.b16 %v2407, %v2389
        %v4082 = vpack.c.b16 %v2408, %v2390
        %v4083 = vpack.c.b16 %v2427, %v2409
        %v4084 = vpack.c.b16 %v2428, %v2410
        %v4085 = vpack.c.b16 %v2429, %v2411
        %v4086 = vpack.c.b16 %v2430, %v2412
        %v4087 = vpack.c.b16 %v2431, %v2413
        %v4088 = vpack.c.b16 %v2432, %v2414
        %v4089 = vpack.c.b16 %v2433, %v2415
        %v4090 = vpack.c.b16 %v2434, %v2416
        %v4091 = vpack.c.b16 %v2435, %v2417
        %v4092 = vpack.c.b16 %v2436, %v2418
        %v4093 = vpack.c.b16 %v2437, %v2419
        %v4094 = vpack.c.b16 %v2438, %v2420
        %v4095 = vpack.c.b16 %v2439, %v2421
        %v4096 = vpack.c.b16 %v2440, %v2422
        %v4097 = vpack.c.b16 %v2441, %v2423
        %v4098 = vpack.c.b16 %v2442, %v2424
        %v4099 = vpack.c.b16 %v2443, %v2425
        %v4100 = vpack.c.b16 %v2444, %v2426
        %v4101 = vpack.c.b16 %v2463, %v2445
        %v4102 = vpack.c.b16 %v2464, %v2446
        %v4103 = vpack.c.b16 %v2465, %v2447
        %v4104 = vpack.c.b16 %v2466, %v2448
        %v4105 = vpack.c.b16 %v2467, %v2449
        %v4106 = vpack.c.b16 %v2468, %v2450
        %v4107 = vpack.c.b16 %v2469, %v2451
        %v4108 = vpack.c.b16 %v2470, %v2452
        %v4109 = vpack.c.b16 %v2471, %v2453
        %v4110 = vpack.c.b16 %v2472, %v2454
        %v4111 = vpack.c.b16 %v2473, %v2455
        %v4112 = vpack.c.b16 %v2474, %v2456
        %v4113 = vpack.c.b16 %v2475, %v2457
        %v4114 = vpack.c.b16 %v2476, %v2458
        %v4115 = vpack.c.b16 %v2477, %v2459
        %v4116 = vpack.c.b16 %v2478, %v2460
        %v4117 = vpack.c.b16 %v2479, %v2461
        %v4118 = vpack.c.b16 %v2480, %v2462
        %v4119 = vpack.c.b16 %v2499, %v2481
        %v4120 = vpack.c.b16 %v2500, %v2482
        %v4121 = vpack.c.b16 %v2501, %v2483
        %v4122 = vpack.c.b16 %v2502, %v2484
        %v4123 = vpack.c.b16 %v2503, %v2485
        %v4124 = vpack.c.b16 %v2504, %v2486
        %v4125 = vpack.c.b16 %v2505, %v2487
        %v4126 = vpack.c.b16 %v2506, %v2488
        %v4127 = vpack.c.b16 %v2507, %v2489
        %v4128 = vpack.c.b16 %v2508, %v2490
        %v4129 = vpack.c.b16 %v2509, %v2491
        %v4130 = vpack.c.b16 %v2510, %v2492
        %v4131 = vpack.c.b16 %v2511, %v2493
        %v4132 = vpack.c.b16 %v2512, %v2494
        %v4133 = vpack.c.b16 %v2513, %v2495
        %v4134 = vpack.c.b16 %v2514, %v2496
        %v4135 = vpack.c.b16 %v2515, %v2497
        %v4136 = vpack.c.b16 %v2516, %v2498
        %v4137 = vpack.c.b16 %v2535, %v2517
        %v4138 = vpack.c.b16 %v2536, %v2518
        %v4139 = vpack.c.b16 %v2537, %v2519
        %v4140 = vpack.c.b16 %v2538, %v2520
        %v4141 = vpack.c.b16 %v2539, %v2521
        %v4142 = vpack.c.b16 %v2540, %v2522
        %v4143 = vpack.c.b16 %v2541, %v2523
        %v4144 = vpack.c.b16 %v2542, %v2524
        %v4145 = vpack.c.b16 %v2543, %v2525
        %v4146 = vpack.c.b16 %v2544, %v2526
        %v4147 = vpack.c.b16 %v2545, %v2527
        %v4148 = vpack.c.b16 %v2546, %v2528
        %v4149 = vpack.c.b16 %v2547, %v2529
        %v4150 = vpack.c.b16 %v2548, %v2530
        %v4151 = vpack.c.b16 %v2549, %v2531
        %v4152 = vpack.c.b16 %v2550, %v2532
        %v4153 = vpack.c.b16 %v2551, %v2533
        %v4154 = vpack.c.b16 %v2552, %v2534
        %v4155 = vpack.c.b16 %v2571, %v2553
        %v4156 = vpack.c.b16 %v2572, %v2554
        %v4157 = vpack.c.b16 %v2573, %v2555
        %v4158 = vpack.c.b16 %v2574, %v2556
        %v4159 = vpack.c.b16 %v2575, %v2557
        %v4160 = vpack.c.b16 %v2576, %v2558
        %v4161 = vpack.c.b16 %v2577, %v2559
        %v4162 = vpack.c.b16 %v2578, %v2560
        %v4163 = vpack.c.b16 %v2579, %v2561
        %v4164 = vpack.c.b16 %v2580, %v2562
        %v4165 = vpack.c.b16 %v2581, %v2563
        %v4166 = vpack.c.b16 %v2582, %v2564
        %v4167 = vpack.c.b16 %v2583, %v2565
        %v4168 = vpack.c.b16 %v2584, %v2566
        %v4169 = vpack.c.b16 %v2585, %v2567
        %v4170 = vpack.c.b16 %v2586, %v2568
        %v4171 = vpack.c.b16 %v2587, %v2569
        %v4172 = vpack.c.b16 %v2588, %v2570
        %v4173 = vpack.c.b16 %v2607, %v2589
        %v4174 = vpack.c.b16 %v2608, %v2590
        %v4175 = vpack.c.b16 %v2609, %v2591
        %v4176 = vpack.c.b16 %v2610, %v2592
        %v4177 = vpack.c.b16 %v2611, %v2593
        %v4178 = vpack.c.b16 %v2612, %v2594
        %v4179 = vpack.c.b16 %v2613, %v2595
        %v4180 = vpack.c.b16 %v2614, %v2596
        %v4181 = vpack.c.b16 %v2615, %v2597
        %v4182 = vpack.c.b16 %v2616, %v2598
        %v4183 = vpack.c.b16 %v2617, %v2599
        %v4184 = vpack.c.b16 %v2618, %v2600
        %v4185 = vpack.c.b16 %v2619, %v2601
        %v4186 = vpack.c.b16 %v2620, %v2602
        %v4187 = vpack.c.b16 %v2621, %v2603
        %v4188 = vpack.c.b16 %v2622, %v2604
        %v4189 = vpack.c.b16 %v2623, %v2605
        %v4190 = vpack.c.b16 %v2624, %v2606
        %v4191 = vpack.c.b16 %v2643, %v2625
        %v4192 = vpack.c.b16 %v2644, %v2626
        %v4193 = vpack.c.b16 %v2645, %v2627
        %v4194 = vpack.c.b16 %v2646, %v2628
        %v4195 = vpack.c.b16 %v2647, %v2629
        %v4196 = vpack.c.b16 %v2648, %v2630
        %v4197 = vpack.c.b16 %v2649, %v2631
        %v4198 = vpack.c.b16 %v2650, %v2632
        %v4199 = vpack.c.b16 %v2651, %v2633
        %v4200 = vpack.c.b16 %v2652, %v2634
        %v4201 = vpack.c.b16 %v2653, %v2635
        %v4202 = vpack.c.b16 %v2654, %v2636
        %v4203 = vpack.c.b16 %v2655, %v2637
        %v4204 = vpack.c.b16 %v2656, %v2638
        %v4205 = vpack.c.b16 %v2657, %v2639
        %v4206 = vpack.c.b16 %v2658, %v2640
        %v4207 = vpack.c.b16 %v2659, %v2641
        %v4208 = vpack.c.b16 %v2660, %v2642
        %v4209 = vpack.c.b16 %v2679, %v2661
        %v4210 = vpack.c.b16 %v2680, %v2662
        %v4211 = vpack.c.b16 %v2681, %v2663
        %v4212 = vpack.c.b16 %v2682, %v2664
        %v4213 = vpack.c.b16 %v2683, %v2665
        %v4214 = vpack.c.b16 %v2684, %v2666
        %v4215 = vpack.c.b16 %v2685, %v2667
        %v4216 = vpack.c.b16 %v2686, %v2668
        %v4217 = vpack.c.b16 %v2687, %v2669
        %v4218 = vpack.c.b16 %v2688, %v2670
        %v4219 = vpack.c.b16 %v2689, %v2671
        %v4220 = vpack.c.b16 %v2690, %v2672
        %v4221 = vpack.c.b16 %v2691, %v2673
        %v4222 = vpack.c.b16 %v2692, %v2674
        %v4223 = vpack.c.b16 %v2693, %v2675
        %v4224 = vpack.c.b16 %v2694, %v2676
        %v4225 = vpack.c.b16 %v2695, %v2677
        %v4226 = vpack.c.b16 %v2696, %v2678
        %v4227 = vpack.c.b16 %v2715, %v2697
        %v4228 = vpack.c.b16 %v2716, %v2698
        %v4229 = vpack.c.b16 %v2717, %v2699
        %v4230 = vpack.c.b16 %v2718, %v2700
        %v4231 = vpack.c.b16 %v2719, %v2701
        %v4232 = vpack.c.b16 %v2720, %v2702
        %v4233 = vpack.c.b16 %v2721, %v2703
        %v4234 = vpack.c.b16 %v2722, %v2704
        %v4235 = vpack.c.b16 %v2723, %v2705
        %v4236 = vpack.c.b16 %v2724, %v2706
        %v4237 = vpack.c.b16 %v2725, %v2707
        %v4238 = vpack.c.b16 %v2726, %v2708
        %v4239 = vpack.c.b16 %v2727, %v2709
        %v4240 = vpack.c.b16 %v2728, %v2710
        %v4241 = vpack.c.b16 %v2729, %v2711
        %v4242 = vpack.c.b16 %v2730, %v2712
        %v4243 = vpack.c.b16 %v2731, %v2713
        %v4244 = vpack.c.b16 %v2732, %v2714
        %v4245 = vpack.c.b16 %v2751, %v2733
        %v4246 = vpack.c.b16 %v2752, %v2734
        %v4247 = vpack.c.b16 %v2753, %v2735
        %v4248 = vpack.c.b16 %v2754, %v2736
        %v4249 = vpack.c.b16 %v2755, %v2737
        %v4250 = vpack.c.b16 %v2756, %v2738
        %v4251 = vpack.c.b16 %v2757, %v2739
        %v4252 = vpack.c.b16 %v2758, %v2740
        %v4253 = vpack.c.b16 %v2759, %v2741
        %v4254 = vpack.c.b16 %v2760, %v2742
        %v4255 = vpack.c.b16 %v2761, %v2743
        %v4256 = vpack.c.b16 %v2762, %v2744
        %v4257 = vpack.c.b16 %v2763, %v2745
        %v4258 = vpack.c.b16 %v2764, %v2746
        %v4259 = vpack.c.b16 %v2765, %v2747
        %v4260 = vpack.c.b16 %v2766, %v2748
        %v4261 = vpack.c.b16 %v2767, %v2749
        %v4262 = vpack.c.b16 %v2768, %v2750
        %v4263 = vpack.c.b16 %v2787, %v2769
        %v4264 = vpack.c.b16 %v2788, %v2770
        %v4265 = vpack.c.b16 %v2789, %v2771
        %v4266 = vpack.c.b16 %v2790, %v2772
        %v4267 = vpack.c.b16 %v2791, %v2773
        %v4268 = vpack.c.b16 %v2792, %v2774
        %v4269 = vpack.c.b16 %v2793, %v2775
        %v4270 = vpack.c.b16 %v2794, %v2776
        %v4271 = vpack.c.b16 %v2795, %v2777
        %v4272 = vpack.c.b16 %v2796, %v2778
        %v4273 = vpack.c.b16 %v2797, %v2779
        %v4274 = vpack.c.b16 %v2798, %v2780
        %v4275 = vpack.c.b16 %v2799, %v2781
        %v4276 = vpack.c.b16 %v2800, %v2782
        %v4277 = vpack.c.b16 %v2801, %v2783
        %v4278 = vpack.c.b16 %v2802, %v2784
        %v4279 = vpack.c.b16 %v2803, %v2785
        %v4280 = vpack.c.b16 %v2804, %v2786
        %v4281 = vpack.c.b16 %v2823, %v2805
        %v4282 = vpack.c.b16 %v2824, %v2806
        %v4283 = vpack.c.b16 %v2825, %v2807
        %v4284 = vpack.c.b16 %v2826, %v2808
        %v4285 = vpack.c.b16 %v2827, %v2809
        %v4286 = vpack.c.b16 %v2828, %v2810
        %v4287 = vpack.c.b16 %v2829, %v2811
        %v4288 = vpack.c.b16 %v2830, %v2812
        %v4289 = vpack.c.b16 %v2831, %v2813
        %v4290 = vpack.c.b16 %v2832, %v2814
        %v4291 = vpack.c.b16 %v2833, %v2815
        %v4292 = vpack.c.b16 %v2834, %v2816
        %v4293 = vpack.c.b16 %v2835, %v2817
        %v4294 = vpack.c.b16 %v2836, %v2818
        %v4295 = vpack.c.b16 %v2837, %v2819
        %v4296 = vpack.c.b16 %v2838, %v2820
        %v4297 = vpack.c.b16 %v2839, %v2821
        %v4298 = vpack.c.b16 %v2840, %v2822
        %v4299 = vpack.c.b16 %v2859, %v2841
        %v4300 = vpack.c.b16 %v2860, %v2842
        %v4301 = vpack.c.b16 %v2861, %v2843
        %v4302 = vpack.c.b16 %v2862, %v2844
        %v4303 = vpack.c.b16 %v2863, %v2845
        %v4304 = vpack.c.b16 %v2864, %v2846
        %v4305 = vpack.c.b16 %v2865, %v2847
        %v4306 = vpack.c.b16 %v2866, %v2848
        %v4307 = vpack.c.b16 %v2867, %v2849
        %v4308 = vpack.c.b16 %v2868, %v2850
        %v4309 = vpack.c.b16 %v2869, %v2851
        %v4310 = vpack.c.b16 %v2870, %v2852
        %v4311 = vpack.c.b16 %v2871, %v2853
        %v4312 = vpack.c.b16 %v2872, %v2854
        %v4313 = vpack.c.b16 %v2873, %v2855
        %v4314 = vpack.c.b16 %v2874, %v2856
        %v4315 = vpack.c.b16 %v2875, %v2857
        %v4316 = vpack.c.b16 %v2876, %v2858
        %v4317 = vpack.c.b16 %v2895, %v2877
        %v4318 = vpack.c.b16 %v2896, %v2878
        %v4319 = vpack.c.b16 %v2897, %v2879
        %v4320 = vpack.c.b16 %v2898, %v2880
        %v4321 = vpack.c.b16 %v2899, %v2881
        %v4322 = vpack.c.b16 %v2900, %v2882
        %v4323 = vpack.c.b16 %v2901, %v2883
        %v4324 = vpack.c.b16 %v2902, %v2884
        %v4325 = vpack.c.b16 %v2903, %v2885
        %v4326 = vpack.c.b16 %v2904, %v2886
        %v4327 = vpack.c.b16 %v2905, %v2887
        %v4328 = vpack.c.b16 %v2906, %v2888
        %v4329 = vpack.c.b16 %v2907, %v2889
        %v4330 = vpack.c.b16 %v2908, %v2890
        %v4331 = vpack.c.b16 %v2909, %v2891
        %v4332 = vpack.c.b16 %v2910, %v2892
        %v4333 = vpack.c.b16 %v2911, %v2893
        %v4334 = vpack.c.b16 %v2912, %v2894
        %v4335 = vpack.c.b16 %v2931, %v2913
        %v4336 = vpack.c.b16 %v2932, %v2914
        %v4337 = vpack.c.b16 %v2933, %v2915
        %v4338 = vpack.c.b16 %v2934, %v2916
        %v4339 = vpack.c.b16 %v2935, %v2917
        %v4340 = vpack.c.b16 %v2936, %v2918
        %v4341 = vpack.c.b16 %v2937, %v2919
        %v4342 = vpack.c.b16 %v2938, %v2920
        %v4343 = vpack.c.b16 %v2939, %v2921
        %v4344 = vpack.c.b16 %v2940, %v2922
        %v4345 = vpack.c.b16 %v2941, %v2923
        %v4346 = vpack.c.b16 %v2942, %v2924
        %v4347 = vpack.c.b16 %v2943, %v2925
        %v4348 = vpack.c.b16 %v2944, %v2926
        %v4349 = vpack.c.b16 %v2945, %v2927
        %v4350 = vpack.c.b16 %v2946, %v2928
        %v4351 = vpack.c.b16 %v2947, %v2929
        %v4352 = vpack.c.b16 %v2948, %v2930
        %v4353 = vpack.c.b16 %v2967, %v2949
        %v4354 = vpack.c.b16 %v2968, %v2950
        %v4355 = vpack.c.b16 %v2969, %v2951
        %v4356 = vpack.c.b16 %v2970, %v2952
        %v4357 = vpack.c.b16 %v2971, %v2953
        %v4358 = vpack.c.b16 %v2972, %v2954
        %v4359 = vpack.c.b16 %v2973, %v2955
        %v4360 = vpack.c.b16 %v2974, %v2956
        %v4361 = vpack.c.b16 %v2975, %v2957
        %v4362 = vpack.c.b16 %v2976, %v2958
        %v4363 = vpack.c.b16 %v2977, %v2959
        %v4364 = vpack.c.b16 %v2978, %v2960
        %v4365 = vpack.c.b16 %v2979, %v2961
        %v4366 = vpack.c.b16 %v2980, %v2962
        %v4367 = vpack.c.b16 %v2981, %v2963
        %v4368 = vpack.c.b16 %v2982, %v2964
        %v4369 = vpack.c.b16 %v2983, %v2965
        %v4370 = vpack.c.b16 %v2984, %v2966
        %v4371 = vpack.c.b16 %v3003, %v2985
        %v4372 = vpack.c.b16 %v3004, %v2986
        %v4373 = vpack.c.b16 %v3005, %v2987
        %v4374 = vpack.c.b16 %v3006, %v2988
        %v4375 = vpack.c.b16 %v3007, %v2989
        %v4376 = vpack.c.b16 %v3008, %v2990
        %v4377 = vpack.c.b16 %v3009, %v2991
        %v4378 = vpack.c.b16 %v3010, %v2992
        %v4379 = vpack.c.b16 %v3011, %v2993
        %v4380 = vpack.c.b16 %v3012, %v2994
        %v4381 = vpack.c.b16 %v3013, %v2995
        %v4382 = vpack.c.b16 %v3014, %v2996
        %v4383 = vpack.c.b16 %v3015, %v2997
        %v4384 = vpack.c.b16 %v3016, %v2998
        %v4385 = vpack.c.b16 %v3017, %v2999
        %v4386 = vpack.c.b16 %v3018, %v3000
        %v4387 = vpack.c.b16 %v3019, %v3001
        %v4388 = vpack.c.b16 %v3020, %v3002
        %v4389 = vpack.c.b16 %v3039, %v3021
        %v4390 = vpack.c.b16 %v3040, %v3022
        %v4391 = vpack.c.b16 %v3041, %v3023
        %v4392 = vpack.c.b16 %v3042, %v3024
        %v4393 = vpack.c.b16 %v3043, %v3025
        %v4394 = vpack.c.b16 %v3044, %v3026
        %v4395 = vpack.c.b16 %v3045, %v3027
        %v4396 = vpack.c.b16 %v3046, %v3028
        %v4397 = vpack.c.b16 %v3047, %v3029
        %v4398 = vpack.c.b16 %v3048, %v3030
        %v4399 = vpack.c.b16 %v3049, %v3031
        %v4400 = vpack.c.b16 %v3050, %v3032
        %v4401 = vpack.c.b16 %v3051, %v3033
        %v4402 = vpack.c.b16 %v3052, %v3034
        %v4403 = vpack.c.b16 %v3053, %v3035
        %v4404 = vpack.c.b16 %v3054, %v3036
        %v4405 = vpack.c.b16 %v3055, %v3037
        %v4406 = vpack.c.b16 %v3056, %v3038
        %v4407 = vpack.c.b16 %v3075, %v3057
        %v4408 = vpack.c.b16 %v3076, %v3058
        %v4409 = vpack.c.b16 %v3077, %v3059
        %v4410 = vpack.c.b16 %v3078, %v3060
        %v4411 = vpack.c.b16 %v3079, %v3061
        %v4412 = vpack.c.b16 %v3080, %v3062
        %v4413 = vpack.c.b16 %v3081, %v3063
        %v4414 = vpack.c.b16 %v3082, %v3064
        %v4415 = vpack.c.b16 %v3083, %v3065
        %v4416 = vpack.c.b16 %v3084, %v3066
        %v4417 = vpack.c.b16 %v3085, %v3067
        %v4418 = vpack.c.b16 %v3086, %v3068
        %v4419 = vpack.c.b16 %v3087, %v3069
        %v4420 = vpack.c.b16 %v3088, %v3070
        %v4421 = vpack.c.b16 %v3089, %v3071
        %v4422 = vpack.c.b16 %v3090, %v3072
        %v4423 = vpack.c.b16 %v3091, %v3073
        %v4424 = vpack.c.b16 %v3092, %v3074
        %v4425 = vpack.c.b16 %v3111, %v3093
        %v4426 = vpack.c.b16 %v3112, %v3094
        %v4427 = vpack.c.b16 %v3113, %v3095
        %v4428 = vpack.c.b16 %v3114, %v3096
        %v4429 = vpack.c.b16 %v3115, %v3097
        %v4430 = vpack.c.b16 %v3116, %v3098
        %v4431 = vpack.c.b16 %v3117, %v3099
        %v4432 = vpack.c.b16 %v3118, %v3100
        %v4433 = vpack.c.b16 %v3119, %v3101
        %v4434 = vpack.c.b16 %v3120, %v3102
        %v4435 = vpack.c.b16 %v3121, %v3103
        %v4436 = vpack.c.b16 %v3122, %v3104
        %v4437 = vpack.c.b16 %v3123, %v3105
        %v4438 = vpack.c.b16 %v3124, %v3106
        %v4439 = vpack.c.b16 %v3125, %v3107
        %v4440 = vpack.c.b16 %v3126, %v3108
        %v4441 = vpack.c.b16 %v3127, %v3109
        %v4442 = vpack.c.b16 %v3128, %v3110
        %v4443 = vpack.c.b16 %v3147, %v3129
        %v4444 = vpack.c.b16 %v3148, %v3130
        %v4445 = vpack.c.b16 %v3149, %v3131
        %v4446 = vpack.c.b16 %v3150, %v3132
        %v4447 = vpack.c.b16 %v3151, %v3133
        %v4448 = vpack.c.b16 %v3152, %v3134
        %v4449 = vpack.c.b16 %v3153, %v3135
        %v4450 = vpack.c.b16 %v3154, %v3136
        %v4451 = vpack.c.b16 %v3155, %v3137
        %v4452 = vpack.c.b16 %v3156, %v3138
        %v4453 = vpack.c.b16 %v3157, %v3139
        %v4454 = vpack.c.b16 %v3158, %v3140
        %v4455 = vpack.c.b16 %v3159, %v3141
        %v4456 = vpack.c.b16 %v3160, %v3142
        %v4457 = vpack.c.b16 %v3161, %v3143
        %v4458 = vpack.c.b16 %v3162, %v3144
        %v4459 = vpack.c.b16 %v3163, %v3145
        %v4460 = vpack.c.b16 %v3164, %v3146
        %v4461 = vpack.c.b16 %v3183, %v3165
        %v4462 = vpack.c.b16 %v3184, %v3166
        %v4463 = vpack.c.b16 %v3185, %v3167
        %v4464 = vpack.c.b16 %v3186, %v3168
        %v4465 = vpack.c.b16 %v3187, %v3169
        %v4466 = vpack.c.b16 %v3188, %v3170
        %v4467 = vpack.c.b16 %v3189, %v3171
        %v4468 = vpack.c.b16 %v3190, %v3172
        %v4469 = vpack.c.b16 %v3191, %v3173
        %v4470 = vpack.c.b16 %v3192, %v3174
        %v4471 = vpack.c.b16 %v3193, %v3175
        %v4472 = vpack.c.b16 %v3194, %v3176
        %v4473 = vpack.c.b16 %v3195, %v3177
        %v4474 = vpack.c.b16 %v3196, %v3178
        %v4475 = vpack.c.b16 %v3197, %v3179
        %v4476 = vpack.c.b16 %v3198, %v3180
        %v4477 = vpack.c.b16 %v3199, %v3181
        %v4478 = vpack.c.b16 %v3200, %v3182
        %v4479 = vpack.c.b16 %v3219, %v3201
        %v4480 = vpack.c.b16 %v3220, %v3202
        %v4481 = vpack.c.b16 %v3221, %v3203
        %v4482 = vpack.c.b16 %v3222, %v3204
        %v4483 = vpack.c.b16 %v3223, %v3205
        %v4484 = vpack.c.b16 %v3224, %v3206
        %v4485 = vpack.c.b16 %v3225, %v3207
        %v4486 = vpack.c.b16 %v3226, %v3208
        %v4487 = vpack.c.b16 %v3227, %v3209
        %v4488 = vpack.c.b16 %v3228, %v3210
        %v4489 = vpack.c.b16 %v3229, %v3211
        %v4490 = vpack.c.b16 %v3230, %v3212
        %v4491 = vpack.c.b16 %v3231, %v3213
        %v4492 = vpack.c.b16 %v3232, %v3214
        %v4493 = vpack.c.b16 %v3233, %v3215
        %v4494 = vpack.c.b16 %v3234, %v3216
        %v4495 = vpack.c.b16 %v3235, %v3217
        %v4496 = vpack.c.b16 %v3236, %v3218
        %v4497 = vpack.c.b16 %v3255, %v3237
        %v4498 = vpack.c.b16 %v3256, %v3238
        %v4499 = vpack.c.b16 %v3257, %v3239
        %v4500 = vpack.c.b16 %v3258, %v3240
        %v4501 = vpack.c.b16 %v3259, %v3241
        %v4502 = vpack.c.b16 %v3260, %v3242
        %v4503 = vpack.c.b16 %v3261, %v3243
        %v4504 = vpack.c.b16 %v3262, %v3244
        %v4505 = vpack.c.b16 %v3263, %v3245
        %v4506 = vpack.c.b16 %v3264, %v3246
        %v4507 = vpack.c.b16 %v3265, %v3247
        %v4508 = vpack.c.b16 %v3266, %v3248
        %v4509 = vpack.c.b16 %v3267, %v3249
        %v4510 = vpack.c.b16 %v3268, %v3250
        %v4511 = vpack.c.b16 %v3269, %v3251
        %v4512 = vpack.c.b16 %v3270, %v3252
        %v4513 = vpack.c.b16 %v3271, %v3253
        %v4514 = vpack.c.b16 %v3272, %v3254
        %v4515 = vpack.c.b16 %v3291, %v3273
        %v4516 = vpack.c.b16 %v3292, %v3274
        %v4517 = vpack.c.b16 %v3293, %v3275
        %v4518 = vpack.c.b16 %v3294, %v3276
        %v4519 = vpack.c.b16 %v3295, %v3277
        %v4520 = vpack.c.b16 %v3296, %v3278
        %v4521 = vpack.c.b16 %v3297, %v3279
        %v4522 = vpack.c.b16 %v3298, %v3280
        %v4523 = vpack.c.b16 %v3299, %v3281
        %v4524 = vpack.c.b16 %v3300, %v3282
        %v4525 = vpack.c.b16 %v3301, %v3283
        %v4526 = vpack.c.b16 %v3302, %v3284
        %v4527 = vpack.c.b16 %v3303, %v3285
        %v4528 = vpack.c.b16 %v3304, %v3286
        %v4529 = vpack.c.b16 %v3305, %v3287
        %v4530 = vpack.c.b16 %v3306, %v3288
        %v4531 = vpack.c.b16 %v3307, %v3289
        %v4532 = vpack.c.b16 %v3308, %v3290
        %v4533 = vpack.c.b16 %v3327, %v3309
        %v4534 = vpack.c.b16 %v3328, %v3310
        %v4535 = vpack.c.b16 %v3329, %v3311
        %v4536 = vpack.c.b16 %v3330, %v3312
        %v4537 = vpack.c.b16 %v3331, %v3313
        %v4538 = vpack.c.b16 %v3332, %v3314
        %v4539 = vpack.c.b16 %v3333, %v3315
        %v4540 = vpack.c.b16 %v3334, %v3316
        %v4541 = vpack.c.b16 %v3335, %v3317
        %v4542 = vpack.c.b16 %v3336, %v3318
        %v4543 = vpack.c.b16 %v3337, %v3319
        %v4544 = vpack.c.b16 %v3338, %v3320
        %v4545 = vpack.c.b16 %v3339, %v3321
        %v4546 = vpack.c.b16 %v3340, %v3322
        %v4547 = vpack.c.b16 %v3341, %v3323
        %v4548 = vpack.c.b16 %v3342, %v3324
        %v4549 = vpack.c.b16 %v3343, %v3325
        %v4550 = vpack.c.b16 %v3344, %v3326
        %v4551 = vpack.c.b16 %v3363, %v3345
        %v4552 = vpack.c.b16 %v3364, %v3346
        %v4553 = vpack.c.b16 %v3365, %v3347
        %v4554 = vpack.c.b16 %v3366, %v3348
        %v4555 = vpack.c.b16 %v3367, %v3349
        %v4556 = vpack.c.b16 %v3368, %v3350
        %v4557 = vpack.c.b16 %v3369, %v3351
        %v4558 = vpack.c.b16 %v3370, %v3352
        %v4559 = vpack.c.b16 %v3371, %v3353
        %v4560 = vpack.c.b16 %v3372, %v3354
        %v4561 = vpack.c.b16 %v3373, %v3355
        %v4562 = vpack.c.b16 %v3374, %v3356
        %v4563 = vpack.c.b16 %v3375, %v3357
        %v4564 = vpack.c.b16 %v3376, %v3358
        %v4565 = vpack.c.b16 %v3377, %v3359
        %v4566 = vpack.c.b16 %v3378, %v3360
        %v4567 = vpack.c.b16 %v3379, %v3361
        %v4568 = vpack.c.b16 %v3380, %v3362
        %v4569 = vpack.c.b16 %v3399, %v3381
        %v4570 = vpack.c.b16 %v3400, %v3382
        %v4571 = vpack.c.b16 %v3401, %v3383
        %v4572 = vpack.c.b16 %v3402, %v3384
        %v4573 = vpack.c.b16 %v3403, %v3385
        %v4574 = vpack.c.b16 %v3404, %v3386
        %v4575 = vpack.c.b16 %v3405, %v3387
        %v4576 = vpack.c.b16 %v3406, %v3388
        %v4577 = vpack.c.b16 %v3407, %v3389
        %v4578 = vpack.c.b16 %v3408, %v3390
        %v4579 = vpack.c.b16 %v3409, %v3391
        %v4580 = vpack.c.b16 %v3410, %v3392
        %v4581 = vpack.c.b16 %v3411, %v3393
        %v4582 = vpack.c.b16 %v3412, %v3394
        %v4583 = vpack.c.b16 %v3413, %v3395
        %v4584 = vpack.c.b16 %v3414, %v3396
        %v4585 = vpack.c.b16 %v3415, %v3397
        %v4586 = vpack.c.b16 %v3416, %v3398
        %v4587 = vpack.c.b16 %v3435, %v3417
        %v4588 = vpack.c.b16 %v3436, %v3418
        %v4589 = vpack.c.b16 %v3437, %v3419
        %v4590 = vpack.c.b16 %v3438, %v3420
        %v4591 = vpack.c.b16 %v3439, %v3421
        %v4592 = vpack.c.b16 %v3440, %v3422
        %v4593 = vpack.c.b16 %v3441, %v3423
        %v4594 = vpack.c.b16 %v3442, %v3424
        %v4595 = vpack.c.b16 %v3443, %v3425
        %v4596 = vpack.c.b16 %v3444, %v3426
        %v4597 = vpack.c.b16 %v3445, %v3427
        %v4598 = vpack.c.b16 %v3446, %v3428
        %v4599 = vpack.c.b16 %v3447, %v3429
        %v4600 = vpack.c.b16 %v3448, %v3430
        %v4601 = vpack.c.b16 %v3449, %v3431
        %v4602 = vpack.c.b16 %v3450, %v3432
        %v4603 = vpack.c.b16 %v3451, %v3433
        %v4604 = vpack.c.b16 %v3452, %v3434
        %v4605 = vpack.c.b16 %v3471, %v3453
        %v4606 = vpack.c.b16 %v3472, %v3454
        %v4607 = vpack.c.b16 %v3473, %v3455
        %v4608 = vpack.c.b16 %v3474, %v3456
        %v4609 = vpack.c.b16 %v3475, %v3457
        %v4610 = vpack.c.b16 %v3476, %v3458
        %v4611 = vpack.c.b16 %v3477, %v3459
        %v4612 = vpack.c.b16 %v3478, %v3460
        %v4613 = vpack.c.b16 %v3479, %v3461
        %v4614 = vpack.c.b16 %v3480, %v3462
        %v4615 = vpack.c.b16 %v3481, %v3463
        %v4616 = vpack.c.b16 %v3482, %v3464
        %v4617 = vpack.c.b16 %v3483, %v3465
        %v4618 = vpack.c.b16 %v3484, %v3466
        %v4619 = vpack.c.b16 %v3485, %v3467
        %v4620 = vpack.c.b16 %v3486, %v3468
        %v4621 = vpack.c.b16 %v3487, %v3469
        %v4622 = vpack.c.b16 %v3488, %v3470
        %v4623 = vpack.c.b16 %v3507, %v3489
        %v4624 = vpack.c.b16 %v3508, %v3490
        %v4625 = vpack.c.b16 %v3509, %v3491
        %v4626 = vpack.c.b16 %v3510, %v3492
        %v4627 = vpack.c.b16 %v3511, %v3493
        %v4628 = vpack.c.b16 %v3512, %v3494
        %v4629 = vpack.c.b16 %v3513, %v3495
        %v4630 = vpack.c.b16 %v3514, %v3496
        %v4631 = vpack.c.b16 %v3515, %v3497
        %v4632 = vpack.c.b16 %v3516, %v3498
        %v4633 = vpack.c.b16 %v3517, %v3499
        %v4634 = vpack.c.b16 %v3518, %v3500
        %v4635 = vpack.c.b16 %v3519, %v3501
        %v4636 = vpack.c.b16 %v3520, %v3502
        %v4637 = vpack.c.b16 %v3521, %v3503
        %v4638 = vpack.c.b16 %v3522, %v3504
        %v4639 = vpack.c.b16 %v3523, %v3505
        %v4640 = vpack.c.b16 %v3524, %v3506
        %v4641 = vpack.c.b16 %v3543, %v3525
        %v4642 = vpack.c.b16 %v3544, %v3526
        %v4643 = vpack.c.b16 %v3545, %v3527
        %v4644 = vpack.c.b16 %v3546, %v3528
        %v4645 = vpack.c.b16 %v3547, %v3529
        %v4646 = vpack.c.b16 %v3548, %v3530
        %v4647 = vpack.c.b16 %v3549, %v3531
        %v4648 = vpack.c.b16 %v3550, %v3532
        %v4649 = vpack.c.b16 %v3551, %v3533
        %v4650 = vpack.c.b16 %v3552, %v3534
        %v4651 = vpack.c.b16 %v3553, %v3535
        %v4652 = vpack.c.b16 %v3554, %v3536
        %v4653 = vpack.c.b16 %v3555, %v3537
        %v4654 = vpack.c.b16 %v3556, %v3538
        %v4655 = vpack.c.b16 %v3557, %v3539
        %v4656 = vpack.c.b16 %v3558, %v3540
        %v4657 = vpack.c.b16 %v3559, %v3541
        %v4658 = vpack.c.b16 %v3560, %v3542
        %v4659 = vpack.c.b16 %v3579, %v3561
        %v4660 = vpack.c.b16 %v3580, %v3562
        %v4661 = vpack.c.b16 %v3581, %v3563
        %v4662 = vpack.c.b16 %v3582, %v3564
        %v4663 = vpack.c.b16 %v3583, %v3565
        %v4664 = vpack.c.b16 %v3584, %v3566
        %v4665 = vpack.c.b16 %v3585, %v3567
        %v4666 = vpack.c.b16 %v3586, %v3568
        %v4667 = vpack.c.b16 %v3587, %v3569
        %v4668 = vpack.c.b16 %v3588, %v3570
        %v4669 = vpack.c.b16 %v3589, %v3571
        %v4670 = vpack.c.b16 %v3590, %v3572
        %v4671 = vpack.c.b16 %v3591, %v3573
        %v4672 = vpack.c.b16 %v3592, %v3574
        %v4673 = vpack.c.b16 %v3593, %v3575
        %v4674 = vpack.c.b16 %v3594, %v3576
        %v4675 = vpack.c.b16 %v3595, %v3577
        %v4676 = vpack.c.b16 %v3596, %v3578
        %v4677 = vpack.c.b16 %v3615, %v3597
        %v4678 = vpack.c.b16 %v3616, %v3598
        %v4679 = vpack.c.b16 %v3617, %v3599
        %v4680 = vpack.c.b16 %v3618, %v3600
        %v4681 = vpack.c.b16 %v3619, %v3601
        %v4682 = vpack.c.b16 %v3620, %v3602
        %v4683 = vpack.c.b16 %v3621, %v3603
        %v4684 = vpack.c.b16 %v3622, %v3604
        %v4685 = vpack.c.b16 %v3623, %v3605
        %v4686 = vpack.c.b16 %v3624, %v3606
        %v4687 = vpack.c.b16 %v3625, %v3607
        %v4688 = vpack.c.b16 %v3626, %v3608
        %v4689 = vpack.c.b16 %v3627, %v3609
        %v4690 = vpack.c.b16 %v3628, %v3610
        %v4691 = vpack.c.b16 %v3629, %v3611
        %v4692 = vpack.c.b16 %v3630, %v3612
        %v4693 = vpack.c.b16 %v3631, %v3613
        %v4694 = vpack.c.b16 %v3632, %v3614
        %v4695 = vpack.c.b16 %v3651, %v3633
        %v4696 = vpack.c.b16 %v3652, %v3634
        %v4697 = vpack.c.b16 %v3653, %v3635
        %v4698 = vpack.c.b16 %v3654, %v3636
        %v4699 = vpack.c.b16 %v3655, %v3637
        %v4700 = vpack.c.b16 %v3656, %v3638
        %v4701 = vpack.c.b16 %v3657, %v3639
        %v4702 = vpack.c.b16 %v3658, %v3640
        %v4703 = vpack.c.b16 %v3659, %v3641
        %v4704 = vpack.c.b16 %v3660, %v3642
        %v4705 = vpack.c.b16 %v3661, %v3643
        %v4706 = vpack.c.b16 %v3662, %v3644
        %v4707 = vpack.c.b16 %v3663, %v3645
        %v4708 = vpack.c.b16 %v3664, %v3646
        %v4709 = vpack.c.b16 %v3665, %v3647
        %v4710 = vpack.c.b16 %v3666, %v3648
        %v4711 = vpack.c.b16 %v3667, %v3649
        %v4712 = vpack.c.b16 %v3668, %v3650
        %v4713 = vpack.c.b16 %v3687, %v3669
        %v4714 = vpack.c.b16 %v3688, %v3670
        %v4715 = vpack.c.b16 %v3689, %v3671
        %v4716 = vpack.c.b16 %v3690, %v3672
        %v4717 = vpack.c.b16 %v3691, %v3673
        %v4718 = vpack.c.b16 %v3692, %v3674
        %v4719 = vpack.c.b16 %v3693, %v3675
        %v4720 = vpack.c.b16 %v3694, %v3676
        %v4721 = vpack.c.b16 %v3695, %v3677
        %v4722 = vpack.c.b16 %v3696, %v3678
        %v4723 = vpack.c.b16 %v3697, %v3679
        %v4724 = vpack.c.b16 %v3698, %v3680
        %v4725 = vpack.c.b16 %v3699, %v3681
        %v4726 = vpack.c.b16 %v3700, %v3682
        %v4727 = vpack.c.b16 %v3701, %v3683
        %v4728 = vpack.c.b16 %v3702, %v3684
        %v4729 = vpack.c.b16 %v3703, %v3685
        %v4730 = vpack.c.b16 %v3704, %v3686
        %v4731 = vpack.c.b16 %v3723, %v3705
        %v4732 = vpack.c.b16 %v3724, %v3706
        %v4733 = vpack.c.b16 %v3725, %v3707
        %v4734 = vpack.c.b16 %v3726, %v3708
        %v4735 = vpack.c.b16 %v3727, %v3709
        %v4736 = vpack.c.b16 %v3728, %v3710
        %v4737 = vpack.c.b16 %v3729, %v3711
        %v4738 = vpack.c.b16 %v3730, %v3712
        %v4739 = vpack.c.b16 %v3731, %v3713
        %v4740 = vpack.c.b16 %v3732, %v3714
        %v4741 = vpack.c.b16 %v3733, %v3715
        %v4742 = vpack.c.b16 %v3734, %v3716
        %v4743 = vpack.c.b16 %v3735, %v3717
        %v4744 = vpack.c.b16 %v3736, %v3718
        %v4745 = vpack.c.b16 %v3737, %v3719
        %v4746 = vpack.c.b16 %v3738, %v3720
        %v4747 = vpack.c.b16 %v3739, %v3721
        %v4748 = vpack.c.b16 %v3740, %v3722
        %v4749 = vpack.c.b16 %v3759, %v3741
        %v4750 = vpack.c.b16 %v3760, %v3742
        %v4751 = vpack.c.b16 %v3761, %v3743
        %v4752 = vpack.c.b16 %v3762, %v3744
        %v4753 = vpack.c.b16 %v3763, %v3745
        %v4754 = vpack.c.b16 %v3764, %v3746
        %v4755 = vpack.c.b16 %v3765, %v3747
        %v4756 = vpack.c.b16 %v3766, %v3748
        %v4757 = vpack.c.b16 %v3767, %v3749
        %v4758 = vpack.c.b16 %v3768, %v3750
        %v4759 = vpack.c.b16 %v3769, %v3751
        %v4760 = vpack.c.b16 %v3770, %v3752
        %v4761 = vpack.c.b16 %v3771, %v3753
        %v4762 = vpack.c.b16 %v3772, %v3754
        %v4763 = vpack.c.b16 %v3773, %v3755
        %v4764 = vpack.c.b16 %v3774, %v3756
        %v4765 = vpack.c.b16 %v3775, %v3757
        %v4766 = vpack.c.b16 %v3776, %v3758
        %v4767 = vpack.c.b16 %v3795, %v3777
        %v4768 = vpack.c.b16 %v3796, %v3778
        %v4769 = vpack.c.b16 %v3797, %v3779
        %v4770 = vpack.c.b16 %v3798, %v3780
        %v4771 = vpack.c.b16 %v3799, %v3781
        %v4772 = vpack.c.b16 %v3800, %v3782
        %v4773 = vpack.c.b16 %v3801, %v3783
        %v4774 = vpack.c.b16 %v3802, %v3784
        %v4775 = vpack.c.b16 %v3803, %v3785
        %v4776 = vpack.c.b16 %v3804, %v3786
        %v4777 = vpack.c.b16 %v3805, %v3787
        %v4778 = vpack.c.b16 %v3806, %v3788
        %v4779 = vpack.c.b16 %v3807, %v3789
        %v4780 = vpack.c.b16 %v3808, %v3790
        %v4781 = vpack.c.b16 %v3809, %v3791
        %v4782 = vpack.c.b16 %v3810, %v3792
        %v4783 = vpack.c.b16 %v3811, %v3793
        %v4784 = vpack.c.b16 %v3812, %v3794
        %v4785 = vpack.c.b16 %v3831, %v3813
        %v4786 = vpack.c.b16 %v3832, %v3814
        %v4787 = vpack.c.b16 %v3833, %v3815
        %v4788 = vpack.c.b16 %v3834, %v3816
        %v4789 = vpack.c.b16 %v3835, %v3817
        %v4790 = vpack.c.b16 %v3836, %v3818
        %v4791 = vpack.c.b16 %v3837, %v3819
        %v4792 = vpack.c.b16 %v3838, %v3820
        %v4793 = vpack.c.b16 %v3839, %v3821
        %v4794 = vpack.c.b16 %v3840, %v3822
        %v4795 = vpack.c.b16 %v3841, %v3823
        %v4796 = vpack.c.b16 %v3842, %v3824
        %v4797 = vpack.c.b16 %v3843, %v3825
        %v4798 = vpack.c.b16 %v3844, %v3826
        %v4799 = vpack.c.b16 %v3845, %v3827
        %v4800 = vpack.c.b16 %v3846, %v3828
        %v4801 = vpack.c.b16 %v3847, %v3829
        %v4802 = vpack.c.b16 %v3848, %v3830
        %v4803 = vpack.c.b16 %v3867, %v3849
        %v4804 = vpack.c.b16 %v3868, %v3850
        %v4805 = vpack.c.b16 %v3869, %v3851
        %v4806 = vpack.c.b16 %v3870, %v3852
        %v4807 = vpack.c.b16 %v3871, %v3853
        %v4808 = vpack.c.b16 %v3872, %v3854
        %v4809 = vpack.c.b16 %v3873, %v3855
        %v4810 = vpack.c.b16 %v3874, %v3856
        %v4811 = vpack.c.b16 %v3875, %v3857
        %v4812 = vpack.c.b16 %v3876, %v3858
        %v4813 = vpack.c.b16 %v3877, %v3859
        %v4814 = vpack.c.b16 %v3878, %v3860
        %v4815 = vpack.c.b16 %v3879, %v3861
        %v4816 = vpack.c.b16 %v3880, %v3862
        %v4817 = vpack.c.b16 %v3881, %v3863
        %v4818 = vpack.c.b16 %v3882, %v3864
        %v4819 = vpack.c.b16 %v3883, %v3865
        %v4820 = vpack.c.b16 %v3884, %v3866
        %v4821 = vpack.c.b16 %v3903, %v3885
        %v4822 = vpack.c.b16 %v3904, %v3886
        %v4823 = vpack.c.b16 %v3905, %v3887
        %v4824 = vpack.c.b16 %v3906, %v3888
        %v4825 = vpack.c.b16 %v3907, %v3889
        %v4826 = vpack.c.b16 %v3908, %v3890
        %v4827 = vpack.c.b16 %v3909, %v3891
        %v4828 = vpack.c.b16 %v3910, %v3892
        %v4829 = vpack.c.b16 %v3911, %v3893
        %v4830 = vpack.c.b16 %v3912, %v3894
        %v4831 = vpack.c.b16 %v3913, %v3895
        %v4832 = vpack.c.b16 %v3914, %v3896
        %v4833 = vpack.c.b16 %v3915, %v3897
        %v4834 = vpack.c.b16 %v3916, %v3898
        %v4835 = vpack.c.b16 %v3917, %v3899
        %v4836 = vpack.c.b16 %v3918, %v3900
        %v4837 = vpack.c.b16 %v3919, %v3901
        %v4838 = vpack.c.b16 %v3920, %v3902
        %v4839 = vpack.c.b16 %v3939, %v3921
        %v4840 = vpack.c.b16 %v3940, %v3922
        %v4841 = vpack.c.b16 %v3941, %v3923
        %v4842 = vpack.c.b16 %v3942, %v3924
        %v4843 = vpack.c.b16 %v3943, %v3925
        %v4844 = vpack.c.b16 %v3944, %v3926
        %v4845 = vpack.c.b16 %v3945, %v3927
        %v4846 = vpack.c.b16 %v3946, %v3928
        %v4847 = vpack.c.b16 %v3947, %v3929
        %v4848 = vpack.c.b16 %v3948, %v3930
        %v4849 = vpack.c.b16 %v3949, %v3931
        %v4850 = vpack.c.b16 %v3950, %v3932
        %v4851 = vpack.c.b16 %v3951, %v3933
        %v4852 = vpack.c.b16 %v3952, %v3934
        %v4853 = vpack.c.b16 %v3953, %v3935
        %v4854 = vpack.c.b16 %v3954, %v3936
        %v4855 = vpack.c.b16 %v3955, %v3937
        %v4856 = vpack.c.b16 %v3956, %v3938
        %v4857 = vpack.c.b16 %v3975, %v3957
        %v4858 = vpack.c.b16 %v3976, %v3958
        %v4859 = vpack.c.b16 %v3977, %v3959
        %v4860 = vpack.c.b16 %v3978, %v3960
        %v4861 = vpack.c.b16 %v3979, %v3961
        %v4862 = vpack.c.b16 %v3980, %v3962
        %v4863 = vpack.c.b16 %v3981, %v3963
        %v4864 = vpack.c.b16 %v3982, %v3964
        %v4865 = vpack.c.b16 %v3983, %v3965
        %v4866 = vpack.c.b16 %v3984, %v3966
        %v4867 = vpack.c.b16 %v3985, %v3967
        %v4868 = vpack.c.b16 %v3986, %v3968
        %v4869 = vpack.c.b16 %v3987, %v3969
        %v4870 = vpack.c.b16 %v3988, %v3970
        %v4871 = vpack.c.b16 %v3989, %v3971
        %v4872 = vpack.c.b16 %v3990, %v3972
        %v4873 = vpack.c.b16 %v3991, %v3973
        %v4874 = vpack.c.b16 %v3992, %v3974
        %v4875 = vpack.c.b16 %v4011, %v3993
        %v4876 = vpack.c.b16 %v4012, %v3994
        %v4877 = vpack.c.b16 %v4013, %v3995
        %v4878 = vpack.c.b16 %v4014, %v3996
        %v4879 = vpack.c.b16 %v4015, %v3997
        %v4880 = vpack.c.b16 %v4016, %v3998
        %v4881 = vpack.c.b16 %v4017, %v3999
        %v4882 = vpack.c.b16 %v4018, %v4000
        %v4883 = vpack.c.b16 %v4019, %v4001
        %v4884 = vpack.c.b16 %v4020, %v4002
        %v4885 = vpack.c.b16 %v4021, %v4003
        %v4886 = vpack.c.b16 %v4022, %v4004
        %v4887 = vpack.c.b16 %v4023, %v4005
        %v4888 = vpack.c.b16 %v4024, %v4006
        %v4889 = vpack.c.b16 %v4025, %v4007
        %v4890 = vpack.c.b16 %v4026, %v4008
        %v4891 = vpack.c.b16 %v4027, %v4009
        %v4892 = vpack.c.b16 %v4028, %v4010
        %5757 = vmatprep.subr.bf16.mxu0 %v4030
        %5758 = vmatpush1.bf16.msra.mxu0 %v4029
        %5759 = vmatprep.subr.bf16.mxu0 %v4048
        %5760 = vmatpush1.bf16.msra.mxu0 %v4047
        %5761 = vmatprep.subr.bf16.mxu0 %v4066
        %5762 = vmatpush1.bf16.msra.mxu0 %v4065
        %5763 = vmatprep.subr.bf16.mxu0 %v4084
        %5764 = vmatpush1.bf16.msra.mxu0 %v4083
        %5765 = vmatprep.subr.bf16.mxu0 %v4102
        %5766 = vmatpush1.bf16.msra.mxu0 %v4101
        %5767 = vmatprep.subr.bf16.mxu0 %v4120
        %5768 = vmatpush1.bf16.msra.mxu0 %v4119
        %5769 = vmatprep.subr.bf16.mxu0 %v4138
        %5770 = vmatpush1.bf16.msra.mxu0 %v4137
        %5771 = vmatprep.subr.bf16.mxu0 %v4156
        %5772 = vmatpush1.bf16.msra.mxu0 %v4155
        %5773 = vmatprep.subr.bf16.mxu0 %v4174
        %5774 = vmatpush1.bf16.msra.mxu0 %v4173
        %5775 = vmatprep.subr.bf16.mxu0 %v4192
        %5776 = vmatpush1.bf16.msra.mxu0 %v4191
        %5777 = vmatprep.subr.bf16.mxu0 %v4210
        %5778 = vmatpush1.bf16.msra.mxu0 %v4209
        %5779 = vmatprep.subr.bf16.mxu0 %v4228
        %5780 = vmatpush1.bf16.msra.mxu0 %v4227
        %5781 = vmatprep.subr.bf16.mxu0 %v4246
        %5782 = vmatpush1.bf16.msra.mxu0 %v4245
        %5783 = vmatprep.subr.bf16.mxu0 %v4264
        %5784 = vmatpush1.bf16.msra.mxu0 %v4263
        %5785 = vmatprep.subr.bf16.mxu0 %v4282
        %5786 = vmatpush1.bf16.msra.mxu0 %v4281
        %5787 = vmatprep.subr.bf16.mxu0 %v4300
        %5788 = vmatpush1.bf16.msra.mxu0 %v4299
        %5789 = vmatprep.mubr.bf16.mxu0 %v451
        %5790 = vmatmul.mubr.bf16.gmra.mrb[0].mxu0 %v450
        %v5791 = vpop.f32.mrb[0].mxu0
        %v5792 = vadd.f32 %v1350, %v5791
        %v5793 = vpop.f32.mrb[0].mxu0
        %v5794 = vadd.f32 %v1354, %v5793
        %v5795 = vpop.f32.mrb[0].mxu0
        %v5796 = vpop.f32.mrb[0].mxu0
        %5797 = vdwg.mxu0
        %5798 = vmatprep.subr.bf16.mxu0 %v4318
        %5799 = vmatpush1.bf16.msra.mxu0 %v4317
        %5800 = vmatprep.subr.bf16.mxu0 %v4336
        %5801 = vmatpush1.bf16.msra.mxu0 %v4335
        %5802 = vmatprep.subr.bf16.mxu0 %v4354
        %5803 = vmatpush1.bf16.msra.mxu0 %v4353
        %5804 = vmatprep.subr.bf16.mxu0 %v4372
        %5805 = vmatpush1.bf16.msra.mxu0 %v4371
        %5806 = vmatprep.subr.bf16.mxu0 %v4390
        %5807 = vmatpush1.bf16.msra.mxu0 %v4389
        %5808 = vmatprep.subr.bf16.mxu0 %v4408
        %5809 = vmatpush1.bf16.msra.mxu0 %v4407
        %5810 = vmatprep.subr.bf16.mxu0 %v4426
        %5811 = vmatpush1.bf16.msra.mxu0 %v4425
        %5812 = vmatprep.subr.bf16.mxu0 %v4444
        %5813 = vmatpush1.bf16.msra.mxu0 %v4443
        %5814 = vmatprep.subr.bf16.mxu0 %v4462
        %5815 = vmatpush1.bf16.msra.mxu0 %v4461
        %5816 = vmatprep.subr.bf16.mxu0 %v4480
        %5817 = vmatpush1.bf16.msra.mxu0 %v4479
        %5818 = vmatprep.subr.bf16.mxu0 %v4498
        %5819 = vmatpush1.bf16.msra.mxu0 %v4497
        %5820 = vmatprep.subr.bf16.mxu0 %v4516
        %5821 = vmatpush1.bf16.msra.mxu0 %v4515
        %5822 = vmatprep.subr.bf16.mxu0 %v4534
        %5823 = vmatpush1.bf16.msra.mxu0 %v4533
        %5824 = vmatprep.subr.bf16.mxu0 %v4552
        %5825 = vmatpush1.bf16.msra.mxu0 %v4551
        %5826 = vmatprep.subr.bf16.mxu0 %v4570
        %5827 = vmatpush1.bf16.msra.mxu0 %v4569
        %5828 = vmatprep.subr.bf16.mxu0 %v4588
        %5829 = vmatpush1.bf16.msra.mxu0 %v4587
        %5830 = vmatprep.mubr.bf16.mxu0 %v453
        %5831 = vmatmul.mubr.bf16.gmra.mrb[0].mxu0 %v452
        %v5832 = vpop.f32.mrb[0].mxu0
        %v5833 = vadd.f32 %v5792, %v5832
        %v5834 = vpop.f32.mrb[0].mxu0
        %v5835 = vadd.f32 %v5794, %v5834
        %v5836 = vpop.f32.mrb[0].mxu0
        %v5837 = vpop.f32.mrb[0].mxu0
        %5838 = vdwg.mxu0
        %5839 = vmatprep.subr.bf16.mxu0 %v4606
        %5840 = vmatpush1.bf16.msra.mxu0 %v4605
        %5841 = vmatprep.subr.bf16.mxu0 %v4624
        %5842 = vmatpush1.bf16.msra.mxu0 %v4623
        %5843 = vmatprep.subr.bf16.mxu0 %v4642
        %5844 = vmatpush1.bf16.msra.mxu0 %v4641
        %5845 = vmatprep.subr.bf16.mxu0 %v4660
        %5846 = vmatpush1.bf16.msra.mxu0 %v4659
        %5847 = vmatprep.subr.bf16.mxu0 %v4678
        %5848 = vmatpush1.bf16.msra.mxu0 %v4677
        %5849 = vmatprep.subr.bf16.mxu0 %v4696
        %5850 = vmatpush1.bf16.msra.mxu0 %v4695
        %5851 = vmatprep.subr.bf16.mxu0 %v4714
        %5852 = vmatpush1.bf16.msra.mxu0 %v4713
        %5853 = vmatprep.subr.bf16.mxu0 %v4732
        %5854 = vmatpush1.bf16.msra.mxu0 %v4731
        %5855 = vmatprep.subr.bf16.mxu0 %v4750
        %5856 = vmatpush1.bf16.msra.mxu0 %v4749
        %5857 = vmatprep.subr.bf16.mxu0 %v4768
        %5858 = vmatpush1.bf16.msra.mxu0 %v4767
        %5859 = vmatprep.subr.bf16.mxu0 %v4786
        %5860 = vmatpush1.bf16.msra.mxu0 %v4785
        %5861 = vmatprep.subr.bf16.mxu0 %v4804
        %5862 = vmatpush1.bf16.msra.mxu0 %v4803
        %5863 = vmatprep.subr.bf16.mxu0 %v4822
        %5864 = vmatpush1.bf16.msra.mxu0 %v4821
        %5865 = vmatprep.subr.bf16.mxu0 %v4840
        %5866 = vmatpush1.bf16.msra.mxu0 %v4839
        %5867 = vmatprep.subr.bf16.mxu0 %v4858
        %5868 = vmatpush1.bf16.msra.mxu0 %v4857
        %5869 = vmatprep.subr.bf16.mxu0 %v4876
        %5870 = vmatpush1.bf16.msra.mxu0 %v4875
        %5871 = vmatprep.mubr.bf16.mxu0 %v455
        %5872 = vmatmul.mubr.bf16.gmra.mrb[0].mxu0 %v454
        %v5873 = vpop.f32.mrb[0].mxu0
        %v5874 = vadd.f32 %v5833, %v5873
        %v5875 = vpop.f32.mrb[0].mxu0
        %v5876 = vadd.f32 %v5835, %v5875
        %v5877 = vpop.f32.mrb[0].mxu0
        %v5878 = vpop.f32.mrb[0].mxu0
        %5879 = vdwg.mxu0
        %5880 = vmatprep.subr.bf16.mxu0 %v4032
        %5881 = vmatpush1.bf16.msra.mxu0 %v4031
        %5882 = vmatprep.subr.bf16.mxu0 %v4050
        %5883 = vmatpush1.bf16.msra.mxu0 %v4049
        %5884 = vmatprep.subr.bf16.mxu0 %v4068
        %5885 = vmatpush1.bf16.msra.mxu0 %v4067
        %5886 = vmatprep.subr.bf16.mxu0 %v4086
        %5887 = vmatpush1.bf16.msra.mxu0 %v4085
        %5888 = vmatprep.subr.bf16.mxu0 %v4104
        %5889 = vmatpush1.bf16.msra.mxu0 %v4103
        %5890 = vmatprep.subr.bf16.mxu0 %v4122
        %5891 = vmatpush1.bf16.msra.mxu0 %v4121
        %5892 = vmatprep.subr.bf16.mxu0 %v4140
        %5893 = vmatpush1.bf16.msra.mxu0 %v4139
        %5894 = vmatprep.subr.bf16.mxu0 %v4158
        %5895 = vmatpush1.bf16.msra.mxu0 %v4157
        %5896 = vmatprep.subr.bf16.mxu0 %v4176
        %5897 = vmatpush1.bf16.msra.mxu0 %v4175
        %5898 = vmatprep.subr.bf16.mxu0 %v4194
        %5899 = vmatpush1.bf16.msra.mxu0 %v4193
        %5900 = vmatprep.subr.bf16.mxu0 %v4212
        %5901 = vmatpush1.bf16.msra.mxu0 %v4211
        %5902 = vmatprep.subr.bf16.mxu0 %v4230
        %5903 = vmatpush1.bf16.msra.mxu0 %v4229
        %5904 = vmatprep.subr.bf16.mxu0 %v4248
        %5905 = vmatpush1.bf16.msra.mxu0 %v4247
        %5906 = vmatprep.subr.bf16.mxu0 %v4266
        %5907 = vmatpush1.bf16.msra.mxu0 %v4265
        %5908 = vmatprep.subr.bf16.mxu0 %v4284
        %5909 = vmatpush1.bf16.msra.mxu0 %v4283
        %5910 = vmatprep.subr.bf16.mxu0 %v4302
        %5911 = vmatpush1.bf16.msra.mxu0 %v4301
        %5912 = vmatprep.mubr.bf16.mxu0 %v451
        %5913 = vmatmul.mubr.bf16.gmra.mrb[0].mxu0 %v450
        %v5914 = vpop.f32.mrb[0].mxu0
        %v5915 = vadd.f32 %v1358, %v5914
        %v5916 = vpop.f32.mrb[0].mxu0
        %v5917 = vadd.f32 %v1362, %v5916
        %v5918 = vpop.f32.mrb[0].mxu0
        %v5919 = vpop.f32.mrb[0].mxu0
        %5920 = vdwg.mxu0
        %5921 = vmatprep.subr.bf16.mxu0 %v4320
        %5922 = vmatpush1.bf16.msra.mxu0 %v4319
        %5923 = vmatprep.subr.bf16.mxu0 %v4338
        %5924 = vmatpush1.bf16.msra.mxu0 %v4337
        %5925 = vmatprep.subr.bf16.mxu0 %v4356
        %5926 = vmatpush1.bf16.msra.mxu0 %v4355
        %5927 = vmatprep.subr.bf16.mxu0 %v4374
        %5928 = vmatpush1.bf16.msra.mxu0 %v4373
        %5929 = vmatprep.subr.bf16.mxu0 %v4392
        %5930 = vmatpush1.bf16.msra.mxu0 %v4391
        %5931 = vmatprep.subr.bf16.mxu0 %v4410
        %5932 = vmatpush1.bf16.msra.mxu0 %v4409
        %5933 = vmatprep.subr.bf16.mxu0 %v4428
        %5934 = vmatpush1.bf16.msra.mxu0 %v4427
        %5935 = vmatprep.subr.bf16.mxu0 %v4446
        %5936 = vmatpush1.bf16.msra.mxu0 %v4445
        %5937 = vmatprep.subr.bf16.mxu0 %v4464
        %5938 = vmatpush1.bf16.msra.mxu0 %v4463
        %5939 = vmatprep.subr.bf16.mxu0 %v4482
        %5940 = vmatpush1.bf16.msra.mxu0 %v4481
        %5941 = vmatprep.subr.bf16.mxu0 %v4500
        %5942 = vmatpush1.bf16.msra.mxu0 %v4499
        %5943 = vmatprep.subr.bf16.mxu0 %v4518
        %5944 = vmatpush1.bf16.msra.mxu0 %v4517
        %5945 = vmatprep.subr.bf16.mxu0 %v4536
        %5946 = vmatpush1.bf16.msra.mxu0 %v4535
        %5947 = vmatprep.subr.bf16.mxu0 %v4554
        %5948 = vmatpush1.bf16.msra.mxu0 %v4553
        %5949 = vmatprep.subr.bf16.mxu0 %v4572
        %5950 = vmatpush1.bf16.msra.mxu0 %v4571
        %5951 = vmatprep.subr.bf16.mxu0 %v4590
        %5952 = vmatpush1.bf16.msra.mxu0 %v4589
        %5953 = vmatprep.mubr.bf16.mxu0 %v453
        %5954 = vmatmul.mubr.bf16.gmra.mrb[0].mxu0 %v452
        %v5955 = vpop.f32.mrb[0].mxu0
        %v5956 = vadd.f32 %v5915, %v5955
        %v5957 = vpop.f32.mrb[0].mxu0
        %v5958 = vadd.f32 %v5917, %v5957
        %v5959 = vpop.f32.mrb[0].mxu0
        %v5960 = vpop.f32.mrb[0].mxu0
        %5961 = vdwg.mxu0
        %5962 = vmatprep.subr.bf16.mxu0 %v4608
        %5963 = vmatpush1.bf16.msra.mxu0 %v4607
        %5964 = vmatprep.subr.bf16.mxu0 %v4626
        %5965 = vmatpush1.bf16.msra.mxu0 %v4625
        %5966 = vmatprep.subr.bf16.mxu0 %v4644
        %5967 = vmatpush1.bf16.msra.mxu0 %v4643
        %5968 = vmatprep.subr.bf16.mxu0 %v4662
        %5969 = vmatpush1.bf16.msra.mxu0 %v4661
        %5970 = vmatprep.subr.bf16.mxu0 %v4680
        %5971 = vmatpush1.bf16.msra.mxu0 %v4679
        %5972 = vmatprep.subr.bf16.mxu0 %v4698
        %5973 = vmatpush1.bf16.msra.mxu0 %v4697
        %5974 = vmatprep.subr.bf16.mxu0 %v4716
        %5975 = vmatpush1.bf16.msra.mxu0 %v4715
        %5976 = vmatprep.subr.bf16.mxu0 %v4734
        %5977 = vmatpush1.bf16.msra.mxu0 %v4733
        %5978 = vmatprep.subr.bf16.mxu0 %v4752
        %5979 = vmatpush1.bf16.msra.mxu0 %v4751
        %5980 = vmatprep.subr.bf16.mxu0 %v4770
        %5981 = vmatpush1.bf16.msra.mxu0 %v4769
        %5982 = vmatprep.subr.bf16.mxu0 %v4788
        %5983 = vmatpush1.bf16.msra.mxu0 %v4787
        %5984 = vmatprep.subr.bf16.mxu0 %v4806
        %5985 = vmatpush1.bf16.msra.mxu0 %v4805
        %5986 = vmatprep.subr.bf16.mxu0 %v4824
        %5987 = vmatpush1.bf16.msra.mxu0 %v4823
        %5988 = vmatprep.subr.bf16.mxu0 %v4842
        %5989 = vmatpush1.bf16.msra.mxu0 %v4841
        %5990 = vmatprep.subr.bf16.mxu0 %v4860
        %5991 = vmatpush1.bf16.msra.mxu0 %v4859
        %5992 = vmatprep.subr.bf16.mxu0 %v4878
        %5993 = vmatpush1.bf16.msra.mxu0 %v4877
        %5994 = vmatprep.mubr.bf16.mxu0 %v455
        %5995 = vmatmul.mubr.bf16.gmra.mrb[0].mxu0 %v454
        %v5996 = vpop.f32.mrb[0].mxu0
        %v5997 = vadd.f32 %v5956, %v5996
        %v5998 = vpop.f32.mrb[0].mxu0
        %v5999 = vadd.f32 %v5958, %v5998
        %v6000 = vpop.f32.mrb[0].mxu0
        %v6001 = vpop.f32.mrb[0].mxu0
        %6002 = vdwg.mxu0
        %6003 = vmatprep.subr.bf16.mxu0 %v4034
        %6004 = vmatpush1.bf16.msra.mxu0 %v4033
        %6005 = vmatprep.subr.bf16.mxu0 %v4052
        %6006 = vmatpush1.bf16.msra.mxu0 %v4051
        %6007 = vmatprep.subr.bf16.mxu0 %v4070
        %6008 = vmatpush1.bf16.msra.mxu0 %v4069
        %6009 = vmatprep.subr.bf16.mxu0 %v4088
        %6010 = vmatpush1.bf16.msra.mxu0 %v4087
        %6011 = vmatprep.subr.bf16.mxu0 %v4106
        %6012 = vmatpush1.bf16.msra.mxu0 %v4105
        %6013 = vmatprep.subr.bf16.mxu0 %v4124
        %6014 = vmatpush1.bf16.msra.mxu0 %v4123
        %6015 = vmatprep.subr.bf16.mxu0 %v4142
        %6016 = vmatpush1.bf16.msra.mxu0 %v4141
        %6017 = vmatprep.subr.bf16.mxu0 %v4160
        %6018 = vmatpush1.bf16.msra.mxu0 %v4159
        %6019 = vmatprep.subr.bf16.mxu0 %v4178
        %6020 = vmatpush1.bf16.msra.mxu0 %v4177
        %6021 = vmatprep.subr.bf16.mxu0 %v4196
        %6022 = vmatpush1.bf16.msra.mxu0 %v4195
        %6023 = vmatprep.subr.bf16.mxu0 %v4214
        %6024 = vmatpush1.bf16.msra.mxu0 %v4213
        %6025 = vmatprep.subr.bf16.mxu0 %v4232
        %6026 = vmatpush1.bf16.msra.mxu0 %v4231
        %6027 = vmatprep.subr.bf16.mxu0 %v4250
        %6028 = vmatpush1.bf16.msra.mxu0 %v4249
        %6029 = vmatprep.subr.bf16.mxu0 %v4268
        %6030 = vmatpush1.bf16.msra.mxu0 %v4267
        %6031 = vmatprep.subr.bf16.mxu0 %v4286
        %6032 = vmatpush1.bf16.msra.mxu0 %v4285
        %6033 = vmatprep.subr.bf16.mxu0 %v4304
        %6034 = vmatpush1.bf16.msra.mxu0 %v4303
        %6035 = vmatprep.mubr.bf16.mxu0 %v451
        %6036 = vmatmul.mubr.bf16.gmra.mrb[0].mxu0 %v450
        %v6037 = vpop.f32.mrb[0].mxu0
        %v6038 = vadd.f32 %v1366, %v6037
        %v6039 = vpop.f32.mrb[0].mxu0
        %v6040 = vadd.f32 %v1370, %v6039
        %v6041 = vpop.f32.mrb[0].mxu0
        %v6042 = vpop.f32.mrb[0].mxu0
        %6043 = vdwg.mxu0
        %6044 = vmatprep.subr.bf16.mxu0 %v4322
        %6045 = vmatpush1.bf16.msra.mxu0 %v4321
        %6046 = vmatprep.subr.bf16.mxu0 %v4340
        %6047 = vmatpush1.bf16.msra.mxu0 %v4339
        %6048 = vmatprep.subr.bf16.mxu0 %v4358
        %6049 = vmatpush1.bf16.msra.mxu0 %v4357
        %6050 = vmatprep.subr.bf16.mxu0 %v4376
        %6051 = vmatpush1.bf16.msra.mxu0 %v4375
        %6052 = vmatprep.subr.bf16.mxu0 %v4394
        %6053 = vmatpush1.bf16.msra.mxu0 %v4393
        %6054 = vmatprep.subr.bf16.mxu0 %v4412
        %6055 = vmatpush1.bf16.msra.mxu0 %v4411
        %6056 = vmatprep.subr.bf16.mxu0 %v4430
        %6057 = vmatpush1.bf16.msra.mxu0 %v4429
        %6058 = vmatprep.subr.bf16.mxu0 %v4448
        %6059 = vmatpush1.bf16.msra.mxu0 %v4447
        %6060 = vmatprep.subr.bf16.mxu0 %v4466
        %6061 = vmatpush1.bf16.msra.mxu0 %v4465
        %6062 = vmatprep.subr.bf16.mxu0 %v4484
        %6063 = vmatpush1.bf16.msra.mxu0 %v4483
        %6064 = vmatprep.subr.bf16.mxu0 %v4502
        %6065 = vmatpush1.bf16.msra.mxu0 %v4501
        %6066 = vmatprep.subr.bf16.mxu0 %v4520
        %6067 = vmatpush1.bf16.msra.mxu0 %v4519
        %6068 = vmatprep.subr.bf16.mxu0 %v4538
        %6069 = vmatpush1.bf16.msra.mxu0 %v4537
        %6070 = vmatprep.subr.bf16.mxu0 %v4556
        %6071 = vmatpush1.bf16.msra.mxu0 %v4555
        %6072 = vmatprep.subr.bf16.mxu0 %v4574
        %6073 = vmatpush1.bf16.msra.mxu0 %v4573
        %6074 = vmatprep.subr.bf16.mxu0 %v4592
        %6075 = vmatpush1.bf16.msra.mxu0 %v4591
        %6076 = vmatprep.mubr.bf16.mxu0 %v453
        %6077 = vmatmul.mubr.bf16.gmra.mrb[0].mxu0 %v452
        %v6078 = vpop.f32.mrb[0].mxu0
        %v6079 = vadd.f32 %v6038, %v6078
        %v6080 = vpop.f32.mrb[0].mxu0
        %v6081 = vadd.f32 %v6040, %v6080
        %v6082 = vpop.f32.mrb[0].mxu0
        %v6083 = vpop.f32.mrb[0].mxu0
        %6084 = vdwg.mxu0
        %6085 = vmatprep.subr.bf16.mxu0 %v4610
        %6086 = vmatpush1.bf16.msra.mxu0 %v4609
        %6087 = vmatprep.subr.bf16.mxu0 %v4628
        %6088 = vmatpush1.bf16.msra.mxu0 %v4627
        %6089 = vmatprep.subr.bf16.mxu0 %v4646
        %6090 = vmatpush1.bf16.msra.mxu0 %v4645
        %6091 = vmatprep.subr.bf16.mxu0 %v4664
        %6092 = vmatpush1.bf16.msra.mxu0 %v4663
        %6093 = vmatprep.subr.bf16.mxu0 %v4682
        %6094 = vmatpush1.bf16.msra.mxu0 %v4681
        %6095 = vmatprep.subr.bf16.mxu0 %v4700
        %6096 = vmatpush1.bf16.msra.mxu0 %v4699
        %6097 = vmatprep.subr.bf16.mxu0 %v4718
        %6098 = vmatpush1.bf16.msra.mxu0 %v4717
        %6099 = vmatprep.subr.bf16.mxu0 %v4736
        %6100 = vmatpush1.bf16.msra.mxu0 %v4735
        %6101 = vmatprep.subr.bf16.mxu0 %v4754
        %6102 = vmatpush1.bf16.msra.mxu0 %v4753
        %6103 = vmatprep.subr.bf16.mxu0 %v4772
        %6104 = vmatpush1.bf16.msra.mxu0 %v4771
        %6105 = vmatprep.subr.bf16.mxu0 %v4790
        %6106 = vmatpush1.bf16.msra.mxu0 %v4789
        %6107 = vmatprep.subr.bf16.mxu0 %v4808
        %6108 = vmatpush1.bf16.msra.mxu0 %v4807
        %6109 = vmatprep.subr.bf16.mxu0 %v4826
        %6110 = vmatpush1.bf16.msra.mxu0 %v4825
        %6111 = vmatprep.subr.bf16.mxu0 %v4844
        %6112 = vmatpush1.bf16.msra.mxu0 %v4843
        %6113 = vmatprep.subr.bf16.mxu0 %v4862
        %6114 = vmatpush1.bf16.msra.mxu0 %v4861
        %6115 = vmatprep.subr.bf16.mxu0 %v4880
        %6116 = vmatpush1.bf16.msra.mxu0 %v4879
        %6117 = vmatprep.mubr.bf16.mxu0 %v455
        %6118 = vmatmul.mubr.bf16.gmra.mrb[0].mxu0 %v454
        %v6119 = vpop.f32.mrb[0].mxu0
        %v6120 = vadd.f32 %v6079, %v6119
        %v6121 = vpop.f32.mrb[0].mxu0
        %v6122 = vadd.f32 %v6081, %v6121
        %v6123 = vpop.f32.mrb[0].mxu0
        %v6124 = vpop.f32.mrb[0].mxu0
        %6125 = vdwg.mxu0
        %6126 = vmatprep.subr.bf16.mxu0 %v4036
        %6127 = vmatpush1.bf16.msra.mxu0 %v4035
        %6128 = vmatprep.subr.bf16.mxu0 %v4054
        %6129 = vmatpush1.bf16.msra.mxu0 %v4053
        %6130 = vmatprep.subr.bf16.mxu0 %v4072
        %6131 = vmatpush1.bf16.msra.mxu0 %v4071
        %6132 = vmatprep.subr.bf16.mxu0 %v4090
        %6133 = vmatpush1.bf16.msra.mxu0 %v4089
        %6134 = vmatprep.subr.bf16.mxu0 %v4108
        %6135 = vmatpush1.bf16.msra.mxu0 %v4107
        %6136 = vmatprep.subr.bf16.mxu0 %v4126
        %6137 = vmatpush1.bf16.msra.mxu0 %v4125
        %6138 = vmatprep.subr.bf16.mxu0 %v4144
        %6139 = vmatpush1.bf16.msra.mxu0 %v4143
        %6140 = vmatprep.subr.bf16.mxu0 %v4162
        %6141 = vmatpush1.bf16.msra.mxu0 %v4161
        %6142 = vmatprep.subr.bf16.mxu0 %v4180
        %6143 = vmatpush1.bf16.msra.mxu0 %v4179
        %6144 = vmatprep.subr.bf16.mxu0 %v4198
        %6145 = vmatpush1.bf16.msra.mxu0 %v4197
        %6146 = vmatprep.subr.bf16.mxu0 %v4216
        %6147 = vmatpush1.bf16.msra.mxu0 %v4215
        %6148 = vmatprep.subr.bf16.mxu0 %v4234
        %6149 = vmatpush1.bf16.msra.mxu0 %v4233
        %6150 = vmatprep.subr.bf16.mxu0 %v4252
        %6151 = vmatpush1.bf16.msra.mxu0 %v4251
        %6152 = vmatprep.subr.bf16.mxu0 %v4270
        %6153 = vmatpush1.bf16.msra.mxu0 %v4269
        %6154 = vmatprep.subr.bf16.mxu0 %v4288
        %6155 = vmatpush1.bf16.msra.mxu0 %v4287
        %6156 = vmatprep.subr.bf16.mxu0 %v4306
        %6157 = vmatpush1.bf16.msra.mxu0 %v4305
        %6158 = vmatprep.mubr.bf16.mxu0 %v451
        %6159 = vmatmul.mubr.bf16.gmra.mrb[0].mxu0 %v450
        %v6160 = vpop.f32.mrb[0].mxu0
        %v6161 = vadd.f32 %v1374, %v6160
        %v6162 = vpop.f32.mrb[0].mxu0
        %v6163 = vadd.f32 %v1378, %v6162
        %v6164 = vpop.f32.mrb[0].mxu0
        %v6165 = vpop.f32.mrb[0].mxu0
        %6166 = vdwg.mxu0
        %6167 = vmatprep.subr.bf16.mxu0 %v4324
        %6168 = vmatpush1.bf16.msra.mxu0 %v4323
        %6169 = vmatprep.subr.bf16.mxu0 %v4342
        %6170 = vmatpush1.bf16.msra.mxu0 %v4341
        %6171 = vmatprep.subr.bf16.mxu0 %v4360
        %6172 = vmatpush1.bf16.msra.mxu0 %v4359
        %6173 = vmatprep.subr.bf16.mxu0 %v4378
        %6174 = vmatpush1.bf16.msra.mxu0 %v4377
        %6175 = vmatprep.subr.bf16.mxu0 %v4396
        %6176 = vmatpush1.bf16.msra.mxu0 %v4395
        %6177 = vmatprep.subr.bf16.mxu0 %v4414
        %6178 = vmatpush1.bf16.msra.mxu0 %v4413
        %6179 = vmatprep.subr.bf16.mxu0 %v4432
        %6180 = vmatpush1.bf16.msra.mxu0 %v4431
        %6181 = vmatprep.subr.bf16.mxu0 %v4450
        %6182 = vmatpush1.bf16.msra.mxu0 %v4449
        %6183 = vmatprep.subr.bf16.mxu0 %v4468
        %6184 = vmatpush1.bf16.msra.mxu0 %v4467
        %6185 = vmatprep.subr.bf16.mxu0 %v4486
        %6186 = vmatpush1.bf16.msra.mxu0 %v4485
        %6187 = vmatprep.subr.bf16.mxu0 %v4504
        %6188 = vmatpush1.bf16.msra.mxu0 %v4503
        %6189 = vmatprep.subr.bf16.mxu0 %v4522
        %6190 = vmatpush1.bf16.msra.mxu0 %v4521
        %6191 = vmatprep.subr.bf16.mxu0 %v4540
        %6192 = vmatpush1.bf16.msra.mxu0 %v4539
        %6193 = vmatprep.subr.bf16.mxu0 %v4558
        %6194 = vmatpush1.bf16.msra.mxu0 %v4557
        %6195 = vmatprep.subr.bf16.mxu0 %v4576
        %6196 = vmatpush1.bf16.msra.mxu0 %v4575
        %6197 = vmatprep.subr.bf16.mxu0 %v4594
        %6198 = vmatpush1.bf16.msra.mxu0 %v4593
        %6199 = vmatprep.mubr.bf16.mxu0 %v453
        %6200 = vmatmul.mubr.bf16.gmra.mrb[0].mxu0 %v452
        %v6201 = vpop.f32.mrb[0].mxu0
        %v6202 = vadd.f32 %v6161, %v6201
        %v6203 = vpop.f32.mrb[0].mxu0
        %v6204 = vadd.f32 %v6163, %v6203
        %v6205 = vpop.f32.mrb[0].mxu0
        %v6206 = vpop.f32.mrb[0].mxu0
        %6207 = vdwg.mxu0
        %6208 = vmatprep.subr.bf16.mxu0 %v4612
        %6209 = vmatpush1.bf16.msra.mxu0 %v4611
        %6210 = vmatprep.subr.bf16.mxu0 %v4630
        %6211 = vmatpush1.bf16.msra.mxu0 %v4629
        %6212 = vmatprep.subr.bf16.mxu0 %v4648
        %6213 = vmatpush1.bf16.msra.mxu0 %v4647
        %6214 = vmatprep.subr.bf16.mxu0 %v4666
        %6215 = vmatpush1.bf16.msra.mxu0 %v4665
        %6216 = vmatprep.subr.bf16.mxu0 %v4684
        %6217 = vmatpush1.bf16.msra.mxu0 %v4683
        %6218 = vmatprep.subr.bf16.mxu0 %v4702
        %6219 = vmatpush1.bf16.msra.mxu0 %v4701
        %6220 = vmatprep.subr.bf16.mxu0 %v4720
        %6221 = vmatpush1.bf16.msra.mxu0 %v4719
        %6222 = vmatprep.subr.bf16.mxu0 %v4738
        %6223 = vmatpush1.bf16.msra.mxu0 %v4737
        %6224 = vmatprep.subr.bf16.mxu0 %v4756
        %6225 = vmatpush1.bf16.msra.mxu0 %v4755
        %6226 = vmatprep.subr.bf16.mxu0 %v4774
        %6227 = vmatpush1.bf16.msra.mxu0 %v4773
        %6228 = vmatprep.subr.bf16.mxu0 %v4792
        %6229 = vmatpush1.bf16.msra.mxu0 %v4791
        %6230 = vmatprep.subr.bf16.mxu0 %v4810
        %6231 = vmatpush1.bf16.msra.mxu0 %v4809
        %6232 = vmatprep.subr.bf16.mxu0 %v4828
        %6233 = vmatpush1.bf16.msra.mxu0 %v4827
        %6234 = vmatprep.subr.bf16.mxu0 %v4846
        %6235 = vmatpush1.bf16.msra.mxu0 %v4845
        %6236 = vmatprep.subr.bf16.mxu0 %v4864
        %6237 = vmatpush1.bf16.msra.mxu0 %v4863
        %6238 = vmatprep.subr.bf16.mxu0 %v4882
        %6239 = vmatpush1.bf16.msra.mxu0 %v4881
        %6240 = vmatprep.mubr.bf16.mxu0 %v455
        %6241 = vmatmul.mubr.bf16.gmra.mrb[0].mxu0 %v454
        %v6242 = vpop.f32.mrb[0].mxu0
        %v6243 = vadd.f32 %v6202, %v6242
        %v6244 = vpop.f32.mrb[0].mxu0
        %v6245 = vadd.f32 %v6204, %v6244
        %v6246 = vpop.f32.mrb[0].mxu0
        %v6247 = vpop.f32.mrb[0].mxu0
        %6248 = vdwg.mxu0
        %6249 = vmatprep.subr.bf16.mxu0 %v4038
        %6250 = vmatpush1.bf16.msra.mxu0 %v4037
        %6251 = vmatprep.subr.bf16.mxu0 %v4056
        %6252 = vmatpush1.bf16.msra.mxu0 %v4055
        %6253 = vmatprep.subr.bf16.mxu0 %v4074
        %6254 = vmatpush1.bf16.msra.mxu0 %v4073
        %6255 = vmatprep.subr.bf16.mxu0 %v4092
        %6256 = vmatpush1.bf16.msra.mxu0 %v4091
        %6257 = vmatprep.subr.bf16.mxu0 %v4110
        %6258 = vmatpush1.bf16.msra.mxu0 %v4109
        %6259 = vmatprep.subr.bf16.mxu0 %v4128
        %6260 = vmatpush1.bf16.msra.mxu0 %v4127
        %6261 = vmatprep.subr.bf16.mxu0 %v4146
        %6262 = vmatpush1.bf16.msra.mxu0 %v4145
        %6263 = vmatprep.subr.bf16.mxu0 %v4164
        %6264 = vmatpush1.bf16.msra.mxu0 %v4163
        %6265 = vmatprep.subr.bf16.mxu0 %v4182
        %6266 = vmatpush1.bf16.msra.mxu0 %v4181
        %6267 = vmatprep.subr.bf16.mxu0 %v4200
        %6268 = vmatpush1.bf16.msra.mxu0 %v4199
        %6269 = vmatprep.subr.bf16.mxu0 %v4218
        %6270 = vmatpush1.bf16.msra.mxu0 %v4217
        %6271 = vmatprep.subr.bf16.mxu0 %v4236
        %6272 = vmatpush1.bf16.msra.mxu0 %v4235
        %6273 = vmatprep.subr.bf16.mxu0 %v4254
        %6274 = vmatpush1.bf16.msra.mxu0 %v4253
        %6275 = vmatprep.subr.bf16.mxu0 %v4272
        %6276 = vmatpush1.bf16.msra.mxu0 %v4271
        %6277 = vmatprep.subr.bf16.mxu0 %v4290
        %6278 = vmatpush1.bf16.msra.mxu0 %v4289
        %6279 = vmatprep.subr.bf16.mxu0 %v4308
        %6280 = vmatpush1.bf16.msra.mxu0 %v4307
        %6281 = vmatprep.mubr.bf16.mxu0 %v451
        %6282 = vmatmul.mubr.bf16.gmra.mrb[0].mxu0 %v450
        %v6283 = vpop.f32.mrb[0].mxu0
        %v6284 = vadd.f32 %v1382, %v6283
        %v6285 = vpop.f32.mrb[0].mxu0
        %v6286 = vadd.f32 %v1386, %v6285
        %v6287 = vpop.f32.mrb[0].mxu0
        %v6288 = vpop.f32.mrb[0].mxu0
        %6289 = vdwg.mxu0
        %6290 = vmatprep.subr.bf16.mxu0 %v4326
        %6291 = vmatpush1.bf16.msra.mxu0 %v4325
        %6292 = vmatprep.subr.bf16.mxu0 %v4344
        %6293 = vmatpush1.bf16.msra.mxu0 %v4343
        %6294 = vmatprep.subr.bf16.mxu0 %v4362
        %6295 = vmatpush1.bf16.msra.mxu0 %v4361
        %6296 = vmatprep.subr.bf16.mxu0 %v4380
        %6297 = vmatpush1.bf16.msra.mxu0 %v4379
        %6298 = vmatprep.subr.bf16.mxu0 %v4398
        %6299 = vmatpush1.bf16.msra.mxu0 %v4397
        %6300 = vmatprep.subr.bf16.mxu0 %v4416
        %6301 = vmatpush1.bf16.msra.mxu0 %v4415
        %6302 = vmatprep.subr.bf16.mxu0 %v4434
        %6303 = vmatpush1.bf16.msra.mxu0 %v4433
        %6304 = vmatprep.subr.bf16.mxu0 %v4452
        %6305 = vmatpush1.bf16.msra.mxu0 %v4451
        %6306 = vmatprep.subr.bf16.mxu0 %v4470
        %6307 = vmatpush1.bf16.msra.mxu0 %v4469
        %6308 = vmatprep.subr.bf16.mxu0 %v4488
        %6309 = vmatpush1.bf16.msra.mxu0 %v4487
        %6310 = vmatprep.subr.bf16.mxu0 %v4506
        %6311 = vmatpush1.bf16.msra.mxu0 %v4505
        %6312 = vmatprep.subr.bf16.mxu0 %v4524
        %6313 = vmatpush1.bf16.msra.mxu0 %v4523
        %6314 = vmatprep.subr.bf16.mxu0 %v4542
        %6315 = vmatpush1.bf16.msra.mxu0 %v4541
        %6316 = vmatprep.subr.bf16.mxu0 %v4560
        %6317 = vmatpush1.bf16.msra.mxu0 %v4559
        %6318 = vmatprep.subr.bf16.mxu0 %v4578
        %6319 = vmatpush1.bf16.msra.mxu0 %v4577
        %6320 = vmatprep.subr.bf16.mxu0 %v4596
        %6321 = vmatpush1.bf16.msra.mxu0 %v4595
        %6322 = vmatprep.mubr.bf16.mxu0 %v453
        %6323 = vmatmul.mubr.bf16.gmra.mrb[0].mxu0 %v452
        %v6324 = vpop.f32.mrb[0].mxu0
        %v6325 = vadd.f32 %v6284, %v6324
        %v6326 = vpop.f32.mrb[0].mxu0
        %v6327 = vadd.f32 %v6286, %v6326
        %v6328 = vpop.f32.mrb[0].mxu0
        %v6329 = vpop.f32.mrb[0].mxu0
        %6330 = vdwg.mxu0
        %6331 = vmatprep.subr.bf16.mxu0 %v4614
        %6332 = vmatpush1.bf16.msra.mxu0 %v4613
        %6333 = vmatprep.subr.bf16.mxu0 %v4632
        %6334 = vmatpush1.bf16.msra.mxu0 %v4631
        %6335 = vmatprep.subr.bf16.mxu0 %v4650
        %6336 = vmatpush1.bf16.msra.mxu0 %v4649
        %6337 = vmatprep.subr.bf16.mxu0 %v4668
        %6338 = vmatpush1.bf16.msra.mxu0 %v4667
        %6339 = vmatprep.subr.bf16.mxu0 %v4686
        %6340 = vmatpush1.bf16.msra.mxu0 %v4685
        %6341 = vmatprep.subr.bf16.mxu0 %v4704
        %6342 = vmatpush1.bf16.msra.mxu0 %v4703
        %6343 = vmatprep.subr.bf16.mxu0 %v4722
        %6344 = vmatpush1.bf16.msra.mxu0 %v4721
        %6345 = vmatprep.subr.bf16.mxu0 %v4740
        %6346 = vmatpush1.bf16.msra.mxu0 %v4739
        %6347 = vmatprep.subr.bf16.mxu0 %v4758
        %6348 = vmatpush1.bf16.msra.mxu0 %v4757
        %6349 = vmatprep.subr.bf16.mxu0 %v4776
        %6350 = vmatpush1.bf16.msra.mxu0 %v4775
        %6351 = vmatprep.subr.bf16.mxu0 %v4794
        %6352 = vmatpush1.bf16.msra.mxu0 %v4793
        %6353 = vmatprep.subr.bf16.mxu0 %v4812
        %6354 = vmatpush1.bf16.msra.mxu0 %v4811
        %6355 = vmatprep.subr.bf16.mxu0 %v4830
        %6356 = vmatpush1.bf16.msra.mxu0 %v4829
        %6357 = vmatprep.subr.bf16.mxu0 %v4848
        %6358 = vmatpush1.bf16.msra.mxu0 %v4847
        %6359 = vmatprep.subr.bf16.mxu0 %v4866
        %6360 = vmatpush1.bf16.msra.mxu0 %v4865
        %6361 = vmatprep.subr.bf16.mxu0 %v4884
        %6362 = vmatpush1.bf16.msra.mxu0 %v4883
        %6363 = vmatprep.mubr.bf16.mxu0 %v455
        %6364 = vmatmul.mubr.bf16.gmra.mrb[0].mxu0 %v454
        %v6365 = vpop.f32.mrb[0].mxu0
        %v6366 = vadd.f32 %v6325, %v6365
        %v6367 = vpop.f32.mrb[0].mxu0
        %v6368 = vadd.f32 %v6327, %v6367
        %v6369 = vpop.f32.mrb[0].mxu0
        %v6370 = vpop.f32.mrb[0].mxu0
        %6371 = vdwg.mxu0
        %6372 = vmatprep.subr.bf16.mxu0 %v4040
        %6373 = vmatpush1.bf16.msra.mxu0 %v4039
        %6374 = vmatprep.subr.bf16.mxu0 %v4058
        %6375 = vmatpush1.bf16.msra.mxu0 %v4057
        %6376 = vmatprep.subr.bf16.mxu0 %v4076
        %6377 = vmatpush1.bf16.msra.mxu0 %v4075
        %6378 = vmatprep.subr.bf16.mxu0 %v4094
        %6379 = vmatpush1.bf16.msra.mxu0 %v4093
        %6380 = vmatprep.subr.bf16.mxu0 %v4112
        %6381 = vmatpush1.bf16.msra.mxu0 %v4111
        %6382 = vmatprep.subr.bf16.mxu0 %v4130
        %6383 = vmatpush1.bf16.msra.mxu0 %v4129
        %6384 = vmatprep.subr.bf16.mxu0 %v4148
        %6385 = vmatpush1.bf16.msra.mxu0 %v4147
        %6386 = vmatprep.subr.bf16.mxu0 %v4166
        %6387 = vmatpush1.bf16.msra.mxu0 %v4165
        %6388 = vmatprep.subr.bf16.mxu0 %v4184
        %6389 = vmatpush1.bf16.msra.mxu0 %v4183
        %6390 = vmatprep.subr.bf16.mxu0 %v4202
        %6391 = vmatpush1.bf16.msra.mxu0 %v4201
        %6392 = vmatprep.subr.bf16.mxu0 %v4220
        %6393 = vmatpush1.bf16.msra.mxu0 %v4219
        %6394 = vmatprep.subr.bf16.mxu0 %v4238
        %6395 = vmatpush1.bf16.msra.mxu0 %v4237
        %6396 = vmatprep.subr.bf16.mxu0 %v4256
        %6397 = vmatpush1.bf16.msra.mxu0 %v4255
        %6398 = vmatprep.subr.bf16.mxu0 %v4274
        %6399 = vmatpush1.bf16.msra.mxu0 %v4273
        %6400 = vmatprep.subr.bf16.mxu0 %v4292
        %6401 = vmatpush1.bf16.msra.mxu0 %v4291
        %6402 = vmatprep.subr.bf16.mxu0 %v4310
        %6403 = vmatpush1.bf16.msra.mxu0 %v4309
        %6404 = vmatprep.mubr.bf16.mxu0 %v451
        %6405 = vmatmul.mubr.bf16.gmra.mrb[0].mxu0 %v450
        %v6406 = vpop.f32.mrb[0].mxu0
        %v6407 = vadd.f32 %v1390, %v6406
        %v6408 = vpop.f32.mrb[0].mxu0
        %v6409 = vadd.f32 %v1394, %v6408
        %v6410 = vpop.f32.mrb[0].mxu0
        %v6411 = vpop.f32.mrb[0].mxu0
        %6412 = vdwg.mxu0
        %6413 = vmatprep.subr.bf16.mxu0 %v4328
        %6414 = vmatpush1.bf16.msra.mxu0 %v4327
        %6415 = vmatprep.subr.bf16.mxu0 %v4346
        %6416 = vmatpush1.bf16.msra.mxu0 %v4345
        %6417 = vmatprep.subr.bf16.mxu0 %v4364
        %6418 = vmatpush1.bf16.msra.mxu0 %v4363
        %6419 = vmatprep.subr.bf16.mxu0 %v4382
        %6420 = vmatpush1.bf16.msra.mxu0 %v4381
        %6421 = vmatprep.subr.bf16.mxu0 %v4400
        %6422 = vmatpush1.bf16.msra.mxu0 %v4399
        %6423 = vmatprep.subr.bf16.mxu0 %v4418
        %6424 = vmatpush1.bf16.msra.mxu0 %v4417
        %6425 = vmatprep.subr.bf16.mxu0 %v4436
        %6426 = vmatpush1.bf16.msra.mxu0 %v4435
        %6427 = vmatprep.subr.bf16.mxu0 %v4454
        %6428 = vmatpush1.bf16.msra.mxu0 %v4453
        %6429 = vmatprep.subr.bf16.mxu0 %v4472
        %6430 = vmatpush1.bf16.msra.mxu0 %v4471
        %6431 = vmatprep.subr.bf16.mxu0 %v4490
        %6432 = vmatpush1.bf16.msra.mxu0 %v4489
        %6433 = vmatprep.subr.bf16.mxu0 %v4508
        %6434 = vmatpush1.bf16.msra.mxu0 %v4507
        %6435 = vmatprep.subr.bf16.mxu0 %v4526
        %6436 = vmatpush1.bf16.msra.mxu0 %v4525
        %6437 = vmatprep.subr.bf16.mxu0 %v4544
        %6438 = vmatpush1.bf16.msra.mxu0 %v4543
        %6439 = vmatprep.subr.bf16.mxu0 %v4562
        %6440 = vmatpush1.bf16.msra.mxu0 %v4561
        %6441 = vmatprep.subr.bf16.mxu0 %v4580
        %6442 = vmatpush1.bf16.msra.mxu0 %v4579
        %6443 = vmatprep.subr.bf16.mxu0 %v4598
        %6444 = vmatpush1.bf16.msra.mxu0 %v4597
        %6445 = vmatprep.mubr.bf16.mxu0 %v453
        %6446 = vmatmul.mubr.bf16.gmra.mrb[0].mxu0 %v452
        %v6447 = vpop.f32.mrb[0].mxu0
        %v6448 = vadd.f32 %v6407, %v6447
        %v6449 = vpop.f32.mrb[0].mxu0
        %v6450 = vadd.f32 %v6409, %v6449
        %v6451 = vpop.f32.mrb[0].mxu0
        %v6452 = vpop.f32.mrb[0].mxu0
        %6453 = vdwg.mxu0
        %6454 = vmatprep.subr.bf16.mxu0 %v4616
        %6455 = vmatpush1.bf16.msra.mxu0 %v4615
        %6456 = vmatprep.subr.bf16.mxu0 %v4634
        %6457 = vmatpush1.bf16.msra.mxu0 %v4633
        %6458 = vmatprep.subr.bf16.mxu0 %v4652
        %6459 = vmatpush1.bf16.msra.mxu0 %v4651
        %6460 = vmatprep.subr.bf16.mxu0 %v4670
        %6461 = vmatpush1.bf16.msra.mxu0 %v4669
        %6462 = vmatprep.subr.bf16.mxu0 %v4688
        %6463 = vmatpush1.bf16.msra.mxu0 %v4687
        %6464 = vmatprep.subr.bf16.mxu0 %v4706
        %6465 = vmatpush1.bf16.msra.mxu0 %v4705
        %6466 = vmatprep.subr.bf16.mxu0 %v4724
        %6467 = vmatpush1.bf16.msra.mxu0 %v4723
        %6468 = vmatprep.subr.bf16.mxu0 %v4742
        %6469 = vmatpush1.bf16.msra.mxu0 %v4741
        %6470 = vmatprep.subr.bf16.mxu0 %v4760
        %6471 = vmatpush1.bf16.msra.mxu0 %v4759
        %6472 = vmatprep.subr.bf16.mxu0 %v4778
        %6473 = vmatpush1.bf16.msra.mxu0 %v4777
        %6474 = vmatprep.subr.bf16.mxu0 %v4796
        %6475 = vmatpush1.bf16.msra.mxu0 %v4795
        %6476 = vmatprep.subr.bf16.mxu0 %v4814
        %6477 = vmatpush1.bf16.msra.mxu0 %v4813
        %6478 = vmatprep.subr.bf16.mxu0 %v4832
        %6479 = vmatpush1.bf16.msra.mxu0 %v4831
        %6480 = vmatprep.subr.bf16.mxu0 %v4850
        %6481 = vmatpush1.bf16.msra.mxu0 %v4849
        %6482 = vmatprep.subr.bf16.mxu0 %v4868
        %6483 = vmatpush1.bf16.msra.mxu0 %v4867
        %6484 = vmatprep.subr.bf16.mxu0 %v4886
        %6485 = vmatpush1.bf16.msra.mxu0 %v4885
        %6486 = vmatprep.mubr.bf16.mxu0 %v455
        %6487 = vmatmul.mubr.bf16.gmra.mrb[0].mxu0 %v454
        %v6488 = vpop.f32.mrb[0].mxu0
        %v6489 = vadd.f32 %v6448, %v6488
        %v6490 = vpop.f32.mrb[0].mxu0
        %v6491 = vadd.f32 %v6450, %v6490
        %v6492 = vpop.f32.mrb[0].mxu0
        %v6493 = vpop.f32.mrb[0].mxu0
        %6494 = vdwg.mxu0
        %6495 = vmatprep.subr.bf16.mxu0 %v4042
        %6496 = vmatpush1.bf16.msra.mxu0 %v4041
        %6497 = vmatprep.subr.bf16.mxu0 %v4060
        %6498 = vmatpush1.bf16.msra.mxu0 %v4059
        %6499 = vmatprep.subr.bf16.mxu0 %v4078
        %6500 = vmatpush1.bf16.msra.mxu0 %v4077
        %6501 = vmatprep.subr.bf16.mxu0 %v4096
        %6502 = vmatpush1.bf16.msra.mxu0 %v4095
        %6503 = vmatprep.subr.bf16.mxu0 %v4114
        %6504 = vmatpush1.bf16.msra.mxu0 %v4113
        %6505 = vmatprep.subr.bf16.mxu0 %v4132
        %6506 = vmatpush1.bf16.msra.mxu0 %v4131
        %6507 = vmatprep.subr.bf16.mxu0 %v4150
        %6508 = vmatpush1.bf16.msra.mxu0 %v4149
        %6509 = vmatprep.subr.bf16.mxu0 %v4168
        %6510 = vmatpush1.bf16.msra.mxu0 %v4167
        %6511 = vmatprep.subr.bf16.mxu0 %v4186
        %6512 = vmatpush1.bf16.msra.mxu0 %v4185
        %6513 = vmatprep.subr.bf16.mxu0 %v4204
        %6514 = vmatpush1.bf16.msra.mxu0 %v4203
        %6515 = vmatprep.subr.bf16.mxu0 %v4222
        %6516 = vmatpush1.bf16.msra.mxu0 %v4221
        %6517 = vmatprep.subr.bf16.mxu0 %v4240
        %6518 = vmatpush1.bf16.msra.mxu0 %v4239
        %6519 = vmatprep.subr.bf16.mxu0 %v4258
        %6520 = vmatpush1.bf16.msra.mxu0 %v4257
        %6521 = vmatprep.subr.bf16.mxu0 %v4276
        %6522 = vmatpush1.bf16.msra.mxu0 %v4275
        %6523 = vmatprep.subr.bf16.mxu0 %v4294
        %6524 = vmatpush1.bf16.msra.mxu0 %v4293
        %6525 = vmatprep.subr.bf16.mxu0 %v4312
        %6526 = vmatpush1.bf16.msra.mxu0 %v4311
        %6527 = vmatprep.mubr.bf16.mxu0 %v451
        %6528 = vmatmul.mubr.bf16.gmra.mrb[0].mxu0 %v450
        %v6529 = vpop.f32.mrb[0].mxu0
        %v6530 = vadd.f32 %v1398, %v6529
        %v6531 = vpop.f32.mrb[0].mxu0
        %v6532 = vadd.f32 %v1402, %v6531
        %v6533 = vpop.f32.mrb[0].mxu0
        %v6534 = vpop.f32.mrb[0].mxu0
        %6535 = vdwg.mxu0
        %6536 = vmatprep.subr.bf16.mxu0 %v4330
        %6537 = vmatpush1.bf16.msra.mxu0 %v4329
        %6538 = vmatprep.subr.bf16.mxu0 %v4348
        %6539 = vmatpush1.bf16.msra.mxu0 %v4347
        %6540 = vmatprep.subr.bf16.mxu0 %v4366
        %6541 = vmatpush1.bf16.msra.mxu0 %v4365
        %6542 = vmatprep.subr.bf16.mxu0 %v4384
        %6543 = vmatpush1.bf16.msra.mxu0 %v4383
        %6544 = vmatprep.subr.bf16.mxu0 %v4402
        %6545 = vmatpush1.bf16.msra.mxu0 %v4401
        %6546 = vmatprep.subr.bf16.mxu0 %v4420
        %6547 = vmatpush1.bf16.msra.mxu0 %v4419
        %6548 = vmatprep.subr.bf16.mxu0 %v4438
        %6549 = vmatpush1.bf16.msra.mxu0 %v4437
        %6550 = vmatprep.subr.bf16.mxu0 %v4456
        %6551 = vmatpush1.bf16.msra.mxu0 %v4455
        %6552 = vmatprep.subr.bf16.mxu0 %v4474
        %6553 = vmatpush1.bf16.msra.mxu0 %v4473
        %6554 = vmatprep.subr.bf16.mxu0 %v4492
        %6555 = vmatpush1.bf16.msra.mxu0 %v4491
        %6556 = vmatprep.subr.bf16.mxu0 %v4510
        %6557 = vmatpush1.bf16.msra.mxu0 %v4509
        %6558 = vmatprep.subr.bf16.mxu0 %v4528
        %6559 = vmatpush1.bf16.msra.mxu0 %v4527
        %6560 = vmatprep.subr.bf16.mxu0 %v4546
        %6561 = vmatpush1.bf16.msra.mxu0 %v4545
        %6562 = vmatprep.subr.bf16.mxu0 %v4564
        %6563 = vmatpush1.bf16.msra.mxu0 %v4563
        %6564 = vmatprep.subr.bf16.mxu0 %v4582
        %6565 = vmatpush1.bf16.msra.mxu0 %v4581
        %6566 = vmatprep.subr.bf16.mxu0 %v4600
        %6567 = vmatpush1.bf16.msra.mxu0 %v4599
        %6568 = vmatprep.mubr.bf16.mxu0 %v453
        %6569 = vmatmul.mubr.bf16.gmra.mrb[0].mxu0 %v452
        %v6570 = vpop.f32.mrb[0].mxu0
        %v6571 = vadd.f32 %v6530, %v6570
        %v6572 = vpop.f32.mrb[0].mxu0
        %v6573 = vadd.f32 %v6532, %v6572
        %v6574 = vpop.f32.mrb[0].mxu0
        %v6575 = vpop.f32.mrb[0].mxu0
        %6576 = vdwg.mxu0
        %6577 = vmatprep.subr.bf16.mxu0 %v4618
        %6578 = vmatpush1.bf16.msra.mxu0 %v4617
        %6579 = vmatprep.subr.bf16.mxu0 %v4636
        %6580 = vmatpush1.bf16.msra.mxu0 %v4635
        %6581 = vmatprep.subr.bf16.mxu0 %v4654
        %6582 = vmatpush1.bf16.msra.mxu0 %v4653
        %6583 = vmatprep.subr.bf16.mxu0 %v4672
        %6584 = vmatpush1.bf16.msra.mxu0 %v4671
        %6585 = vmatprep.subr.bf16.mxu0 %v4690
        %6586 = vmatpush1.bf16.msra.mxu0 %v4689
        %6587 = vmatprep.subr.bf16.mxu0 %v4708
        %6588 = vmatpush1.bf16.msra.mxu0 %v4707
        %6589 = vmatprep.subr.bf16.mxu0 %v4726
        %6590 = vmatpush1.bf16.msra.mxu0 %v4725
        %6591 = vmatprep.subr.bf16.mxu0 %v4744
        %6592 = vmatpush1.bf16.msra.mxu0 %v4743
        %6593 = vmatprep.subr.bf16.mxu0 %v4762
        %6594 = vmatpush1.bf16.msra.mxu0 %v4761
        %6595 = vmatprep.subr.bf16.mxu0 %v4780
        %6596 = vmatpush1.bf16.msra.mxu0 %v4779
        %6597 = vmatprep.subr.bf16.mxu0 %v4798
        %6598 = vmatpush1.bf16.msra.mxu0 %v4797
        %6599 = vmatprep.subr.bf16.mxu0 %v4816
        %6600 = vmatpush1.bf16.msra.mxu0 %v4815
        %6601 = vmatprep.subr.bf16.mxu0 %v4834
        %6602 = vmatpush1.bf16.msra.mxu0 %v4833
        %6603 = vmatprep.subr.bf16.mxu0 %v4852
        %6604 = vmatpush1.bf16.msra.mxu0 %v4851
        %6605 = vmatprep.subr.bf16.mxu0 %v4870
        %6606 = vmatpush1.bf16.msra.mxu0 %v4869
        %6607 = vmatprep.subr.bf16.mxu0 %v4888
        %6608 = vmatpush1.bf16.msra.mxu0 %v4887
        %6609 = vmatprep.mubr.bf16.mxu0 %v455
        %6610 = vmatmul.mubr.bf16.gmra.mrb[0].mxu0 %v454
        %v6611 = vpop.f32.mrb[0].mxu0
        %v6612 = vadd.f32 %v6571, %v6611
        %v6613 = vpop.f32.mrb[0].mxu0
        %v6614 = vadd.f32 %v6573, %v6613
        %v6615 = vpop.f32.mrb[0].mxu0
        %v6616 = vpop.f32.mrb[0].mxu0
        %6617 = vdwg.mxu0
        %6618 = vmatprep.subr.bf16.mxu0 %v4044
        %6619 = vmatpush1.bf16.msra.mxu0 %v4043
        %6620 = vmatprep.subr.bf16.mxu0 %v4062
        %6621 = vmatpush1.bf16.msra.mxu0 %v4061
        %6622 = vmatprep.subr.bf16.mxu0 %v4080
        %6623 = vmatpush1.bf16.msra.mxu0 %v4079
        %6624 = vmatprep.subr.bf16.mxu0 %v4098
        %6625 = vmatpush1.bf16.msra.mxu0 %v4097
        %6626 = vmatprep.subr.bf16.mxu0 %v4116
        %6627 = vmatpush1.bf16.msra.mxu0 %v4115
        %6628 = vmatprep.subr.bf16.mxu0 %v4134
        %6629 = vmatpush1.bf16.msra.mxu0 %v4133
        %6630 = vmatprep.subr.bf16.mxu0 %v4152
        %6631 = vmatpush1.bf16.msra.mxu0 %v4151
        %6632 = vmatprep.subr.bf16.mxu0 %v4170
        %6633 = vmatpush1.bf16.msra.mxu0 %v4169
        %6634 = vmatprep.subr.bf16.mxu0 %v4188
        %6635 = vmatpush1.bf16.msra.mxu0 %v4187
        %6636 = vmatprep.subr.bf16.mxu0 %v4206
        %6637 = vmatpush1.bf16.msra.mxu0 %v4205
        %6638 = vmatprep.subr.bf16.mxu0 %v4224
        %6639 = vmatpush1.bf16.msra.mxu0 %v4223
        %6640 = vmatprep.subr.bf16.mxu0 %v4242
        %6641 = vmatpush1.bf16.msra.mxu0 %v4241
        %6642 = vmatprep.subr.bf16.mxu0 %v4260
        %6643 = vmatpush1.bf16.msra.mxu0 %v4259
        %6644 = vmatprep.subr.bf16.mxu0 %v4278
        %6645 = vmatpush1.bf16.msra.mxu0 %v4277
        %6646 = vmatprep.subr.bf16.mxu0 %v4296
        %6647 = vmatpush1.bf16.msra.mxu0 %v4295
        %6648 = vmatprep.subr.bf16.mxu0 %v4314
        %6649 = vmatpush1.bf16.msra.mxu0 %v4313
        %6650 = vmatprep.mubr.bf16.mxu0 %v451
        %6651 = vmatmul.mubr.bf16.gmra.mrb[0].mxu0 %v450
        %v6652 = vpop.f32.mrb[0].mxu0
        %v6653 = vadd.f32 %v1406, %v6652
        %v6654 = vpop.f32.mrb[0].mxu0
        %v6655 = vadd.f32 %v1410, %v6654
        %v6656 = vpop.f32.mrb[0].mxu0
        %v6657 = vpop.f32.mrb[0].mxu0
        %6658 = vdwg.mxu0
        %6659 = vmatprep.subr.bf16.mxu0 %v4332
        %6660 = vmatpush1.bf16.msra.mxu0 %v4331
        %6661 = vmatprep.subr.bf16.mxu0 %v4350
        %6662 = vmatpush1.bf16.msra.mxu0 %v4349
        %6663 = vmatprep.subr.bf16.mxu0 %v4368
        %6664 = vmatpush1.bf16.msra.mxu0 %v4367
        %6665 = vmatprep.subr.bf16.mxu0 %v4386
        %6666 = vmatpush1.bf16.msra.mxu0 %v4385
        %6667 = vmatprep.subr.bf16.mxu0 %v4404
        %6668 = vmatpush1.bf16.msra.mxu0 %v4403
        %6669 = vmatprep.subr.bf16.mxu0 %v4422
        %6670 = vmatpush1.bf16.msra.mxu0 %v4421
        %6671 = vmatprep.subr.bf16.mxu0 %v4440
        %6672 = vmatpush1.bf16.msra.mxu0 %v4439
        %6673 = vmatprep.subr.bf16.mxu0 %v4458
        %6674 = vmatpush1.bf16.msra.mxu0 %v4457
        %6675 = vmatprep.subr.bf16.mxu0 %v4476
        %6676 = vmatpush1.bf16.msra.mxu0 %v4475
        %6677 = vmatprep.subr.bf16.mxu0 %v4494
        %6678 = vmatpush1.bf16.msra.mxu0 %v4493
        %6679 = vmatprep.subr.bf16.mxu0 %v4512
        %6680 = vmatpush1.bf16.msra.mxu0 %v4511
        %6681 = vmatprep.subr.bf16.mxu0 %v4530
        %6682 = vmatpush1.bf16.msra.mxu0 %v4529
        %6683 = vmatprep.subr.bf16.mxu0 %v4548
        %6684 = vmatpush1.bf16.msra.mxu0 %v4547
        %6685 = vmatprep.subr.bf16.mxu0 %v4566
        %6686 = vmatpush1.bf16.msra.mxu0 %v4565
        %6687 = vmatprep.subr.bf16.mxu0 %v4584
        %6688 = vmatpush1.bf16.msra.mxu0 %v4583
        %6689 = vmatprep.subr.bf16.mxu0 %v4602
        %6690 = vmatpush1.bf16.msra.mxu0 %v4601
        %6691 = vmatprep.mubr.bf16.mxu0 %v453
        %6692 = vmatmul.mubr.bf16.gmra.mrb[0].mxu0 %v452
        %v6693 = vpop.f32.mrb[0].mxu0
        %v6694 = vadd.f32 %v6653, %v6693
        %v6695 = vpop.f32.mrb[0].mxu0
        %v6696 = vadd.f32 %v6655, %v6695
        %v6697 = vpop.f32.mrb[0].mxu0
        %v6698 = vpop.f32.mrb[0].mxu0
        %6699 = vdwg.mxu0
        %6700 = vmatprep.subr.bf16.mxu0 %v4620
        %6701 = vmatpush1.bf16.msra.mxu0 %v4619
        %6702 = vmatprep.subr.bf16.mxu0 %v4638
        %6703 = vmatpush1.bf16.msra.mxu0 %v4637
        %6704 = vmatprep.subr.bf16.mxu0 %v4656
        %6705 = vmatpush1.bf16.msra.mxu0 %v4655
        %6706 = vmatprep.subr.bf16.mxu0 %v4674
        %6707 = vmatpush1.bf16.msra.mxu0 %v4673
        %6708 = vmatprep.subr.bf16.mxu0 %v4692
        %6709 = vmatpush1.bf16.msra.mxu0 %v4691
        %6710 = vmatprep.subr.bf16.mxu0 %v4710
        %6711 = vmatpush1.bf16.msra.mxu0 %v4709
        %6712 = vmatprep.subr.bf16.mxu0 %v4728
        %6713 = vmatpush1.bf16.msra.mxu0 %v4727
        %6714 = vmatprep.subr.bf16.mxu0 %v4746
        %6715 = vmatpush1.bf16.msra.mxu0 %v4745
        %6716 = vmatprep.subr.bf16.mxu0 %v4764
        %6717 = vmatpush1.bf16.msra.mxu0 %v4763
        %6718 = vmatprep.subr.bf16.mxu0 %v4782
        %6719 = vmatpush1.bf16.msra.mxu0 %v4781
        %6720 = vmatprep.subr.bf16.mxu0 %v4800
        %6721 = vmatpush1.bf16.msra.mxu0 %v4799
        %6722 = vmatprep.subr.bf16.mxu0 %v4818
        %6723 = vmatpush1.bf16.msra.mxu0 %v4817
        %6724 = vmatprep.subr.bf16.mxu0 %v4836
        %6725 = vmatpush1.bf16.msra.mxu0 %v4835
        %6726 = vmatprep.subr.bf16.mxu0 %v4854
        %6727 = vmatpush1.bf16.msra.mxu0 %v4853
        %6728 = vmatprep.subr.bf16.mxu0 %v4872
        %6729 = vmatpush1.bf16.msra.mxu0 %v4871
        %6730 = vmatprep.subr.bf16.mxu0 %v4890
        %6731 = vmatpush1.bf16.msra.mxu0 %v4889
        %6732 = vmatprep.mubr.bf16.mxu0 %v455
        %6733 = vmatmul.mubr.bf16.gmra.mrb[0].mxu0 %v454
        %v6734 = vpop.f32.mrb[0].mxu0
        %v6735 = vadd.f32 %v6694, %v6734
        %v6736 = vpop.f32.mrb[0].mxu0
        %v6737 = vadd.f32 %v6696, %v6736
        %v6738 = vpop.f32.mrb[0].mxu0
        %v6739 = vpop.f32.mrb[0].mxu0
        %6740 = vdwg.mxu0
        %6741 = vmatprep.subr.bf16.mxu0 %v4046
        %6742 = vmatpush1.bf16.msra.mxu0 %v4045
        %6743 = vmatprep.subr.bf16.mxu0 %v4064
        %6744 = vmatpush1.bf16.msra.mxu0 %v4063
        %6745 = vmatprep.subr.bf16.mxu0 %v4082
        %6746 = vmatpush1.bf16.msra.mxu0 %v4081
        %6747 = vmatprep.subr.bf16.mxu0 %v4100
        %6748 = vmatpush1.bf16.msra.mxu0 %v4099
        %6749 = vmatprep.subr.bf16.mxu0 %v4118
        %6750 = vmatpush1.bf16.msra.mxu0 %v4117
        %6751 = vmatprep.subr.bf16.mxu0 %v4136
        %6752 = vmatpush1.bf16.msra.mxu0 %v4135
        %6753 = vmatprep.subr.bf16.mxu0 %v4154
        %6754 = vmatpush1.bf16.msra.mxu0 %v4153
        %6755 = vmatprep.subr.bf16.mxu0 %v4172
        %6756 = vmatpush1.bf16.msra.mxu0 %v4171
        %6757 = vmatprep.subr.bf16.mxu0 %v4190
        %6758 = vmatpush1.bf16.msra.mxu0 %v4189
        %6759 = vmatprep.subr.bf16.mxu0 %v4208
        %6760 = vmatpush1.bf16.msra.mxu0 %v4207
        %6761 = vmatprep.subr.bf16.mxu0 %v4226
        %6762 = vmatpush1.bf16.msra.mxu0 %v4225
        %6763 = vmatprep.subr.bf16.mxu0 %v4244
        %6764 = vmatpush1.bf16.msra.mxu0 %v4243
        %6765 = vmatprep.subr.bf16.mxu0 %v4262
        %6766 = vmatpush1.bf16.msra.mxu0 %v4261
        %6767 = vmatprep.subr.bf16.mxu0 %v4280
        %6768 = vmatpush1.bf16.msra.mxu0 %v4279
        %6769 = vmatprep.subr.bf16.mxu0 %v4298
        %6770 = vmatpush1.bf16.msra.mxu0 %v4297
        %6771 = vmatprep.subr.bf16.mxu0 %v4316
        %6772 = vmatpush1.bf16.msra.mxu0 %v4315
        %6773 = vmatprep.mubr.bf16.mxu0 %v451
        %6774 = vmatmul.mubr.bf16.gmra.mrb[0].mxu0 %v450
        %v6775 = vpop.f32.mrb[0].mxu0
        %v6776 = vadd.f32 %v1414, %v6775
        %v6777 = vpop.f32.mrb[0].mxu0
        %v6778 = vadd.f32 %v1418, %v6777
        %v6779 = vpop.f32.mrb[0].mxu0
        %v6780 = vpop.f32.mrb[0].mxu0
        %6781 = vdwg.mxu0
        %6782 = vmatprep.subr.bf16.mxu0 %v4334
        %6783 = vmatpush1.bf16.msra.mxu0 %v4333
        %6784 = vmatprep.subr.bf16.mxu0 %v4352
        %6785 = vmatpush1.bf16.msra.mxu0 %v4351
        %6786 = vmatprep.subr.bf16.mxu0 %v4370
        %6787 = vmatpush1.bf16.msra.mxu0 %v4369
        %6788 = vmatprep.subr.bf16.mxu0 %v4388
        %6789 = vmatpush1.bf16.msra.mxu0 %v4387
        %6790 = vmatprep.subr.bf16.mxu0 %v4406
        %6791 = vmatpush1.bf16.msra.mxu0 %v4405
        %6792 = vmatprep.subr.bf16.mxu0 %v4424
        %6793 = vmatpush1.bf16.msra.mxu0 %v4423
        %6794 = vmatprep.subr.bf16.mxu0 %v4442
        %6795 = vmatpush1.bf16.msra.mxu0 %v4441
        %6796 = vmatprep.subr.bf16.mxu0 %v4460
        %6797 = vmatpush1.bf16.msra.mxu0 %v4459
        %6798 = vmatprep.subr.bf16.mxu0 %v4478
        %6799 = vmatpush1.bf16.msra.mxu0 %v4477
        %6800 = vmatprep.subr.bf16.mxu0 %v4496
        %6801 = vmatpush1.bf16.msra.mxu0 %v4495
        %6802 = vmatprep.subr.bf16.mxu0 %v4514
        %6803 = vmatpush1.bf16.msra.mxu0 %v4513
        %6804 = vmatprep.subr.bf16.mxu0 %v4532
        %6805 = vmatpush1.bf16.msra.mxu0 %v4531
        %6806 = vmatprep.subr.bf16.mxu0 %v4550
        %6807 = vmatpush1.bf16.msra.mxu0 %v4549
        %6808 = vmatprep.subr.bf16.mxu0 %v4568
        %6809 = vmatpush1.bf16.msra.mxu0 %v4567
        %6810 = vmatprep.subr.bf16.mxu0 %v4586
        %6811 = vmatpush1.bf16.msra.mxu0 %v4585
        %6812 = vmatprep.subr.bf16.mxu0 %v4604
        %6813 = vmatpush1.bf16.msra.mxu0 %v4603
        %6814 = vmatprep.mubr.bf16.mxu0 %v453
        %6815 = vmatmul.mubr.bf16.gmra.mrb[0].mxu0 %v452
        %v6816 = vpop.f32.mrb[0].mxu0
        %v6817 = vadd.f32 %v6776, %v6816
        %v6818 = vpop.f32.mrb[0].mxu0
        %v6819 = vadd.f32 %v6778, %v6818
        %v6820 = vpop.f32.mrb[0].mxu0
        %v6821 = vpop.f32.mrb[0].mxu0
        %6822 = vdwg.mxu0
        %6823 = vmatprep.subr.bf16.mxu0 %v4622
        %6824 = vmatpush1.bf16.msra.mxu0 %v4621
        %6825 = vmatprep.subr.bf16.mxu0 %v4640
        %6826 = vmatpush1.bf16.msra.mxu0 %v4639
        %6827 = vmatprep.subr.bf16.mxu0 %v4658
        %6828 = vmatpush1.bf16.msra.mxu0 %v4657
        %6829 = vmatprep.subr.bf16.mxu0 %v4676
        %6830 = vmatpush1.bf16.msra.mxu0 %v4675
        %6831 = vmatprep.subr.bf16.mxu0 %v4694
        %6832 = vmatpush1.bf16.msra.mxu0 %v4693
        %6833 = vmatprep.subr.bf16.mxu0 %v4712
        %6834 = vmatpush1.bf16.msra.mxu0 %v4711
        %6835 = vmatprep.subr.bf16.mxu0 %v4730
        %6836 = vmatpush1.bf16.msra.mxu0 %v4729
        %6837 = vmatprep.subr.bf16.mxu0 %v4748
        %6838 = vmatpush1.bf16.msra.mxu0 %v4747
        %6839 = vmatprep.subr.bf16.mxu0 %v4766
        %6840 = vmatpush1.bf16.msra.mxu0 %v4765
        %6841 = vmatprep.subr.bf16.mxu0 %v4784
        %6842 = vmatpush1.bf16.msra.mxu0 %v4783
        %6843 = vmatprep.subr.bf16.mxu0 %v4802
        %6844 = vmatpush1.bf16.msra.mxu0 %v4801
        %6845 = vmatprep.subr.bf16.mxu0 %v4820
        %6846 = vmatpush1.bf16.msra.mxu0 %v4819
        %6847 = vmatprep.subr.bf16.mxu0 %v4838
        %6848 = vmatpush1.bf16.msra.mxu0 %v4837
        %6849 = vmatprep.subr.bf16.mxu0 %v4856
        %6850 = vmatpush1.bf16.msra.mxu0 %v4855
        %6851 = vmatprep.subr.bf16.mxu0 %v4874
        %6852 = vmatpush1.bf16.msra.mxu0 %v4873
        %6853 = vmatprep.subr.bf16.mxu0 %v4892
        %6854 = vmatpush1.bf16.msra.mxu0 %v4891
        %6855 = vmatprep.mubr.bf16.mxu0 %v455
        %6856 = vmatmul.mubr.bf16.gmra.mrb[0].mxu0 %v454
        %v6857 = vpop.f32.mrb[0].mxu0
        %v6858 = vadd.f32 %v6817, %v6857
        %v6859 = vpop.f32.mrb[0].mxu0
        %v6860 = vadd.f32 %v6819, %v6859
        %v6861 = vpop.f32.mrb[0].mxu0
        %v6862 = vpop.f32.mrb[0].mxu0
        %6863 = vdwg.mxu0
        %v6864 = vpack.c.bf16 %v5874, %v5874
        %v6865 = vpack.c.bf16 %v5876, %v5876
        %v6866 = vpack.c.bf16 %v5997, %v5997
        %v6867 = vpack.c.bf16 %v5999, %v5999
        %v6868 = vpack.c.bf16 %v6120, %v6120
        %v6869 = vpack.c.bf16 %v6122, %v6122
        %v6870 = vpack.c.bf16 %v6243, %v6243
        %v6871 = vpack.c.bf16 %v6245, %v6245
        %v6872 = vpack.c.bf16 %v6366, %v6366
        %v6873 = vpack.c.bf16 %v6368, %v6368
        %v6874 = vpack.c.bf16 %v6489, %v6489
        %v6875 = vpack.c.bf16 %v6491, %v6491
        %v6876 = vpack.c.bf16 %v6612, %v6612
        %v6877 = vpack.c.bf16 %v6614, %v6614
        %v6878 = vpack.c.bf16 %v6735, %v6735
        %v6879 = vpack.c.bf16 %v6737, %v6737
        %v6880 = vpack.c.bf16 %v6858, %v6858
        %v6881 = vpack.c.bf16 %v6860, %v6860
        %v6900 = vunpack.c.l.b16 %v6864
        %v6901 = vunpack.c.l.b16 %v6865
        %v6902 = vunpack.c.l.b16 %v6866
        %v6903 = vunpack.c.l.b16 %v6867
        %v6904 = vunpack.c.l.b16 %v6868
        %v6905 = vunpack.c.l.b16 %v6869
        %v6906 = vunpack.c.l.b16 %v6870
        %v6907 = vunpack.c.l.b16 %v6871
        %v6908 = vunpack.c.l.b16 %v6872
        %v6909 = vunpack.c.l.b16 %v6873
        %v6910 = vunpack.c.l.b16 %v6874
        %v6911 = vunpack.c.l.b16 %v6875
        %v6912 = vunpack.c.l.b16 %v6876
        %v6913 = vunpack.c.l.b16 %v6877
        %v6914 = vunpack.c.l.b16 %v6878
        %v6915 = vunpack.c.l.b16 %v6879
        %v6916 = vunpack.c.l.b16 %v6880
        %v6917 = vunpack.c.l.b16 %v6881
        %v6918 = vpack.c.b16 %v6901, %v6900
        %v6919 = vpack.c.b16 %v6903, %v6902
        %v6920 = vpack.c.b16 %v6905, %v6904
        %v6921 = vpack.c.b16 %v6907, %v6906
        %v6922 = vpack.c.b16 %v6909, %v6908
        %v6923 = vpack.c.b16 %v6911, %v6910
        %v6924 = vpack.c.b16 %v6913, %v6912
        %v6925 = vpack.c.b16 %v6915, %v6914
        %v6926 = vpack.c.b16 %v6917, %v6916
        %6936 = vst [vmem:[%s323] sm:$0xff] %v6918
        %6937 = vst [vmem:[%s323 + $0x8] sm:$0xff] %v6919
        %6938 = vst [vmem:[%s323 + $0x10] sm:$0xff] %v6920
        %6939 = vst [vmem:[%s323 + $0x18] sm:$0xff] %v6921
        %6940 = vst [vmem:[%s323 + $0x20] sm:$0xff] %v6922
        %6941 = vst [vmem:[%s323 + $0x28] sm:$0xff] %v6923
        %6942 = vst [vmem:[%s323 + $0x30] sm:$0xff] %v6924
        %6943 = vst [vmem:[%s323 + $0x38] sm:$0xff] %v6925
        %6944 = vst [vmem:[%s323 + $0x40] sm:$0xff] %v6926
        %s6945 = sand.u32 %s147, 1
        %s6946 = scalar_lea.sflag [#allocation4], %s6945
        %s6947 = sand.u32 %s147, 1
        %s6948 = smul.addr %s6947, 72
        %s6949 = scalar_lea.vmem [#allocation11], %s6948
        %s6950 = sand.u32 %s173, 1
        %s6951 = scalar_lea.sflag [#allocation13], %s6950
        %s6952 = sand.u32 %s173, 1
        %s6953 = smul.addr %s6952, 24
        %s6954 = scalar_lea.vmem [#allocation12], %s6953
        // Predicated region
        $region61: #{tpu_custom_call.1} parent=39 // pred_check
          %p6955 = pneg %p157
        $region62: #{tpu_custom_call.1} parent=39 // pred_check_branch
          %6957 = sbr.rel (%p6955) target = $region64
        $region63: #{tpu_custom_call.1} parent=39 // pred_region
          %s6959 = ssub.s32 1152, 1152
          %6960 = vsyncadd %s6946, %s6959
          %s6961 = smul.addr %s29, 18
          %s6962 = smul.addr %s6961, 64
          %s6963 = scalar_lea.hbm %s5, %s6962
          %s6965 = sshll.u32 %s6949, 4
          %s6966 = int_to_ptr.vmem [resolvable:$true] %s6965
          %6968 = dma.vmem_to_hbm [thread:$0]  %s6966, 1152, %s6963, %s6946
        $region64: #{tpu_custom_call.1} parent=39 // pred_fallthru
          _
        // Predicated region
        $region65: #{tpu_custom_call.1} parent=39 // pred_check
          %p6969 = pneg %p183
        $region66: #{tpu_custom_call.1} parent=39 // pred_check_branch
          %6971 = sbr.rel (%p6969) target = $region68
        $region67: #{tpu_custom_call.1} parent=39 // pred_region
          %s6973 = ssub.s32 384, 384
          %6974 = vsyncadd %s6951, %s6973
          %s6975 = smul.addr %s29, 6
          %s6976 = smul.addr %s6975, 64
          %s6977 = scalar_lea.hbm %s6, %s6976
          %s6979 = sshll.u32 %s6954, 4
          %s6980 = int_to_ptr.vmem [resolvable:$true] %s6979
          %6982 = dma.vmem_to_hbm [thread:$0]  %s6980, 384, %s6977, %s6951
        $region68: #{tpu_custom_call.1} parent=39 // pred_fallthru
          _
      $region40: #{tpu_custom_call.1} parent=5 // pred_fallthru
        _
      %p6983 = scmp.le.s32.totalorder 2, %s24
      // Predicated region
      $region69: #{tpu_custom_call.1} parent=5 // pred_check
        %p6984 = pneg %p6983
      $region70: #{tpu_custom_call.1} parent=5 // pred_check_branch
        %6986 = sbr.rel (%p6984) target = $region72
      $region71: #{tpu_custom_call.1} parent=5 // pred_region
        %s6987 = ssub.s32 %s24, 2
        // Predicated region
        $region73: #{tpu_custom_call.1} parent=71 // pred_check
          %p6988 = pneg %p163
        $region74: #{tpu_custom_call.1} parent=71 // pred_check_branch
          %6990 = sbr.rel (%p6988) target = $region76
        $region75: #{tpu_custom_call.1} parent=71 // pred_region
          %s6991 = sand.u32 %s148, 1
          %s6992 = scalar_lea.sflag [#allocation4], %s6991
          %s6993 = sand.u32 %s148, 1
          %s6994 = smul.addr %s6993, 72
          %s6995 = scalar_lea.vmem [#allocation11], %s6994
          %6996 = dma.done %s6992, 1152
        $region76: #{tpu_custom_call.1} parent=71 // pred_fallthru
          _
        // Predicated region
        $region77: #{tpu_custom_call.1} parent=71 // pred_check
          %p6997 = pneg %p189
        $region78: #{tpu_custom_call.1} parent=71 // pred_check_branch
          %6999 = sbr.rel (%p6997) target = $region80
        $region79: #{tpu_custom_call.1} parent=71 // pred_region
          %s7000 = sand.u32 %s174, 1
          %s7001 = scalar_lea.sflag [#allocation13], %s7000
          %s7002 = sand.u32 %s174, 1
          %s7003 = smul.addr %s7002, 24
          %s7004 = scalar_lea.vmem [#allocation12], %s7003
          %7005 = dma.done %s7001, 384
        $region80: #{tpu_custom_call.1} parent=71 // pred_fallthru
          _
      $region72: #{tpu_custom_call.1} parent=5 // pred_fallthru
        _
    $region6: #{tpu_custom_call.1} parent=1 // loop_footer
      %s28 = sadd.s32 1, %s24
    $region7: #{tpu_custom_call.1} parent=1 // loop_footer_branch
      %23 = sbr.rel target = $region3
    $region8: #{tpu_custom_call.1} parent=1 // loop_exit
      _
    %7006 = vsyncpa [#allocation3], 1
    %s7007 = scalar_lea.sflag [#allocation3], 1
    %7008 = vsyncpa %s7007, 1
    %7009 = vsyncpa [#allocation6], 1
    %7010 = vsyncpa [#allocation9], 1
    %7011 = vsyncpa [#allocation4], 1
    %s7012 = scalar_lea.sflag [#allocation4], 1
    %7013 = vsyncpa %s7012, 1
    %7014 = vsyncpa [#allocation13], 1
    %s7015 = scalar_lea.sflag [#allocation13], 1
    %7016 = vsyncpa %s7015, 1

</llo_original>
